<compile_context>
chip_gen: v5e
topology: v5e:2x2
jax: 0.10.0
libtpu: 0.0.40
codegen_flags: <defaults>
</compile_context>

<pallas_src>
import functools
import jax
import jax.numpy as jnp
from jax.experimental import pallas as pl
from jax.experimental.pallas import tpu as pltpu

EPS = 1e-5
STEPS = 2
MULTIPLIER = 2
PRIMITIVES = ('none', 'max_pool_3x3', 'avg_pool_3x3', 'skip_connect',
              'sep_conv_3x3', 'dil_conv_3x3')
# alpha column indices (PRIMITIVES order); 'none' (col 0) contributes exactly 0.
_W_MAX, _W_AVG, _W_SKIP, _W_SEP, _W_DIL = 1, 2, 3, 4, 5
NEG_BIG = 1e30   # additive "-inf" bias for max-pool padding


def _edge_index(step, j):
    # reference: op index = offset + j, offset = sum_{ii<step}(2+ii)
    return sum(2 + ii for ii in range(step)) + j


def _tap_deltas(W, dil):
    # flat-M offset of the 9 taps of a 3x3 window (dilation dil, pad dil)
    return [(i - 1) * dil * W + (j - 1) * dil for i in range(3) for j in range(3)]


# ------------------------------ fused kernel ---------------------------------

def _cell_kernel(w_ref, s0_ref, s1_ref, pre0_ref, pre1_ref,
                 dwb_ref, pwblk_ref, pw2_ref, avgw_ref, neg1_ref,
                 o_ref, *, H, W, steps):
    """Whole DARTS normal cell.  Activations live as (C, M), M = N*H*W."""
    C = pre0_ref.shape[0]
    M = o_ref.shape[1]
    deltas1 = _tap_deltas(W, 1)   # 3x3, pad 1  (pools, sep-conv dw taps)
    deltas2 = _tap_deltas(W, 2)   # 3x3, dil 2, pad 2 (dil-conv dw taps)

    def relu(x):
        return jnp.maximum(x, 0.0)

    def shifted(x, delta):
        # out[:, m] = x[:, (m + delta) mod M]; wrap-around garbage is killed
        # either by the mask-folded dw weights or the pool mask tables.
        return x if delta == 0 else pltpu.roll(x, shift=(-delta) % M, axis=1)

    def bn(x, scale=None):
        # BatchNorm2d(affine=False), training-mode batch stats (biased var),
        # one-pass: var = E[x^2] - mean^2 (clamped >= 0 for safety).
        # `scale` folds an architecture alpha: w*bn(x) = (x-mean)*(w*inv_std).
        m = jnp.mean(x, axis=1, keepdims=True)
        ex2 = jnp.mean(x * x, axis=1, keepdims=True)
        inv = jax.lax.rsqrt(jnp.maximum(ex2 - m * m, 0.0) + EPS)
        if scale is not None:
            inv = inv * scale
        return (x - m) * inv

    def pw_bn(x, w_mat, scale=None):
        # 1x1 conv (channel matmul) + BN(affine=False), optional alpha fold.
        return bn(jnp.dot(w_mat, x, preferred_element_type=jnp.float32), scale)

    def dwb(e, k, t):
        # pre-broadcast, padding-mask-folded depthwise tap weight: (C, M)
        return dwb_ref[(e * 3 + k) * 9 + t]

    def state_taps(x):
        """Per-input-state shared tensors: 9 relu'd pad-1 taps, 9 relu'd
        dilated taps, and the BN'd max/avg pools.  One pltpu.roll per tap,
        reused by every edge that consumes this state."""
        xr = relu(x)
        taps1, taps2 = [], []
        mx = None
        av = None
        for t, d in enumerate(deltas1):
            if d == 0:                       # center tap, fully valid
                sh = x
                mterm = x
                taps1.append(xr)
            else:
                sh = shifted(x, d)
                mterm = sh + neg1_ref[t]     # -BIG at padded positions (max pool)
                taps1.append(relu(sh))       # padding mask folded into dw weights
            aterm = sh * avgw_ref[t]         # avg-pool mask & 1/valid-count folded
            mx = mterm if mx is None else jnp.maximum(mx, mterm)
            av = aterm if av is None else av + aterm
        for t, d in enumerate(deltas2):
            taps2.append(xr if d == 0 else relu(shifted(x, d)))
        # MixedOp wraps both pools in BatchNorm2d(affine=False); with batch
        # stats the normalized result is identical for every edge on this state.
        return taps1, taps2, bn(mx), bn(av)

    def edge_contrib(x, taps1, taps2, bn_mx, bn_av, e):
        """MixedOp for edge e: sum_p alpha[e,p] * prim_p(x); 'none' is 0."""
        # depthwise 3x3 stages of sep_conv (stage 1) and dil_conv over the
        # shared taps; padding masks already folded into the (C, M) weights.
        d1 = taps1[0] * dwb(e, 0, 0)
        d3 = taps2[0] * dwb(e, 2, 0)
        for t in range(1, 9):
            d1 = d1 + taps1[t] * dwb(e, 0, t)
            d3 = d3 + taps2[t] * dwb(e, 2, t)

        # batched 1x1 convs: block-diag [sep_pw1; dil_pw] -> one MXU pass.
        y = jnp.dot(pwblk_ref[e], jnp.concatenate([d1, d3], axis=0),
                    preferred_element_type=jnp.float32)
        h1 = bn(y[:C, :])                        # sep_conv stage-1 BN (no alpha)
        dil = bn(y[C:, :], w_ref[e, _W_DIL])     # dil_conv output, alpha folded

        # sep_conv stage 2: ReLU, dw3x3 (per-edge taps), 1x1, BN (alpha folded)
        h1r = relu(h1)
        d2 = None
        for t, d in enumerate(deltas1):
            c = (h1r if d == 0 else shifted(h1r, d)) * dwb(e, 1, t)
            d2 = c if d2 is None else d2 + c
        sep = pw_bn(d2, pw2_ref[e], w_ref[e, _W_SEP])

        return (w_ref[e, _W_MAX] * bn_mx + w_ref[e, _W_AVG] * bn_av +
                w_ref[e, _W_SKIP] * x +          # skip_connect == Identity
                sep + dil)

    # preprocess0 / preprocess1: ReLUConvBN(C_in, C, 1, 1, 0, affine=False)
    s0 = pw_bn(relu(s0_ref[...]), pre0_ref[...])
    s1 = pw_bn(relu(s1_ref[...]), pre1_ref[...])

    # Iterate per INPUT STATE: materialize each state's taps/pools once and
    # feed every edge that consumes it.  Node i (= state i+2) is finalized as
    # soon as all its input states have been processed; addition order of the
    # per-node sum matches the reference (j = 0, 1, ...).
    states = [s0, s1]
    accs = [None] * steps
    for s_idx in range(2 + steps - 1):           # last state feeds no edge
        x = states[s_idx]
        taps1, taps2, bn_mx, bn_av = state_taps(x)
        for i in range(max(0, s_idx - 1), steps):
            e = _edge_index(i, s_idx)
            c = edge_contrib(x, taps1, taps2, bn_mx, bn_av, e)
            accs[i] = c if accs[i] is None else accs[i] + c
        nxt = s_idx - 1
        if 0 <= nxt < steps:
            states.append(accs[nxt])

    # torch.cat(states[-multiplier:], dim=1): channel (sublane) concat.
    for k, s in enumerate(states[-MULTIPLIER:]):
        o_ref[k * C:(k + 1) * C, :] = s


# ------------------------------ wrapper ---------------------------------------

def init_params(key, C_pp, C_p, C, num_edges):
    ks = jax.random.split(key, 4)
    return {
        # ReLUConvBN 1x1 weights, stored as (C_out, C_in) for W @ x in (C, M).
        'pre0_w': jax.random.normal(ks[0], (C, C_pp), jnp.float32) * 0.1,
        'pre1_w': jax.random.normal(ks[1], (C, C_p), jnp.float32) * 0.1,
        # dw[e, k, c, t]: depthwise 3x3 tap weights (k: sep_dw1, sep_dw2,
        # dil_dw; t = 3*i + j over the window).
        'dw': jax.random.normal(ks[2], (num_edges, 3, C, 9), jnp.float32) * 0.2,
        # pw[e, k]: 1x1-conv weights (C_out, C_in) (k: sep_pw1, sep_pw2, dil_pw).
        'pw': jax.random.normal(ks[3], (num_edges, 3, C, C), jnp.float32) * 0.2,
    }


def cell_forward(s0_nchw, s1_nchw, weights, params, drop_prob=0.0):
    del drop_prob  # eval path; TODO(synk): drop_path for drop_prob > 0
    N, C_pp, H, W = s0_nchw.shape
    C_p = s1_nchw.shape[1]
    C = params['pre0_w'].shape[0]
    M = N * H * W
    E = params['dw'].shape[0]
    f32 = jnp.float32

    # NCHW -> lane-dense (C, M): channels on sublanes, M = N*H*W on lanes.
    s0 = jnp.transpose(s0_nchw, (1, 0, 2, 3)).reshape(C_pp, M).astype(f32)
    s1 = jnp.transpose(s1_nchw, (1, 0, 2, 3)).reshape(C_p, M).astype(f32)

    # ---- tiny constant tables (all << 1 MiB), built once on the XLA side ----
    m_idx = jnp.arange(M, dtype=jnp.int32)
    w_pos = m_idx % W
    h_pos = (m_idx // W) % H

    def window_masks(dil, pad):
        cols = []
        for i in range(3):
            for j in range(3):
                dh, dw = i * dil - pad, j * dil - pad
                cols.append(((h_pos + dh >= 0) & (h_pos + dh < H) &
                             (w_pos + dw >= 0) & (w_pos + dw < W)).astype(f32))
        return jnp.stack(cols)                                     # (9, M)

    mask1 = window_masks(1, 1)            # pools + sep_conv dw validity
    mask2 = window_masks(2, 2)            # dil_conv dw validity
    # AvgPool2d(3,1,1,count_include_pad=False): mask and 1/valid-count folded.
    avgw = jnp.broadcast_to((mask1 / jnp.sum(mask1, 0, keepdims=True))[:, None, :],
                            (9, C, M))
    # MaxPool2d(3,1,1): additive -inf-style bias for padded taps.
    neg1 = jnp.broadcast_to(((mask1 - 1.0) * NEG_BIG)[:, None, :], (9, C, M))

    # Depthwise weights: tap-major, pre-broadcast to full lane width with the
    # zero-padding masks folded in -> plain (C, M) VMEM multiplies in-kernel.
    maskk = jnp.stack([mask1, mask1, mask2], 0)                    # (3, 9, M)
    dwb = (jnp.transpose(params['dw'], (0, 1, 3, 2))[:, :, :, :, None] *
           maskk[None, :, :, None, :]).reshape(E * 3 * 9, C, M).astype(f32)

    # Per-edge batched 1x1 convs: block-diag(sep_pw1, dil_pw) -> (E, 2C, 2C).
    pw = params['pw'].astype(f32)
    z = jnp.zeros((E, C, C), f32)
    pwblk = jnp.concatenate([jnp.concatenate([pw[:, 0], z], -1),
                             jnp.concatenate([z, pw[:, 2]], -1)], -2)
    pw2 = pw[:, 1]                                                 # (E, C, C)

    kern = functools.partial(_cell_kernel, H=H, W=W, steps=STEPS)
    vmem = pl.BlockSpec(memory_space=pltpu.MemorySpace.VMEM)
    smem = pl.BlockSpec(memory_space=pltpu.MemorySpace.SMEM)
    out_cm = pl.pallas_call(
        kern,
        in_specs=[smem,                 # architecture alphas
                  vmem, vmem,           # s0, s1
                  vmem, vmem,           # pre0_w, pre1_w
                  vmem, vmem, vmem,     # dwb, pwblk, pw2
                  vmem, vmem],          # avgw, neg1
        out_specs=vmem,
        out_shape=jax.ShapeDtypeStruct((MULTIPLIER * C, M), jnp.float32),
    )(weights.astype(f32), s0, s1,
      params['pre0_w'].astype(f32), params['pre1_w'].astype(f32),
      dwb, pwblk, pw2, avgw, neg1)

    # (2C, M) -> NCHW
    return jnp.transpose(out_cm.reshape(MULTIPLIER * C, N, H, W), (1, 0, 2, 3))


# --------------------------------- main ---------------------------------------

if __name__ == "__main__":
    N, C_pp, C_p, C, H, W = 2, 8, 8, 8, 8, 8
    num_edges = sum(2 + i for i in range(STEPS))  # = 5

    key = jax.random.PRNGKey(0)
    k0, k1, k2, kw = jax.random.split(key, 4)
    s0 = jax.random.normal(k0, (N, C_pp, H, W), jnp.float32)
    s1 = jax.random.normal(k1, (N, C_p, H, W), jnp.float32)
    alphas = jax.random.normal(kw, (num_edges, len(PRIMITIVES)), jnp.float32)
    weights = jax.nn.softmax(alphas, axis=-1)     # DARTS architecture weights
    params = init_params(k2, C_pp, C_p, C, num_edges)

    fwd = jax.jit(lambda a, b, w: cell_forward(a, b, w, params))
    out = jax.block_until_ready(fwd(s0, s1, weights))

    assert out.shape == (N, MULTIPLIER * C, H, W), out.shape
    assert bool(jnp.isfinite(out).all())
    print("KERNEL_OK")
</pallas_src>

<mosaic_0001>
module attributes {stable_mosaic.version = 11 : i64} {
  func.func @_cell_kernel(%arg0: memref<5x6xf32, #tpu.memory_space<smem>>, %arg1: memref<8x128xf32, #tpu.memory_space<vmem>>, %arg2: memref<8x128xf32, #tpu.memory_space<vmem>>, %arg3: memref<8x8xf32, #tpu.memory_space<vmem>>, %arg4: memref<8x8xf32, #tpu.memory_space<vmem>>, %arg5: memref<135x8x128xf32, #tpu.memory_space<vmem>>, %arg6: memref<5x16x16xf32, #tpu.memory_space<vmem>>, %arg7: memref<5x8x8xf32, #tpu.memory_space<vmem>>, %arg8: memref<9x8x128xf32, #tpu.memory_space<vmem>>, %arg9: memref<9x8x128xf32, #tpu.memory_space<vmem>>, %arg10: memref<16x128xf32, #tpu.memory_space<vmem>>) attributes {dimension_semantics = [], scalar_prefetch = 0 : i64, scratch_operands = 0 : i64, tpu.core_type = #tpu.core_type<tc>} {
    %c0 = arith.constant 0 : index
    %c0_0 = arith.constant 0 : index
    %0 = vector.load %arg1[%c0, %c0_0] : memref<8x128xf32, #tpu.memory_space<vmem>>, vector<8x128xf32>
    %cst = arith.constant 0.000000e+00 : f32
    %1 = vector.broadcast %cst : f32 to vector<8x128xf32>
    %2 = arith.maximumf %0, %1 : vector<8x128xf32>
    %c0_1 = arith.constant 0 : index
    %c0_2 = arith.constant 0 : index
    %3 = vector.load %arg3[%c0_1, %c0_2] : memref<8x8xf32, #tpu.memory_space<vmem>>, vector<8x8xf32>
    %cst_3 = arith.constant dense<0.000000e+00> : vector<8x128xf32>
    %4 = tpu.matmul %3, %2, %cst_3 {dimension_numbers = #tpu.dot_dimension_numbers<[1], [0], [0], [1], [0, 0, 1, 1], [], []>} : vector<8x8xf32>, vector<8x128xf32>, vector<8x128xf32> -> vector<8x128xf32>
    %cst_4 = arith.constant dense<0.000000e+00> : vector<8xf32>
    %5 = vector.multi_reduction <add>, %4, %cst_4 [1] : vector<8x128xf32> to vector<8xf32>
    %6 = vector.shape_cast %5 : vector<8xf32> to vector<8x1xf32>
    %cst_5 = arith.constant 1.280000e+02 : f32
    %7 = vector.broadcast %cst_5 : f32 to vector<8x1xf32>
    %8 = arith.divf %6, %7 : vector<8x1xf32>
    %9 = arith.mulf %4, %4 : vector<8x128xf32>
    %cst_6 = arith.constant dense<0.000000e+00> : vector<8xf32>
    %10 = vector.multi_reduction <add>, %9, %cst_6 [1] : vector<8x128xf32> to vector<8xf32>
    %11 = vector.shape_cast %10 : vector<8xf32> to vector<8x1xf32>
    %cst_7 = arith.constant 1.280000e+02 : f32
    %12 = vector.broadcast %cst_7 : f32 to vector<8x1xf32>
    %13 = arith.divf %11, %12 : vector<8x1xf32>
    %14 = arith.mulf %8, %8 : vector<8x1xf32>
    %15 = arith.subf %13, %14 : vector<8x1xf32>
    %cst_8 = arith.constant 0.000000e+00 : f32
    %16 = vector.broadcast %cst_8 : f32 to vector<8x1xf32>
    %17 = arith.maximumf %15, %16 : vector<8x1xf32>
    %cst_9 = arith.constant 9.99999974E-6 : f32
    %18 = vector.broadcast %cst_9 : f32 to vector<8x1xf32>
    %19 = arith.addf %17, %18 : vector<8x1xf32>
    %20 = math.rsqrt %19 : vector<8x1xf32>
    %21 = vector.broadcast %8 : vector<8x1xf32> to vector<8x128xf32>
    %22 = arith.subf %4, %21 : vector<8x128xf32>
    %23 = vector.broadcast %20 : vector<8x1xf32> to vector<8x128xf32>
    %24 = arith.mulf %22, %23 : vector<8x128xf32>
    %c0_10 = arith.constant 0 : index
    %c0_11 = arith.constant 0 : index
    %25 = vector.load %arg2[%c0_10, %c0_11] : memref<8x128xf32, #tpu.memory_space<vmem>>, vector<8x128xf32>
    %cst_12 = arith.constant 0.000000e+00 : f32
    %26 = vector.broadcast %cst_12 : f32 to vector<8x128xf32>
    %27 = arith.maximumf %25, %26 : vector<8x128xf32>
    %c0_13 = arith.constant 0 : index
    %c0_14 = arith.constant 0 : index
    %28 = vector.load %arg4[%c0_13, %c0_14] : memref<8x8xf32, #tpu.memory_space<vmem>>, vector<8x8xf32>
    %cst_15 = arith.constant dense<0.000000e+00> : vector<8x128xf32>
    %29 = tpu.matmul %28, %27, %cst_15 {dimension_numbers = #tpu.dot_dimension_numbers<[1], [0], [0], [1], [0, 0, 1, 1], [], []>} : vector<8x8xf32>, vector<8x128xf32>, vector<8x128xf32> -> vector<8x128xf32>
    %cst_16 = arith.constant dense<0.000000e+00> : vector<8xf32>
    %30 = vector.multi_reduction <add>, %29, %cst_16 [1] : vector<8x128xf32> to vector<8xf32>
    %31 = vector.shape_cast %30 : vector<8xf32> to vector<8x1xf32>
    %cst_17 = arith.constant 1.280000e+02 : f32
    %32 = vector.broadcast %cst_17 : f32 to vector<8x1xf32>
    %33 = arith.divf %31, %32 : vector<8x1xf32>
    %34 = arith.mulf %29, %29 : vector<8x128xf32>
    %cst_18 = arith.constant dense<0.000000e+00> : vector<8xf32>
    %35 = vector.multi_reduction <add>, %34, %cst_18 [1] : vector<8x128xf32> to vector<8xf32>
    %36 = vector.shape_cast %35 : vector<8xf32> to vector<8x1xf32>
    %cst_19 = arith.constant 1.280000e+02 : f32
    %37 = vector.broadcast %cst_19 : f32 to vector<8x1xf32>
    %38 = arith.divf %36, %37 : vector<8x1xf32>
    %39 = arith.mulf %33, %33 : vector<8x1xf32>
    %40 = arith.subf %38, %39 : vector<8x1xf32>
    %cst_20 = arith.constant 0.000000e+00 : f32
    %41 = vector.broadcast %cst_20 : f32 to vector<8x1xf32>
    %42 = arith.maximumf %40, %41 : vector<8x1xf32>
    %cst_21 = arith.constant 9.99999974E-6 : f32
    %43 = vector.broadcast %cst_21 : f32 to vector<8x1xf32>
    %44 = arith.addf %42, %43 : vector<8x1xf32>
    %45 = math.rsqrt %44 : vector<8x1xf32>
    %46 = vector.broadcast %33 : vector<8x1xf32> to vector<8x128xf32>
    %47 = arith.subf %29, %46 : vector<8x128xf32>
    %48 = vector.broadcast %45 : vector<8x1xf32> to vector<8x128xf32>
    %49 = arith.mulf %47, %48 : vector<8x128xf32>
    %cst_22 = arith.constant 0.000000e+00 : f32
    %50 = vector.broadcast %cst_22 : f32 to vector<8x128xf32>
    %51 = arith.maximumf %24, %50 : vector<8x128xf32>
    %c9_i32 = arith.constant 9 : i32
    %52 = tpu.dynamic_rotate %24 by %c9_i32 dim 1 : vector<8x128xf32>, i32 -> vector<8x128xf32>
    %c0_23 = arith.constant 0 : index
    %c0_24 = arith.constant 0 : index
    %c0_25 = arith.constant 0 : index
    %53 = vector.load %arg9[%c0_23, %c0_24, %c0_25] : memref<9x8x128xf32, #tpu.memory_space<vmem>>, vector<1x8x128xf32>
    %54 = vector.shape_cast %53 : vector<1x8x128xf32> to vector<8x128xf32>
    %55 = arith.addf %52, %54 : vector<8x128xf32>
    %cst_26 = arith.constant 0.000000e+00 : f32
    %56 = vector.broadcast %cst_26 : f32 to vector<8x128xf32>
    %57 = arith.maximumf %52, %56 : vector<8x128xf32>
    %c0_27 = arith.constant 0 : index
    %c0_28 = arith.constant 0 : index
    %c0_29 = arith.constant 0 : index
    %58 = vector.load %arg8[%c0_27, %c0_28, %c0_29] : memref<9x8x128xf32, #tpu.memory_space<vmem>>, vector<1x8x128xf32>
    %59 = vector.shape_cast %58 : vector<1x8x128xf32> to vector<8x128xf32>
    %60 = arith.mulf %52, %59 : vector<8x128xf32>
    %c8_i32 = arith.constant 8 : i32
    %61 = tpu.dynamic_rotate %24 by %c8_i32 dim 1 : vector<8x128xf32>, i32 -> vector<8x128xf32>
    %c1 = arith.constant 1 : index
    %c0_30 = arith.constant 0 : index
    %c0_31 = arith.constant 0 : index
    %62 = vector.load %arg9[%c1, %c0_30, %c0_31] : memref<9x8x128xf32, #tpu.memory_space<vmem>>, vector<1x8x128xf32>
    %63 = vector.shape_cast %62 : vector<1x8x128xf32> to vector<8x128xf32>
    %64 = arith.addf %61, %63 : vector<8x128xf32>
    %cst_32 = arith.constant 0.000000e+00 : f32
    %65 = vector.broadcast %cst_32 : f32 to vector<8x128xf32>
    %66 = arith.maximumf %61, %65 : vector<8x128xf32>
    %c1_33 = arith.constant 1 : index
    %c0_34 = arith.constant 0 : index
    %c0_35 = arith.constant 0 : index
    %67 = vector.load %arg8[%c1_33, %c0_34, %c0_35] : memref<9x8x128xf32, #tpu.memory_space<vmem>>, vector<1x8x128xf32>
    %68 = vector.shape_cast %67 : vector<1x8x128xf32> to vector<8x128xf32>
    %69 = arith.mulf %61, %68 : vector<8x128xf32>
    %70 = arith.maximumf %55, %64 : vector<8x128xf32>
    %71 = arith.addf %60, %69 : vector<8x128xf32>
    %c7_i32 = arith.constant 7 : i32
    %72 = tpu.dynamic_rotate %24 by %c7_i32 dim 1 : vector<8x128xf32>, i32 -> vector<8x128xf32>
    %c2 = arith.constant 2 : index
    %c0_36 = arith.constant 0 : index
    %c0_37 = arith.constant 0 : index
    %73 = vector.load %arg9[%c2, %c0_36, %c0_37] : memref<9x8x128xf32, #tpu.memory_space<vmem>>, vector<1x8x128xf32>
    %74 = vector.shape_cast %73 : vector<1x8x128xf32> to vector<8x128xf32>
    %75 = arith.addf %72, %74 : vector<8x128xf32>
    %cst_38 = arith.constant 0.000000e+00 : f32
    %76 = vector.broadcast %cst_38 : f32 to vector<8x128xf32>
    %77 = arith.maximumf %72, %76 : vector<8x128xf32>
    %c2_39 = arith.constant 2 : index
    %c0_40 = arith.constant 0 : index
    %c0_41 = arith.constant 0 : index
    %78 = vector.load %arg8[%c2_39, %c0_40, %c0_41] : memref<9x8x128xf32, #tpu.memory_space<vmem>>, vector<1x8x128xf32>
    %79 = vector.shape_cast %78 : vector<1x8x128xf32> to vector<8x128xf32>
    %80 = arith.mulf %72, %79 : vector<8x128xf32>
    %81 = arith.maximumf %70, %75 : vector<8x128xf32>
    %82 = arith.addf %71, %80 : vector<8x128xf32>
    %c1_i32 = arith.constant 1 : i32
    %83 = tpu.dynamic_rotate %24 by %c1_i32 dim 1 : vector<8x128xf32>, i32 -> vector<8x128xf32>
    %c3 = arith.constant 3 : index
    %c0_42 = arith.constant 0 : index
    %c0_43 = arith.constant 0 : index
    %84 = vector.load %arg9[%c3, %c0_42, %c0_43] : memref<9x8x128xf32, #tpu.memory_space<vmem>>, vector<1x8x128xf32>
    %85 = vector.shape_cast %84 : vector<1x8x128xf32> to vector<8x128xf32>
    %86 = arith.addf %83, %85 : vector<8x128xf32>
    %cst_44 = arith.constant 0.000000e+00 : f32
    %87 = vector.broadcast %cst_44 : f32 to vector<8x128xf32>
    %88 = arith.maximumf %83, %87 : vector<8x128xf32>
    %c3_45 = arith.constant 3 : index
    %c0_46 = arith.constant 0 : index
    %c0_47 = arith.constant 0 : index
    %89 = vector.load %arg8[%c3_45, %c0_46, %c0_47] : memref<9x8x128xf32, #tpu.memory_space<vmem>>, vector<1x8x128xf32>
    %90 = vector.shape_cast %89 : vector<1x8x128xf32> to vector<8x128xf32>
    %91 = arith.mulf %83, %90 : vector<8x128xf32>
    %92 = arith.maximumf %81, %86 : vector<8x128xf32>
    %93 = arith.addf %82, %91 : vector<8x128xf32>
    %c4 = arith.constant 4 : index
    %c0_48 = arith.constant 0 : index
    %c0_49 = arith.constant 0 : index
    %94 = vector.load %arg8[%c4, %c0_48, %c0_49] : memref<9x8x128xf32, #tpu.memory_space<vmem>>, vector<1x8x128xf32>
    %95 = vector.shape_cast %94 : vector<1x8x128xf32> to vector<8x128xf32>
    %96 = arith.mulf %24, %95 : vector<8x128xf32>
    %97 = arith.maximumf %92, %24 : vector<8x128xf32>
    %98 = arith.addf %93, %96 : vector<8x128xf32>
    %c127_i32 = arith.constant 127 : i32
    %99 = tpu.dynamic_rotate %24 by %c127_i32 dim 1 : vector<8x128xf32>, i32 -> vector<8x128xf32>
    %c5 = arith.constant 5 : index
    %c0_50 = arith.constant 0 : index
    %c0_51 = arith.constant 0 : index
    %100 = vector.load %arg9[%c5, %c0_50, %c0_51] : memref<9x8x128xf32, #tpu.memory_space<vmem>>, vector<1x8x128xf32>
    %101 = vector.shape_cast %100 : vector<1x8x128xf32> to vector<8x128xf32>
    %102 = arith.addf %99, %101 : vector<8x128xf32>
    %cst_52 = arith.constant 0.000000e+00 : f32
    %103 = vector.broadcast %cst_52 : f32 to vector<8x128xf32>
    %104 = arith.maximumf %99, %103 : vector<8x128xf32>
    %c5_53 = arith.constant 5 : index
    %c0_54 = arith.constant 0 : index
    %c0_55 = arith.constant 0 : index
    %105 = vector.load %arg8[%c5_53, %c0_54, %c0_55] : memref<9x8x128xf32, #tpu.memory_space<vmem>>, vector<1x8x128xf32>
    %106 = vector.shape_cast %105 : vector<1x8x128xf32> to vector<8x128xf32>
    %107 = arith.mulf %99, %106 : vector<8x128xf32>
    %108 = arith.maximumf %97, %102 : vector<8x128xf32>
    %109 = arith.addf %98, %107 : vector<8x128xf32>
    %c121_i32 = arith.constant 121 : i32
    %110 = tpu.dynamic_rotate %24 by %c121_i32 dim 1 : vector<8x128xf32>, i32 -> vector<8x128xf32>
    %c6 = arith.constant 6 : index
    %c0_56 = arith.constant 0 : index
    %c0_57 = arith.constant 0 : index
    %111 = vector.load %arg9[%c6, %c0_56, %c0_57] : memref<9x8x128xf32, #tpu.memory_space<vmem>>, vector<1x8x128xf32>
    %112 = vector.shape_cast %111 : vector<1x8x128xf32> to vector<8x128xf32>
    %113 = arith.addf %110, %112 : vector<8x128xf32>
    %cst_58 = arith.constant 0.000000e+00 : f32
    %114 = vector.broadcast %cst_58 : f32 to vector<8x128xf32>
    %115 = arith.maximumf %110, %114 : vector<8x128xf32>
    %c6_59 = arith.constant 6 : index
    %c0_60 = arith.constant 0 : index
    %c0_61 = arith.constant 0 : index
    %116 = vector.load %arg8[%c6_59, %c0_60, %c0_61] : memref<9x8x128xf32, #tpu.memory_space<vmem>>, vector<1x8x128xf32>
    %117 = vector.shape_cast %116 : vector<1x8x128xf32> to vector<8x128xf32>
    %118 = arith.mulf %110, %117 : vector<8x128xf32>
    %119 = arith.maximumf %108, %113 : vector<8x128xf32>
    %120 = arith.addf %109, %118 : vector<8x128xf32>
    %c120_i32 = arith.constant 120 : i32
    %121 = tpu.dynamic_rotate %24 by %c120_i32 dim 1 : vector<8x128xf32>, i32 -> vector<8x128xf32>
    %c7 = arith.constant 7 : index
    %c0_62 = arith.constant 0 : index
    %c0_63 = arith.constant 0 : index
    %122 = vector.load %arg9[%c7, %c0_62, %c0_63] : memref<9x8x128xf32, #tpu.memory_space<vmem>>, vector<1x8x128xf32>
    %123 = vector.shape_cast %122 : vector<1x8x128xf32> to vector<8x128xf32>
    %124 = arith.addf %121, %123 : vector<8x128xf32>
    %cst_64 = arith.constant 0.000000e+00 : f32
    %125 = vector.broadcast %cst_64 : f32 to vector<8x128xf32>
    %126 = arith.maximumf %121, %125 : vector<8x128xf32>
    %c7_65 = arith.constant 7 : index
    %c0_66 = arith.constant 0 : index
    %c0_67 = arith.constant 0 : index
    %127 = vector.load %arg8[%c7_65, %c0_66, %c0_67] : memref<9x8x128xf32, #tpu.memory_space<vmem>>, vector<1x8x128xf32>
    %128 = vector.shape_cast %127 : vector<1x8x128xf32> to vector<8x128xf32>
    %129 = arith.mulf %121, %128 : vector<8x128xf32>
    %130 = arith.maximumf %119, %124 : vector<8x128xf32>
    %131 = arith.addf %120, %129 : vector<8x128xf32>
    %c119_i32 = arith.constant 119 : i32
    %132 = tpu.dynamic_rotate %24 by %c119_i32 dim 1 : vector<8x128xf32>, i32 -> vector<8x128xf32>
    %c8 = arith.constant 8 : index
    %c0_68 = arith.constant 0 : index
    %c0_69 = arith.constant 0 : index
    %133 = vector.load %arg9[%c8, %c0_68, %c0_69] : memref<9x8x128xf32, #tpu.memory_space<vmem>>, vector<1x8x128xf32>
    %134 = vector.shape_cast %133 : vector<1x8x128xf32> to vector<8x128xf32>
    %135 = arith.addf %132, %134 : vector<8x128xf32>
    %cst_70 = arith.constant 0.000000e+00 : f32
    %136 = vector.broadcast %cst_70 : f32 to vector<8x128xf32>
    %137 = arith.maximumf %132, %136 : vector<8x128xf32>
    %c8_71 = arith.constant 8 : index
    %c0_72 = arith.constant 0 : index
    %c0_73 = arith.constant 0 : index
    %138 = vector.load %arg8[%c8_71, %c0_72, %c0_73] : memref<9x8x128xf32, #tpu.memory_space<vmem>>, vector<1x8x128xf32>
    %139 = vector.shape_cast %138 : vector<1x8x128xf32> to vector<8x128xf32>
    %140 = arith.mulf %132, %139 : vector<8x128xf32>
    %141 = arith.maximumf %130, %135 : vector<8x128xf32>
    %142 = arith.addf %131, %140 : vector<8x128xf32>
    %c18_i32 = arith.constant 18 : i32
    %143 = tpu.dynamic_rotate %24 by %c18_i32 dim 1 : vector<8x128xf32>, i32 -> vector<8x128xf32>
    %cst_74 = arith.constant 0.000000e+00 : f32
    %144 = vector.broadcast %cst_74 : f32 to vector<8x128xf32>
    %145 = arith.maximumf %143, %144 : vector<8x128xf32>
    %c16_i32 = arith.constant 16 : i32
    %146 = tpu.dynamic_rotate %24 by %c16_i32 dim 1 : vector<8x128xf32>, i32 -> vector<8x128xf32>
    %cst_75 = arith.constant 0.000000e+00 : f32
    %147 = vector.broadcast %cst_75 : f32 to vector<8x128xf32>
    %148 = arith.maximumf %146, %147 : vector<8x128xf32>
    %c14_i32 = arith.constant 14 : i32
    %149 = tpu.dynamic_rotate %24 by %c14_i32 dim 1 : vector<8x128xf32>, i32 -> vector<8x128xf32>
    %cst_76 = arith.constant 0.000000e+00 : f32
    %150 = vector.broadcast %cst_76 : f32 to vector<8x128xf32>
    %151 = arith.maximumf %149, %150 : vector<8x128xf32>
    %c2_i32 = arith.constant 2 : i32
    %152 = tpu.dynamic_rotate %24 by %c2_i32 dim 1 : vector<8x128xf32>, i32 -> vector<8x128xf32>
    %cst_77 = arith.constant 0.000000e+00 : f32
    %153 = vector.broadcast %cst_77 : f32 to vector<8x128xf32>
    %154 = arith.maximumf %152, %153 : vector<8x128xf32>
    %c126_i32 = arith.constant 126 : i32
    %155 = tpu.dynamic_rotate %24 by %c126_i32 dim 1 : vector<8x128xf32>, i32 -> vector<8x128xf32>
    %cst_78 = arith.constant 0.000000e+00 : f32
    %156 = vector.broadcast %cst_78 : f32 to vector<8x128xf32>
    %157 = arith.maximumf %155, %156 : vector<8x128xf32>
    %c114_i32 = arith.constant 114 : i32
    %158 = tpu.dynamic_rotate %24 by %c114_i32 dim 1 : vector<8x128xf32>, i32 -> vector<8x128xf32>
    %cst_79 = arith.constant 0.000000e+00 : f32
    %159 = vector.broadcast %cst_79 : f32 to vector<8x128xf32>
    %160 = arith.maximumf %158, %159 : vector<8x128xf32>
    %c112_i32 = arith.constant 112 : i32
    %161 = tpu.dynamic_rotate %24 by %c112_i32 dim 1 : vector<8x128xf32>, i32 -> vector<8x128xf32>
    %cst_80 = arith.constant 0.000000e+00 : f32
    %162 = vector.broadcast %cst_80 : f32 to vector<8x128xf32>
    %163 = arith.maximumf %161, %162 : vector<8x128xf32>
    %c110_i32 = arith.constant 110 : i32
    %164 = tpu.dynamic_rotate %24 by %c110_i32 dim 1 : vector<8x128xf32>, i32 -> vector<8x128xf32>
    %cst_81 = arith.constant 0.000000e+00 : f32
    %165 = vector.broadcast %cst_81 : f32 to vector<8x128xf32>
    %166 = arith.maximumf %164, %165 : vector<8x128xf32>
    %cst_82 = arith.constant dense<0.000000e+00> : vector<8xf32>
    %167 = vector.multi_reduction <add>, %141, %cst_82 [1] : vector<8x128xf32> to vector<8xf32>
    %168 = vector.shape_cast %167 : vector<8xf32> to vector<8x1xf32>
    %cst_83 = arith.constant 1.280000e+02 : f32
    %169 = vector.broadcast %cst_83 : f32 to vector<8x1xf32>
    %170 = arith.divf %168, %169 : vector<8x1xf32>
    %171 = arith.mulf %141, %141 : vector<8x128xf32>
    %cst_84 = arith.constant dense<0.000000e+00> : vector<8xf32>
    %172 = vector.multi_reduction <add>, %171, %cst_84 [1] : vector<8x128xf32> to vector<8xf32>
    %173 = vector.shape_cast %172 : vector<8xf32> to vector<8x1xf32>
    %cst_85 = arith.constant 1.280000e+02 : f32
    %174 = vector.broadcast %cst_85 : f32 to vector<8x1xf32>
    %175 = arith.divf %173, %174 : vector<8x1xf32>
    %176 = arith.mulf %170, %170 : vector<8x1xf32>
    %177 = arith.subf %175, %176 : vector<8x1xf32>
    %cst_86 = arith.constant 0.000000e+00 : f32
    %178 = vector.broadcast %cst_86 : f32 to vector<8x1xf32>
    %179 = arith.maximumf %177, %178 : vector<8x1xf32>
    %cst_87 = arith.constant 9.99999974E-6 : f32
    %180 = vector.broadcast %cst_87 : f32 to vector<8x1xf32>
    %181 = arith.addf %179, %180 : vector<8x1xf32>
    %182 = math.rsqrt %181 : vector<8x1xf32>
    %183 = vector.broadcast %170 : vector<8x1xf32> to vector<8x128xf32>
    %184 = arith.subf %141, %183 : vector<8x128xf32>
    %185 = vector.broadcast %182 : vector<8x1xf32> to vector<8x128xf32>
    %186 = arith.mulf %184, %185 : vector<8x128xf32>
    %cst_88 = arith.constant dense<0.000000e+00> : vector<8xf32>
    %187 = vector.multi_reduction <add>, %142, %cst_88 [1] : vector<8x128xf32> to vector<8xf32>
    %188 = vector.shape_cast %187 : vector<8xf32> to vector<8x1xf32>
    %cst_89 = arith.constant 1.280000e+02 : f32
    %189 = vector.broadcast %cst_89 : f32 to vector<8x1xf32>
    %190 = arith.divf %188, %189 : vector<8x1xf32>
    %191 = arith.mulf %142, %142 : vector<8x128xf32>
    %cst_90 = arith.constant dense<0.000000e+00> : vector<8xf32>
    %192 = vector.multi_reduction <add>, %191, %cst_90 [1] : vector<8x128xf32> to vector<8xf32>
    %193 = vector.shape_cast %192 : vector<8xf32> to vector<8x1xf32>
    %cst_91 = arith.constant 1.280000e+02 : f32
    %194 = vector.broadcast %cst_91 : f32 to vector<8x1xf32>
    %195 = arith.divf %193, %194 : vector<8x1xf32>
    %196 = arith.mulf %190, %190 : vector<8x1xf32>
    %197 = arith.subf %195, %196 : vector<8x1xf32>
    %cst_92 = arith.constant 0.000000e+00 : f32
    %198 = vector.broadcast %cst_92 : f32 to vector<8x1xf32>
    %199 = arith.maximumf %197, %198 : vector<8x1xf32>
    %cst_93 = arith.constant 9.99999974E-6 : f32
    %200 = vector.broadcast %cst_93 : f32 to vector<8x1xf32>
    %201 = arith.addf %199, %200 : vector<8x1xf32>
    %202 = math.rsqrt %201 : vector<8x1xf32>
    %203 = vector.broadcast %190 : vector<8x1xf32> to vector<8x128xf32>
    %204 = arith.subf %142, %203 : vector<8x128xf32>
    %205 = vector.broadcast %202 : vector<8x1xf32> to vector<8x128xf32>
    %206 = arith.mulf %204, %205 : vector<8x128xf32>
    %c0_94 = arith.constant 0 : index
    %c0_95 = arith.constant 0 : index
    %c0_96 = arith.constant 0 : index
    %207 = vector.load %arg5[%c0_94, %c0_95, %c0_96] : memref<135x8x128xf32, #tpu.memory_space<vmem>>, vector<1x8x128xf32>
    %208 = vector.shape_cast %207 : vector<1x8x128xf32> to vector<8x128xf32>
    %209 = arith.mulf %57, %208 : vector<8x128xf32>
    %c18 = arith.constant 18 : index
    %c0_97 = arith.constant 0 : index
    %c0_98 = arith.constant 0 : index
    %210 = vector.load %arg5[%c18, %c0_97, %c0_98] : memref<135x8x128xf32, #tpu.memory_space<vmem>>, vector<1x8x128xf32>
    %211 = vector.shape_cast %210 : vector<1x8x128xf32> to vector<8x128xf32>
    %212 = arith.mulf %145, %211 : vector<8x128xf32>
    %c1_99 = arith.constant 1 : index
    %c0_100 = arith.constant 0 : index
    %c0_101 = arith.constant 0 : index
    %213 = vector.load %arg5[%c1_99, %c0_100, %c0_101] : memref<135x8x128xf32, #tpu.memory_space<vmem>>, vector<1x8x128xf32>
    %214 = vector.shape_cast %213 : vector<1x8x128xf32> to vector<8x128xf32>
    %215 = arith.mulf %66, %214 : vector<8x128xf32>
    %216 = arith.addf %209, %215 : vector<8x128xf32>
    %c19 = arith.constant 19 : index
    %c0_102 = arith.constant 0 : index
    %c0_103 = arith.constant 0 : index
    %217 = vector.load %arg5[%c19, %c0_102, %c0_103] : memref<135x8x128xf32, #tpu.memory_space<vmem>>, vector<1x8x128xf32>
    %218 = vector.shape_cast %217 : vector<1x8x128xf32> to vector<8x128xf32>
    %219 = arith.mulf %148, %218 : vector<8x128xf32>
    %220 = arith.addf %212, %219 : vector<8x128xf32>
    %c2_104 = arith.constant 2 : index
    %c0_105 = arith.constant 0 : index
    %c0_106 = arith.constant 0 : index
    %221 = vector.load %arg5[%c2_104, %c0_105, %c0_106] : memref<135x8x128xf32, #tpu.memory_space<vmem>>, vector<1x8x128xf32>
    %222 = vector.shape_cast %221 : vector<1x8x128xf32> to vector<8x128xf32>
    %223 = arith.mulf %77, %222 : vector<8x128xf32>
    %224 = arith.addf %216, %223 : vector<8x128xf32>
    %c20 = arith.constant 20 : index
    %c0_107 = arith.constant 0 : index
    %c0_108 = arith.constant 0 : index
    %225 = vector.load %arg5[%c20, %c0_107, %c0_108] : memref<135x8x128xf32, #tpu.memory_space<vmem>>, vector<1x8x128xf32>
    %226 = vector.shape_cast %225 : vector<1x8x128xf32> to vector<8x128xf32>
    %227 = arith.mulf %151, %226 : vector<8x128xf32>
    %228 = arith.addf %220, %227 : vector<8x128xf32>
    %c3_109 = arith.constant 3 : index
    %c0_110 = arith.constant 0 : index
    %c0_111 = arith.constant 0 : index
    %229 = vector.load %arg5[%c3_109, %c0_110, %c0_111] : memref<135x8x128xf32, #tpu.memory_space<vmem>>, vector<1x8x128xf32>
    %230 = vector.shape_cast %229 : vector<1x8x128xf32> to vector<8x128xf32>
    %231 = arith.mulf %88, %230 : vector<8x128xf32>
    %232 = arith.addf %224, %231 : vector<8x128xf32>
    %c21 = arith.constant 21 : index
    %c0_112 = arith.constant 0 : index
    %c0_113 = arith.constant 0 : index
    %233 = vector.load %arg5[%c21, %c0_112, %c0_113] : memref<135x8x128xf32, #tpu.memory_space<vmem>>, vector<1x8x128xf32>
    %234 = vector.shape_cast %233 : vector<1x8x128xf32> to vector<8x128xf32>
    %235 = arith.mulf %154, %234 : vector<8x128xf32>
    %236 = arith.addf %228, %235 : vector<8x128xf32>
    %c4_114 = arith.constant 4 : index
    %c0_115 = arith.constant 0 : index
    %c0_116 = arith.constant 0 : index
    %237 = vector.load %arg5[%c4_114, %c0_115, %c0_116] : memref<135x8x128xf32, #tpu.memory_space<vmem>>, vector<1x8x128xf32>
    %238 = vector.shape_cast %237 : vector<1x8x128xf32> to vector<8x128xf32>
    %239 = arith.mulf %51, %238 : vector<8x128xf32>
    %240 = arith.addf %232, %239 : vector<8x128xf32>
    %c22 = arith.constant 22 : index
    %c0_117 = arith.constant 0 : index
    %c0_118 = arith.constant 0 : index
    %241 = vector.load %arg5[%c22, %c0_117, %c0_118] : memref<135x8x128xf32, #tpu.memory_space<vmem>>, vector<1x8x128xf32>
    %242 = vector.shape_cast %241 : vector<1x8x128xf32> to vector<8x128xf32>
    %243 = arith.mulf %51, %242 : vector<8x128xf32>
    %244 = arith.addf %236, %243 : vector<8x128xf32>
    %c5_119 = arith.constant 5 : index
    %c0_120 = arith.constant 0 : index
    %c0_121 = arith.constant 0 : index
    %245 = vector.load %arg5[%c5_119, %c0_120, %c0_121] : memref<135x8x128xf32, #tpu.memory_space<vmem>>, vector<1x8x128xf32>
    %246 = vector.shape_cast %245 : vector<1x8x128xf32> to vector<8x128xf32>
    %247 = arith.mulf %104, %246 : vector<8x128xf32>
    %248 = arith.addf %240, %247 : vector<8x128xf32>
    %c23 = arith.constant 23 : index
    %c0_122 = arith.constant 0 : index
    %c0_123 = arith.constant 0 : index
    %249 = vector.load %arg5[%c23, %c0_122, %c0_123] : memref<135x8x128xf32, #tpu.memory_space<vmem>>, vector<1x8x128xf32>
    %250 = vector.shape_cast %249 : vector<1x8x128xf32> to vector<8x128xf32>
    %251 = arith.mulf %157, %250 : vector<8x128xf32>
    %252 = arith.addf %244, %251 : vector<8x128xf32>
    %c6_124 = arith.constant 6 : index
    %c0_125 = arith.constant 0 : index
    %c0_126 = arith.constant 0 : index
    %253 = vector.load %arg5[%c6_124, %c0_125, %c0_126] : memref<135x8x128xf32, #tpu.memory_space<vmem>>, vector<1x8x128xf32>
    %254 = vector.shape_cast %253 : vector<1x8x128xf32> to vector<8x128xf32>
    %255 = arith.mulf %115, %254 : vector<8x128xf32>
    %256 = arith.addf %248, %255 : vector<8x128xf32>
    %c24 = arith.constant 24 : index
    %c0_127 = arith.constant 0 : index
    %c0_128 = arith.constant 0 : index
    %257 = vector.load %arg5[%c24, %c0_127, %c0_128] : memref<135x8x128xf32, #tpu.memory_space<vmem>>, vector<1x8x128xf32>
    %258 = vector.shape_cast %257 : vector<1x8x128xf32> to vector<8x128xf32>
    %259 = arith.mulf %160, %258 : vector<8x128xf32>
    %260 = arith.addf %252, %259 : vector<8x128xf32>
    %c7_129 = arith.constant 7 : index
    %c0_130 = arith.constant 0 : index
    %c0_131 = arith.constant 0 : index
    %261 = vector.load %arg5[%c7_129, %c0_130, %c0_131] : memref<135x8x128xf32, #tpu.memory_space<vmem>>, vector<1x8x128xf32>
    %262 = vector.shape_cast %261 : vector<1x8x128xf32> to vector<8x128xf32>
    %263 = arith.mulf %126, %262 : vector<8x128xf32>
    %264 = arith.addf %256, %263 : vector<8x128xf32>
    %c25 = arith.constant 25 : index
    %c0_132 = arith.constant 0 : index
    %c0_133 = arith.constant 0 : index
    %265 = vector.load %arg5[%c25, %c0_132, %c0_133] : memref<135x8x128xf32, #tpu.memory_space<vmem>>, vector<1x8x128xf32>
    %266 = vector.shape_cast %265 : vector<1x8x128xf32> to vector<8x128xf32>
    %267 = arith.mulf %163, %266 : vector<8x128xf32>
    %268 = arith.addf %260, %267 : vector<8x128xf32>
    %c8_134 = arith.constant 8 : index
    %c0_135 = arith.constant 0 : index
    %c0_136 = arith.constant 0 : index
    %269 = vector.load %arg5[%c8_134, %c0_135, %c0_136] : memref<135x8x128xf32, #tpu.memory_space<vmem>>, vector<1x8x128xf32>
    %270 = vector.shape_cast %269 : vector<1x8x128xf32> to vector<8x128xf32>
    %271 = arith.mulf %137, %270 : vector<8x128xf32>
    %272 = arith.addf %264, %271 : vector<8x128xf32>
    %c26 = arith.constant 26 : index
    %c0_137 = arith.constant 0 : index
    %c0_138 = arith.constant 0 : index
    %273 = vector.load %arg5[%c26, %c0_137, %c0_138] : memref<135x8x128xf32, #tpu.memory_space<vmem>>, vector<1x8x128xf32>
    %274 = vector.shape_cast %273 : vector<1x8x128xf32> to vector<8x128xf32>
    %275 = arith.mulf %166, %274 : vector<8x128xf32>
    %276 = arith.addf %268, %275 : vector<8x128xf32>
    %c0_139 = arith.constant 0 : index
    %c0_140 = arith.constant 0 : index
    %c0_141 = arith.constant 0 : index
    %277 = vector.load %arg6[%c0_139, %c0_140, %c0_141] : memref<5x16x16xf32, #tpu.memory_space<vmem>>, vector<1x16x16xf32>
    %278 = vector.shape_cast %277 : vector<1x16x16xf32> to vector<16x16xf32>
    %279 = tpu.concatenate %272, %276 in 0 : vector<8x128xf32>, vector<8x128xf32> -> vector<16x128xf32>
    %cst_142 = arith.constant dense<0.000000e+00> : vector<16x128xf32>
    %280 = tpu.matmul %278, %279, %cst_142 {dimension_numbers = #tpu.dot_dimension_numbers<[1], [0], [0], [1], [0, 0, 1, 1], [], []>} : vector<16x16xf32>, vector<16x128xf32>, vector<16x128xf32> -> vector<16x128xf32>
    %281 = vector.extract_strided_slice %280 {offsets = [0, 0], sizes = [8, 128], strides = [1, 1]} : vector<16x128xf32> to vector<8x128xf32>
    %cst_143 = arith.constant dense<0.000000e+00> : vector<8xf32>
    %282 = vector.multi_reduction <add>, %281, %cst_143 [1] : vector<8x128xf32> to vector<8xf32>
    %283 = vector.shape_cast %282 : vector<8xf32> to vector<8x1xf32>
    %cst_144 = arith.constant 1.280000e+02 : f32
    %284 = vector.broadcast %cst_144 : f32 to vector<8x1xf32>
    %285 = arith.divf %283, %284 : vector<8x1xf32>
    %286 = arith.mulf %281, %281 : vector<8x128xf32>
    %cst_145 = arith.constant dense<0.000000e+00> : vector<8xf32>
    %287 = vector.multi_reduction <add>, %286, %cst_145 [1] : vector<8x128xf32> to vector<8xf32>
    %288 = vector.shape_cast %287 : vector<8xf32> to vector<8x1xf32>
    %cst_146 = arith.constant 1.280000e+02 : f32
    %289 = vector.broadcast %cst_146 : f32 to vector<8x1xf32>
    %290 = arith.divf %288, %289 : vector<8x1xf32>
    %291 = arith.mulf %285, %285 : vector<8x1xf32>
    %292 = arith.subf %290, %291 : vector<8x1xf32>
    %cst_147 = arith.constant 0.000000e+00 : f32
    %293 = vector.broadcast %cst_147 : f32 to vector<8x1xf32>
    %294 = arith.maximumf %292, %293 : vector<8x1xf32>
    %cst_148 = arith.constant 9.99999974E-6 : f32
    %295 = vector.broadcast %cst_148 : f32 to vector<8x1xf32>
    %296 = arith.addf %294, %295 : vector<8x1xf32>
    %297 = math.rsqrt %296 : vector<8x1xf32>
    %298 = vector.broadcast %285 : vector<8x1xf32> to vector<8x128xf32>
    %299 = arith.subf %281, %298 : vector<8x128xf32>
    %300 = vector.broadcast %297 : vector<8x1xf32> to vector<8x128xf32>
    %301 = arith.mulf %299, %300 : vector<8x128xf32>
    %302 = vector.extract_strided_slice %280 {offsets = [8, 0], sizes = [8, 128], strides = [1, 1]} : vector<16x128xf32> to vector<8x128xf32>
    %c0_149 = arith.constant 0 : index
    %c5_150 = arith.constant 5 : index
    %303 = memref.load %arg0[%c0_149, %c5_150] : memref<5x6xf32, #tpu.memory_space<smem>>
    %cst_151 = arith.constant dense<0.000000e+00> : vector<8xf32>
    %304 = vector.multi_reduction <add>, %302, %cst_151 [1] : vector<8x128xf32> to vector<8xf32>
    %305 = vector.shape_cast %304 : vector<8xf32> to vector<8x1xf32>
    %cst_152 = arith.constant 1.280000e+02 : f32
    %306 = vector.broadcast %cst_152 : f32 to vector<8x1xf32>
    %307 = arith.divf %305, %306 : vector<8x1xf32>
    %308 = arith.mulf %302, %302 : vector<8x128xf32>
    %cst_153 = arith.constant dense<0.000000e+00> : vector<8xf32>
    %309 = vector.multi_reduction <add>, %308, %cst_153 [1] : vector<8x128xf32> to vector<8xf32>
    %310 = vector.shape_cast %309 : vector<8xf32> to vector<8x1xf32>
    %cst_154 = arith.constant 1.280000e+02 : f32
    %311 = vector.broadcast %cst_154 : f32 to vector<8x1xf32>
    %312 = arith.divf %310, %311 : vector<8x1xf32>
    %313 = arith.mulf %307, %307 : vector<8x1xf32>
    %314 = arith.subf %312, %313 : vector<8x1xf32>
    %cst_155 = arith.constant 0.000000e+00 : f32
    %315 = vector.broadcast %cst_155 : f32 to vector<8x1xf32>
    %316 = arith.maximumf %314, %315 : vector<8x1xf32>
    %cst_156 = arith.constant 9.99999974E-6 : f32
    %317 = vector.broadcast %cst_156 : f32 to vector<8x1xf32>
    %318 = arith.addf %316, %317 : vector<8x1xf32>
    %319 = math.rsqrt %318 : vector<8x1xf32>
    %320 = vector.broadcast %303 : f32 to vector<8x1xf32>
    %321 = arith.mulf %319, %320 : vector<8x1xf32>
    %322 = vector.broadcast %307 : vector<8x1xf32> to vector<8x128xf32>
    %323 = arith.subf %302, %322 : vector<8x128xf32>
    %324 = vector.broadcast %321 : vector<8x1xf32> to vector<8x128xf32>
    %325 = arith.mulf %323, %324 : vector<8x128xf32>
    %cst_157 = arith.constant 0.000000e+00 : f32
    %326 = vector.broadcast %cst_157 : f32 to vector<8x128xf32>
    %327 = arith.maximumf %301, %326 : vector<8x128xf32>
    %c9_i32_158 = arith.constant 9 : i32
    %328 = tpu.dynamic_rotate %327 by %c9_i32_158 dim 1 : vector<8x128xf32>, i32 -> vector<8x128xf32>
    %c9 = arith.constant 9 : index
    %c0_159 = arith.constant 0 : index
    %c0_160 = arith.constant 0 : index
    %329 = vector.load %arg5[%c9, %c0_159, %c0_160] : memref<135x8x128xf32, #tpu.memory_space<vmem>>, vector<1x8x128xf32>
    %330 = vector.shape_cast %329 : vector<1x8x128xf32> to vector<8x128xf32>
    %331 = arith.mulf %328, %330 : vector<8x128xf32>
    %c8_i32_161 = arith.constant 8 : i32
    %332 = tpu.dynamic_rotate %327 by %c8_i32_161 dim 1 : vector<8x128xf32>, i32 -> vector<8x128xf32>
    %c10 = arith.constant 10 : index
    %c0_162 = arith.constant 0 : index
    %c0_163 = arith.constant 0 : index
    %333 = vector.load %arg5[%c10, %c0_162, %c0_163] : memref<135x8x128xf32, #tpu.memory_space<vmem>>, vector<1x8x128xf32>
    %334 = vector.shape_cast %333 : vector<1x8x128xf32> to vector<8x128xf32>
    %335 = arith.mulf %332, %334 : vector<8x128xf32>
    %336 = arith.addf %331, %335 : vector<8x128xf32>
    %c7_i32_164 = arith.constant 7 : i32
    %337 = tpu.dynamic_rotate %327 by %c7_i32_164 dim 1 : vector<8x128xf32>, i32 -> vector<8x128xf32>
    %c11 = arith.constant 11 : index
    %c0_165 = arith.constant 0 : index
    %c0_166 = arith.constant 0 : index
    %338 = vector.load %arg5[%c11, %c0_165, %c0_166] : memref<135x8x128xf32, #tpu.memory_space<vmem>>, vector<1x8x128xf32>
    %339 = vector.shape_cast %338 : vector<1x8x128xf32> to vector<8x128xf32>
    %340 = arith.mulf %337, %339 : vector<8x128xf32>
    %341 = arith.addf %336, %340 : vector<8x128xf32>
    %c1_i32_167 = arith.constant 1 : i32
    %342 = tpu.dynamic_rotate %327 by %c1_i32_167 dim 1 : vector<8x128xf32>, i32 -> vector<8x128xf32>
    %c12 = arith.constant 12 : index
    %c0_168 = arith.constant 0 : index
    %c0_169 = arith.constant 0 : index
    %343 = vector.load %arg5[%c12, %c0_168, %c0_169] : memref<135x8x128xf32, #tpu.memory_space<vmem>>, vector<1x8x128xf32>
    %344 = vector.shape_cast %343 : vector<1x8x128xf32> to vector<8x128xf32>
    %345 = arith.mulf %342, %344 : vector<8x128xf32>
    %346 = arith.addf %341, %345 : vector<8x128xf32>
    %c13 = arith.constant 13 : index
    %c0_170 = arith.constant 0 : index
    %c0_171 = arith.constant 0 : index
    %347 = vector.load %arg5[%c13, %c0_170, %c0_171] : memref<135x8x128xf32, #tpu.memory_space<vmem>>, vector<1x8x128xf32>
    %348 = vector.shape_cast %347 : vector<1x8x128xf32> to vector<8x128xf32>
    %349 = arith.mulf %327, %348 : vector<8x128xf32>
    %350 = arith.addf %346, %349 : vector<8x128xf32>
    %c127_i32_172 = arith.constant 127 : i32
    %351 = tpu.dynamic_rotate %327 by %c127_i32_172 dim 1 : vector<8x128xf32>, i32 -> vector<8x128xf32>
    %c14 = arith.constant 14 : index
    %c0_173 = arith.constant 0 : index
    %c0_174 = arith.constant 0 : index
    %352 = vector.load %arg5[%c14, %c0_173, %c0_174] : memref<135x8x128xf32, #tpu.memory_space<vmem>>, vector<1x8x128xf32>
    %353 = vector.shape_cast %352 : vector<1x8x128xf32> to vector<8x128xf32>
    %354 = arith.mulf %351, %353 : vector<8x128xf32>
    %355 = arith.addf %350, %354 : vector<8x128xf32>
    %c121_i32_175 = arith.constant 121 : i32
    %356 = tpu.dynamic_rotate %327 by %c121_i32_175 dim 1 : vector<8x128xf32>, i32 -> vector<8x128xf32>
    %c15 = arith.constant 15 : index
    %c0_176 = arith.constant 0 : index
    %c0_177 = arith.constant 0 : index
    %357 = vector.load %arg5[%c15, %c0_176, %c0_177] : memref<135x8x128xf32, #tpu.memory_space<vmem>>, vector<1x8x128xf32>
    %358 = vector.shape_cast %357 : vector<1x8x128xf32> to vector<8x128xf32>
    %359 = arith.mulf %356, %358 : vector<8x128xf32>
    %360 = arith.addf %355, %359 : vector<8x128xf32>
    %c120_i32_178 = arith.constant 120 : i32
    %361 = tpu.dynamic_rotate %327 by %c120_i32_178 dim 1 : vector<8x128xf32>, i32 -> vector<8x128xf32>
    %c16 = arith.constant 16 : index
    %c0_179 = arith.constant 0 : index
    %c0_180 = arith.constant 0 : index
    %362 = vector.load %arg5[%c16, %c0_179, %c0_180] : memref<135x8x128xf32, #tpu.memory_space<vmem>>, vector<1x8x128xf32>
    %363 = vector.shape_cast %362 : vector<1x8x128xf32> to vector<8x128xf32>
    %364 = arith.mulf %361, %363 : vector<8x128xf32>
    %365 = arith.addf %360, %364 : vector<8x128xf32>
    %c119_i32_181 = arith.constant 119 : i32
    %366 = tpu.dynamic_rotate %327 by %c119_i32_181 dim 1 : vector<8x128xf32>, i32 -> vector<8x128xf32>
    %c17 = arith.constant 17 : index
    %c0_182 = arith.constant 0 : index
    %c0_183 = arith.constant 0 : index
    %367 = vector.load %arg5[%c17, %c0_182, %c0_183] : memref<135x8x128xf32, #tpu.memory_space<vmem>>, vector<1x8x128xf32>
    %368 = vector.shape_cast %367 : vector<1x8x128xf32> to vector<8x128xf32>
    %369 = arith.mulf %366, %368 : vector<8x128xf32>
    %370 = arith.addf %365, %369 : vector<8x128xf32>
    %c0_184 = arith.constant 0 : index
    %c0_185 = arith.constant 0 : index
    %c0_186 = arith.constant 0 : index
    %371 = vector.load %arg7[%c0_184, %c0_185, %c0_186] : memref<5x8x8xf32, #tpu.memory_space<vmem>>, vector<1x8x8xf32>
    %372 = vector.shape_cast %371 : vector<1x8x8xf32> to vector<8x8xf32>
    %c0_187 = arith.constant 0 : index
    %c4_188 = arith.constant 4 : index
    %373 = memref.load %arg0[%c0_187, %c4_188] : memref<5x6xf32, #tpu.memory_space<smem>>
    %cst_189 = arith.constant dense<0.000000e+00> : vector<8x128xf32>
    %374 = tpu.matmul %372, %370, %cst_189 {dimension_numbers = #tpu.dot_dimension_numbers<[1], [0], [0], [1], [0, 0, 1, 1], [], []>} : vector<8x8xf32>, vector<8x128xf32>, vector<8x128xf32> -> vector<8x128xf32>
    %cst_190 = arith.constant dense<0.000000e+00> : vector<8xf32>
    %375 = vector.multi_reduction <add>, %374, %cst_190 [1] : vector<8x128xf32> to vector<8xf32>
    %376 = vector.shape_cast %375 : vector<8xf32> to vector<8x1xf32>
    %cst_191 = arith.constant 1.280000e+02 : f32
    %377 = vector.broadcast %cst_191 : f32 to vector<8x1xf32>
    %378 = arith.divf %376, %377 : vector<8x1xf32>
    %379 = arith.mulf %374, %374 : vector<8x128xf32>
    %cst_192 = arith.constant dense<0.000000e+00> : vector<8xf32>
    %380 = vector.multi_reduction <add>, %379, %cst_192 [1] : vector<8x128xf32> to vector<8xf32>
    %381 = vector.shape_cast %380 : vector<8xf32> to vector<8x1xf32>
    %cst_193 = arith.constant 1.280000e+02 : f32
    %382 = vector.broadcast %cst_193 : f32 to vector<8x1xf32>
    %383 = arith.divf %381, %382 : vector<8x1xf32>
    %384 = arith.mulf %378, %378 : vector<8x1xf32>
    %385 = arith.subf %383, %384 : vector<8x1xf32>
    %cst_194 = arith.constant 0.000000e+00 : f32
    %386 = vector.broadcast %cst_194 : f32 to vector<8x1xf32>
    %387 = arith.maximumf %385, %386 : vector<8x1xf32>
    %cst_195 = arith.constant 9.99999974E-6 : f32
    %388 = vector.broadcast %cst_195 : f32 to vector<8x1xf32>
    %389 = arith.addf %387, %388 : vector<8x1xf32>
    %390 = math.rsqrt %389 : vector<8x1xf32>
    %391 = vector.broadcast %373 : f32 to vector<8x1xf32>
    %392 = arith.mulf %390, %391 : vector<8x1xf32>
    %393 = vector.broadcast %378 : vector<8x1xf32> to vector<8x128xf32>
    %394 = arith.subf %374, %393 : vector<8x128xf32>
    %395 = vector.broadcast %392 : vector<8x1xf32> to vector<8x128xf32>
    %396 = arith.mulf %394, %395 : vector<8x128xf32>
    %c0_196 = arith.constant 0 : index
    %c1_197 = arith.constant 1 : index
    %397 = memref.load %arg0[%c0_196, %c1_197] : memref<5x6xf32, #tpu.memory_space<smem>>
    %398 = vector.broadcast %397 : f32 to vector<8x128xf32>
    %399 = arith.mulf %398, %186 : vector<8x128xf32>
    %c0_198 = arith.constant 0 : index
    %c2_199 = arith.constant 2 : index
    %400 = memref.load %arg0[%c0_198, %c2_199] : memref<5x6xf32, #tpu.memory_space<smem>>
    %401 = vector.broadcast %400 : f32 to vector<8x128xf32>
    %402 = arith.mulf %401, %206 : vector<8x128xf32>
    %403 = arith.addf %399, %402 : vector<8x128xf32>
    %c0_200 = arith.constant 0 : index
    %c3_201 = arith.constant 3 : index
    %404 = memref.load %arg0[%c0_200, %c3_201] : memref<5x6xf32, #tpu.memory_space<smem>>
    %405 = vector.broadcast %404 : f32 to vector<8x128xf32>
    %406 = arith.mulf %405, %24 : vector<8x128xf32>
    %407 = arith.addf %403, %406 : vector<8x128xf32>
    %408 = arith.addf %407, %396 : vector<8x128xf32>
    %409 = arith.addf %408, %325 : vector<8x128xf32>
    %c54 = arith.constant 54 : index
    %c0_202 = arith.constant 0 : index
    %c0_203 = arith.constant 0 : index
    %410 = vector.load %arg5[%c54, %c0_202, %c0_203] : memref<135x8x128xf32, #tpu.memory_space<vmem>>, vector<1x8x128xf32>
    %411 = vector.shape_cast %410 : vector<1x8x128xf32> to vector<8x128xf32>
    %412 = arith.mulf %57, %411 : vector<8x128xf32>
    %c72 = arith.constant 72 : index
    %c0_204 = arith.constant 0 : index
    %c0_205 = arith.constant 0 : index
    %413 = vector.load %arg5[%c72, %c0_204, %c0_205] : memref<135x8x128xf32, #tpu.memory_space<vmem>>, vector<1x8x128xf32>
    %414 = vector.shape_cast %413 : vector<1x8x128xf32> to vector<8x128xf32>
    %415 = arith.mulf %145, %414 : vector<8x128xf32>
    %c55 = arith.constant 55 : index
    %c0_206 = arith.constant 0 : index
    %c0_207 = arith.constant 0 : index
    %416 = vector.load %arg5[%c55, %c0_206, %c0_207] : memref<135x8x128xf32, #tpu.memory_space<vmem>>, vector<1x8x128xf32>
    %417 = vector.shape_cast %416 : vector<1x8x128xf32> to vector<8x128xf32>
    %418 = arith.mulf %66, %417 : vector<8x128xf32>
    %419 = arith.addf %412, %418 : vector<8x128xf32>
    %c73 = arith.constant 73 : index
    %c0_208 = arith.constant 0 : index
    %c0_209 = arith.constant 0 : index
    %420 = vector.load %arg5[%c73, %c0_208, %c0_209] : memref<135x8x128xf32, #tpu.memory_space<vmem>>, vector<1x8x128xf32>
    %421 = vector.shape_cast %420 : vector<1x8x128xf32> to vector<8x128xf32>
    %422 = arith.mulf %148, %421 : vector<8x128xf32>
    %423 = arith.addf %415, %422 : vector<8x128xf32>
    %c56 = arith.constant 56 : index
    %c0_210 = arith.constant 0 : index
    %c0_211 = arith.constant 0 : index
    %424 = vector.load %arg5[%c56, %c0_210, %c0_211] : memref<135x8x128xf32, #tpu.memory_space<vmem>>, vector<1x8x128xf32>
    %425 = vector.shape_cast %424 : vector<1x8x128xf32> to vector<8x128xf32>
    %426 = arith.mulf %77, %425 : vector<8x128xf32>
    %427 = arith.addf %419, %426 : vector<8x128xf32>
    %c74 = arith.constant 74 : index
    %c0_212 = arith.constant 0 : index
    %c0_213 = arith.constant 0 : index
    %428 = vector.load %arg5[%c74, %c0_212, %c0_213] : memref<135x8x128xf32, #tpu.memory_space<vmem>>, vector<1x8x128xf32>
    %429 = vector.shape_cast %428 : vector<1x8x128xf32> to vector<8x128xf32>
    %430 = arith.mulf %151, %429 : vector<8x128xf32>
    %431 = arith.addf %423, %430 : vector<8x128xf32>
    %c57 = arith.constant 57 : index
    %c0_214 = arith.constant 0 : index
    %c0_215 = arith.constant 0 : index
    %432 = vector.load %arg5[%c57, %c0_214, %c0_215] : memref<135x8x128xf32, #tpu.memory_space<vmem>>, vector<1x8x128xf32>
    %433 = vector.shape_cast %432 : vector<1x8x128xf32> to vector<8x128xf32>
    %434 = arith.mulf %88, %433 : vector<8x128xf32>
    %435 = arith.addf %427, %434 : vector<8x128xf32>
    %c75 = arith.constant 75 : index
    %c0_216 = arith.constant 0 : index
    %c0_217 = arith.constant 0 : index
    %436 = vector.load %arg5[%c75, %c0_216, %c0_217] : memref<135x8x128xf32, #tpu.memory_space<vmem>>, vector<1x8x128xf32>
    %437 = vector.shape_cast %436 : vector<1x8x128xf32> to vector<8x128xf32>
    %438 = arith.mulf %154, %437 : vector<8x128xf32>
    %439 = arith.addf %431, %438 : vector<8x128xf32>
    %c58 = arith.constant 58 : index
    %c0_218 = arith.constant 0 : index
    %c0_219 = arith.constant 0 : index
    %440 = vector.load %arg5[%c58, %c0_218, %c0_219] : memref<135x8x128xf32, #tpu.memory_space<vmem>>, vector<1x8x128xf32>
    %441 = vector.shape_cast %440 : vector<1x8x128xf32> to vector<8x128xf32>
    %442 = arith.mulf %51, %441 : vector<8x128xf32>
    %443 = arith.addf %435, %442 : vector<8x128xf32>
    %c76 = arith.constant 76 : index
    %c0_220 = arith.constant 0 : index
    %c0_221 = arith.constant 0 : index
    %444 = vector.load %arg5[%c76, %c0_220, %c0_221] : memref<135x8x128xf32, #tpu.memory_space<vmem>>, vector<1x8x128xf32>
    %445 = vector.shape_cast %444 : vector<1x8x128xf32> to vector<8x128xf32>
    %446 = arith.mulf %51, %445 : vector<8x128xf32>
    %447 = arith.addf %439, %446 : vector<8x128xf32>
    %c59 = arith.constant 59 : index
    %c0_222 = arith.constant 0 : index
    %c0_223 = arith.constant 0 : index
    %448 = vector.load %arg5[%c59, %c0_222, %c0_223] : memref<135x8x128xf32, #tpu.memory_space<vmem>>, vector<1x8x128xf32>
    %449 = vector.shape_cast %448 : vector<1x8x128xf32> to vector<8x128xf32>
    %450 = arith.mulf %104, %449 : vector<8x128xf32>
    %451 = arith.addf %443, %450 : vector<8x128xf32>
    %c77 = arith.constant 77 : index
    %c0_224 = arith.constant 0 : index
    %c0_225 = arith.constant 0 : index
    %452 = vector.load %arg5[%c77, %c0_224, %c0_225] : memref<135x8x128xf32, #tpu.memory_space<vmem>>, vector<1x8x128xf32>
    %453 = vector.shape_cast %452 : vector<1x8x128xf32> to vector<8x128xf32>
    %454 = arith.mulf %157, %453 : vector<8x128xf32>
    %455 = arith.addf %447, %454 : vector<8x128xf32>
    %c60 = arith.constant 60 : index
    %c0_226 = arith.constant 0 : index
    %c0_227 = arith.constant 0 : index
    %456 = vector.load %arg5[%c60, %c0_226, %c0_227] : memref<135x8x128xf32, #tpu.memory_space<vmem>>, vector<1x8x128xf32>
    %457 = vector.shape_cast %456 : vector<1x8x128xf32> to vector<8x128xf32>
    %458 = arith.mulf %115, %457 : vector<8x128xf32>
    %459 = arith.addf %451, %458 : vector<8x128xf32>
    %c78 = arith.constant 78 : index
    %c0_228 = arith.constant 0 : index
    %c0_229 = arith.constant 0 : index
    %460 = vector.load %arg5[%c78, %c0_228, %c0_229] : memref<135x8x128xf32, #tpu.memory_space<vmem>>, vector<1x8x128xf32>
    %461 = vector.shape_cast %460 : vector<1x8x128xf32> to vector<8x128xf32>
    %462 = arith.mulf %160, %461 : vector<8x128xf32>
    %463 = arith.addf %455, %462 : vector<8x128xf32>
    %c61 = arith.constant 61 : index
    %c0_230 = arith.constant 0 : index
    %c0_231 = arith.constant 0 : index
    %464 = vector.load %arg5[%c61, %c0_230, %c0_231] : memref<135x8x128xf32, #tpu.memory_space<vmem>>, vector<1x8x128xf32>
    %465 = vector.shape_cast %464 : vector<1x8x128xf32> to vector<8x128xf32>
    %466 = arith.mulf %126, %465 : vector<8x128xf32>
    %467 = arith.addf %459, %466 : vector<8x128xf32>
    %c79 = arith.constant 79 : index
    %c0_232 = arith.constant 0 : index
    %c0_233 = arith.constant 0 : index
    %468 = vector.load %arg5[%c79, %c0_232, %c0_233] : memref<135x8x128xf32, #tpu.memory_space<vmem>>, vector<1x8x128xf32>
    %469 = vector.shape_cast %468 : vector<1x8x128xf32> to vector<8x128xf32>
    %470 = arith.mulf %163, %469 : vector<8x128xf32>
    %471 = arith.addf %463, %470 : vector<8x128xf32>
    %c62 = arith.constant 62 : index
    %c0_234 = arith.constant 0 : index
    %c0_235 = arith.constant 0 : index
    %472 = vector.load %arg5[%c62, %c0_234, %c0_235] : memref<135x8x128xf32, #tpu.memory_space<vmem>>, vector<1x8x128xf32>
    %473 = vector.shape_cast %472 : vector<1x8x128xf32> to vector<8x128xf32>
    %474 = arith.mulf %137, %473 : vector<8x128xf32>
    %475 = arith.addf %467, %474 : vector<8x128xf32>
    %c80 = arith.constant 80 : index
    %c0_236 = arith.constant 0 : index
    %c0_237 = arith.constant 0 : index
    %476 = vector.load %arg5[%c80, %c0_236, %c0_237] : memref<135x8x128xf32, #tpu.memory_space<vmem>>, vector<1x8x128xf32>
    %477 = vector.shape_cast %476 : vector<1x8x128xf32> to vector<8x128xf32>
    %478 = arith.mulf %166, %477 : vector<8x128xf32>
    %479 = arith.addf %471, %478 : vector<8x128xf32>
    %c2_238 = arith.constant 2 : index
    %c0_239 = arith.constant 0 : index
    %c0_240 = arith.constant 0 : index
    %480 = vector.load %arg6[%c2_238, %c0_239, %c0_240] : memref<5x16x16xf32, #tpu.memory_space<vmem>>, vector<1x16x16xf32>
    %481 = vector.shape_cast %480 : vector<1x16x16xf32> to vector<16x16xf32>
    %482 = tpu.concatenate %475, %479 in 0 : vector<8x128xf32>, vector<8x128xf32> -> vector<16x128xf32>
    %cst_241 = arith.constant dense<0.000000e+00> : vector<16x128xf32>
    %483 = tpu.matmul %481, %482, %cst_241 {dimension_numbers = #tpu.dot_dimension_numbers<[1], [0], [0], [1], [0, 0, 1, 1], [], []>} : vector<16x16xf32>, vector<16x128xf32>, vector<16x128xf32> -> vector<16x128xf32>
    %484 = vector.extract_strided_slice %483 {offsets = [0, 0], sizes = [8, 128], strides = [1, 1]} : vector<16x128xf32> to vector<8x128xf32>
    %cst_242 = arith.constant dense<0.000000e+00> : vector<8xf32>
    %485 = vector.multi_reduction <add>, %484, %cst_242 [1] : vector<8x128xf32> to vector<8xf32>
    %486 = vector.shape_cast %485 : vector<8xf32> to vector<8x1xf32>
    %cst_243 = arith.constant 1.280000e+02 : f32
    %487 = vector.broadcast %cst_243 : f32 to vector<8x1xf32>
    %488 = arith.divf %486, %487 : vector<8x1xf32>
    %489 = arith.mulf %484, %484 : vector<8x128xf32>
    %cst_244 = arith.constant dense<0.000000e+00> : vector<8xf32>
    %490 = vector.multi_reduction <add>, %489, %cst_244 [1] : vector<8x128xf32> to vector<8xf32>
    %491 = vector.shape_cast %490 : vector<8xf32> to vector<8x1xf32>
    %cst_245 = arith.constant 1.280000e+02 : f32
    %492 = vector.broadcast %cst_245 : f32 to vector<8x1xf32>
    %493 = arith.divf %491, %492 : vector<8x1xf32>
    %494 = arith.mulf %488, %488 : vector<8x1xf32>
    %495 = arith.subf %493, %494 : vector<8x1xf32>
    %cst_246 = arith.constant 0.000000e+00 : f32
    %496 = vector.broadcast %cst_246 : f32 to vector<8x1xf32>
    %497 = arith.maximumf %495, %496 : vector<8x1xf32>
    %cst_247 = arith.constant 9.99999974E-6 : f32
    %498 = vector.broadcast %cst_247 : f32 to vector<8x1xf32>
    %499 = arith.addf %497, %498 : vector<8x1xf32>
    %500 = math.rsqrt %499 : vector<8x1xf32>
    %501 = vector.broadcast %488 : vector<8x1xf32> to vector<8x128xf32>
    %502 = arith.subf %484, %501 : vector<8x128xf32>
    %503 = vector.broadcast %500 : vector<8x1xf32> to vector<8x128xf32>
    %504 = arith.mulf %502, %503 : vector<8x128xf32>
    %505 = vector.extract_strided_slice %483 {offsets = [8, 0], sizes = [8, 128], strides = [1, 1]} : vector<16x128xf32> to vector<8x128xf32>
    %c2_248 = arith.constant 2 : index
    %c5_249 = arith.constant 5 : index
    %506 = memref.load %arg0[%c2_248, %c5_249] : memref<5x6xf32, #tpu.memory_space<smem>>
    %cst_250 = arith.constant dense<0.000000e+00> : vector<8xf32>
    %507 = vector.multi_reduction <add>, %505, %cst_250 [1] : vector<8x128xf32> to vector<8xf32>
    %508 = vector.shape_cast %507 : vector<8xf32> to vector<8x1xf32>
    %cst_251 = arith.constant 1.280000e+02 : f32
    %509 = vector.broadcast %cst_251 : f32 to vector<8x1xf32>
    %510 = arith.divf %508, %509 : vector<8x1xf32>
    %511 = arith.mulf %505, %505 : vector<8x128xf32>
    %cst_252 = arith.constant dense<0.000000e+00> : vector<8xf32>
    %512 = vector.multi_reduction <add>, %511, %cst_252 [1] : vector<8x128xf32> to vector<8xf32>
    %513 = vector.shape_cast %512 : vector<8xf32> to vector<8x1xf32>
    %cst_253 = arith.constant 1.280000e+02 : f32
    %514 = vector.broadcast %cst_253 : f32 to vector<8x1xf32>
    %515 = arith.divf %513, %514 : vector<8x1xf32>
    %516 = arith.mulf %510, %510 : vector<8x1xf32>
    %517 = arith.subf %515, %516 : vector<8x1xf32>
    %cst_254 = arith.constant 0.000000e+00 : f32
    %518 = vector.broadcast %cst_254 : f32 to vector<8x1xf32>
    %519 = arith.maximumf %517, %518 : vector<8x1xf32>
    %cst_255 = arith.constant 9.99999974E-6 : f32
    %520 = vector.broadcast %cst_255 : f32 to vector<8x1xf32>
    %521 = arith.addf %519, %520 : vector<8x1xf32>
    %522 = math.rsqrt %521 : vector<8x1xf32>
    %523 = vector.broadcast %506 : f32 to vector<8x1xf32>
    %524 = arith.mulf %522, %523 : vector<8x1xf32>
    %525 = vector.broadcast %510 : vector<8x1xf32> to vector<8x128xf32>
    %526 = arith.subf %505, %525 : vector<8x128xf32>
    %527 = vector.broadcast %524 : vector<8x1xf32> to vector<8x128xf32>
    %528 = arith.mulf %526, %527 : vector<8x128xf32>
    %cst_256 = arith.constant 0.000000e+00 : f32
    %529 = vector.broadcast %cst_256 : f32 to vector<8x128xf32>
    %530 = arith.maximumf %504, %529 : vector<8x128xf32>
    %c9_i32_257 = arith.constant 9 : i32
    %531 = tpu.dynamic_rotate %530 by %c9_i32_257 dim 1 : vector<8x128xf32>, i32 -> vector<8x128xf32>
    %c63 = arith.constant 63 : index
    %c0_258 = arith.constant 0 : index
    %c0_259 = arith.constant 0 : index
    %532 = vector.load %arg5[%c63, %c0_258, %c0_259] : memref<135x8x128xf32, #tpu.memory_space<vmem>>, vector<1x8x128xf32>
    %533 = vector.shape_cast %532 : vector<1x8x128xf32> to vector<8x128xf32>
    %534 = arith.mulf %531, %533 : vector<8x128xf32>
    %c8_i32_260 = arith.constant 8 : i32
    %535 = tpu.dynamic_rotate %530 by %c8_i32_260 dim 1 : vector<8x128xf32>, i32 -> vector<8x128xf32>
    %c64 = arith.constant 64 : index
    %c0_261 = arith.constant 0 : index
    %c0_262 = arith.constant 0 : index
    %536 = vector.load %arg5[%c64, %c0_261, %c0_262] : memref<135x8x128xf32, #tpu.memory_space<vmem>>, vector<1x8x128xf32>
    %537 = vector.shape_cast %536 : vector<1x8x128xf32> to vector<8x128xf32>
    %538 = arith.mulf %535, %537 : vector<8x128xf32>
    %539 = arith.addf %534, %538 : vector<8x128xf32>
    %c7_i32_263 = arith.constant 7 : i32
    %540 = tpu.dynamic_rotate %530 by %c7_i32_263 dim 1 : vector<8x128xf32>, i32 -> vector<8x128xf32>
    %c65 = arith.constant 65 : index
    %c0_264 = arith.constant 0 : index
    %c0_265 = arith.constant 0 : index
    %541 = vector.load %arg5[%c65, %c0_264, %c0_265] : memref<135x8x128xf32, #tpu.memory_space<vmem>>, vector<1x8x128xf32>
    %542 = vector.shape_cast %541 : vector<1x8x128xf32> to vector<8x128xf32>
    %543 = arith.mulf %540, %542 : vector<8x128xf32>
    %544 = arith.addf %539, %543 : vector<8x128xf32>
    %c1_i32_266 = arith.constant 1 : i32
    %545 = tpu.dynamic_rotate %530 by %c1_i32_266 dim 1 : vector<8x128xf32>, i32 -> vector<8x128xf32>
    %c66 = arith.constant 66 : index
    %c0_267 = arith.constant 0 : index
    %c0_268 = arith.constant 0 : index
    %546 = vector.load %arg5[%c66, %c0_267, %c0_268] : memref<135x8x128xf32, #tpu.memory_space<vmem>>, vector<1x8x128xf32>
    %547 = vector.shape_cast %546 : vector<1x8x128xf32> to vector<8x128xf32>
    %548 = arith.mulf %545, %547 : vector<8x128xf32>
    %549 = arith.addf %544, %548 : vector<8x128xf32>
    %c67 = arith.constant 67 : index
    %c0_269 = arith.constant 0 : index
    %c0_270 = arith.constant 0 : index
    %550 = vector.load %arg5[%c67, %c0_269, %c0_270] : memref<135x8x128xf32, #tpu.memory_space<vmem>>, vector<1x8x128xf32>
    %551 = vector.shape_cast %550 : vector<1x8x128xf32> to vector<8x128xf32>
    %552 = arith.mulf %530, %551 : vector<8x128xf32>
    %553 = arith.addf %549, %552 : vector<8x128xf32>
    %c127_i32_271 = arith.constant 127 : i32
    %554 = tpu.dynamic_rotate %530 by %c127_i32_271 dim 1 : vector<8x128xf32>, i32 -> vector<8x128xf32>
    %c68 = arith.constant 68 : index
    %c0_272 = arith.constant 0 : index
    %c0_273 = arith.constant 0 : index
    %555 = vector.load %arg5[%c68, %c0_272, %c0_273] : memref<135x8x128xf32, #tpu.memory_space<vmem>>, vector<1x8x128xf32>
    %556 = vector.shape_cast %555 : vector<1x8x128xf32> to vector<8x128xf32>
    %557 = arith.mulf %554, %556 : vector<8x128xf32>
    %558 = arith.addf %553, %557 : vector<8x128xf32>
    %c121_i32_274 = arith.constant 121 : i32
    %559 = tpu.dynamic_rotate %530 by %c121_i32_274 dim 1 : vector<8x128xf32>, i32 -> vector<8x128xf32>
    %c69 = arith.constant 69 : index
    %c0_275 = arith.constant 0 : index
    %c0_276 = arith.constant 0 : index
    %560 = vector.load %arg5[%c69, %c0_275, %c0_276] : memref<135x8x128xf32, #tpu.memory_space<vmem>>, vector<1x8x128xf32>
    %561 = vector.shape_cast %560 : vector<1x8x128xf32> to vector<8x128xf32>
    %562 = arith.mulf %559, %561 : vector<8x128xf32>
    %563 = arith.addf %558, %562 : vector<8x128xf32>
    %c120_i32_277 = arith.constant 120 : i32
    %564 = tpu.dynamic_rotate %530 by %c120_i32_277 dim 1 : vector<8x128xf32>, i32 -> vector<8x128xf32>
    %c70 = arith.constant 70 : index
    %c0_278 = arith.constant 0 : index
    %c0_279 = arith.constant 0 : index
    %565 = vector.load %arg5[%c70, %c0_278, %c0_279] : memref<135x8x128xf32, #tpu.memory_space<vmem>>, vector<1x8x128xf32>
    %566 = vector.shape_cast %565 : vector<1x8x128xf32> to vector<8x128xf32>
    %567 = arith.mulf %564, %566 : vector<8x128xf32>
    %568 = arith.addf %563, %567 : vector<8x128xf32>
    %c119_i32_280 = arith.constant 119 : i32
    %569 = tpu.dynamic_rotate %530 by %c119_i32_280 dim 1 : vector<8x128xf32>, i32 -> vector<8x128xf32>
    %c71 = arith.constant 71 : index
    %c0_281 = arith.constant 0 : index
    %c0_282 = arith.constant 0 : index
    %570 = vector.load %arg5[%c71, %c0_281, %c0_282] : memref<135x8x128xf32, #tpu.memory_space<vmem>>, vector<1x8x128xf32>
    %571 = vector.shape_cast %570 : vector<1x8x128xf32> to vector<8x128xf32>
    %572 = arith.mulf %569, %571 : vector<8x128xf32>
    %573 = arith.addf %568, %572 : vector<8x128xf32>
    %c2_283 = arith.constant 2 : index
    %c0_284 = arith.constant 0 : index
    %c0_285 = arith.constant 0 : index
    %574 = vector.load %arg7[%c2_283, %c0_284, %c0_285] : memref<5x8x8xf32, #tpu.memory_space<vmem>>, vector<1x8x8xf32>
    %575 = vector.shape_cast %574 : vector<1x8x8xf32> to vector<8x8xf32>
    %c2_286 = arith.constant 2 : index
    %c4_287 = arith.constant 4 : index
    %576 = memref.load %arg0[%c2_286, %c4_287] : memref<5x6xf32, #tpu.memory_space<smem>>
    %cst_288 = arith.constant dense<0.000000e+00> : vector<8x128xf32>
    %577 = tpu.matmul %575, %573, %cst_288 {dimension_numbers = #tpu.dot_dimension_numbers<[1], [0], [0], [1], [0, 0, 1, 1], [], []>} : vector<8x8xf32>, vector<8x128xf32>, vector<8x128xf32> -> vector<8x128xf32>
    %cst_289 = arith.constant dense<0.000000e+00> : vector<8xf32>
    %578 = vector.multi_reduction <add>, %577, %cst_289 [1] : vector<8x128xf32> to vector<8xf32>
    %579 = vector.shape_cast %578 : vector<8xf32> to vector<8x1xf32>
    %cst_290 = arith.constant 1.280000e+02 : f32
    %580 = vector.broadcast %cst_290 : f32 to vector<8x1xf32>
    %581 = arith.divf %579, %580 : vector<8x1xf32>
    %582 = arith.mulf %577, %577 : vector<8x128xf32>
    %cst_291 = arith.constant dense<0.000000e+00> : vector<8xf32>
    %583 = vector.multi_reduction <add>, %582, %cst_291 [1] : vector<8x128xf32> to vector<8xf32>
    %584 = vector.shape_cast %583 : vector<8xf32> to vector<8x1xf32>
    %cst_292 = arith.constant 1.280000e+02 : f32
    %585 = vector.broadcast %cst_292 : f32 to vector<8x1xf32>
    %586 = arith.divf %584, %585 : vector<8x1xf32>
    %587 = arith.mulf %581, %581 : vector<8x1xf32>
    %588 = arith.subf %586, %587 : vector<8x1xf32>
    %cst_293 = arith.constant 0.000000e+00 : f32
    %589 = vector.broadcast %cst_293 : f32 to vector<8x1xf32>
    %590 = arith.maximumf %588, %589 : vector<8x1xf32>
    %cst_294 = arith.constant 9.99999974E-6 : f32
    %591 = vector.broadcast %cst_294 : f32 to vector<8x1xf32>
    %592 = arith.addf %590, %591 : vector<8x1xf32>
    %593 = math.rsqrt %592 : vector<8x1xf32>
    %594 = vector.broadcast %576 : f32 to vector<8x1xf32>
    %595 = arith.mulf %593, %594 : vector<8x1xf32>
    %596 = vector.broadcast %581 : vector<8x1xf32> to vector<8x128xf32>
    %597 = arith.subf %577, %596 : vector<8x128xf32>
    %598 = vector.broadcast %595 : vector<8x1xf32> to vector<8x128xf32>
    %599 = arith.mulf %597, %598 : vector<8x128xf32>
    %c2_295 = arith.constant 2 : index
    %c1_296 = arith.constant 1 : index
    %600 = memref.load %arg0[%c2_295, %c1_296] : memref<5x6xf32, #tpu.memory_space<smem>>
    %601 = vector.broadcast %600 : f32 to vector<8x128xf32>
    %602 = arith.mulf %601, %186 : vector<8x128xf32>
    %c2_297 = arith.constant 2 : index
    %c2_298 = arith.constant 2 : index
    %603 = memref.load %arg0[%c2_297, %c2_298] : memref<5x6xf32, #tpu.memory_space<smem>>
    %604 = vector.broadcast %603 : f32 to vector<8x128xf32>
    %605 = arith.mulf %604, %206 : vector<8x128xf32>
    %606 = arith.addf %602, %605 : vector<8x128xf32>
    %c2_299 = arith.constant 2 : index
    %c3_300 = arith.constant 3 : index
    %607 = memref.load %arg0[%c2_299, %c3_300] : memref<5x6xf32, #tpu.memory_space<smem>>
    %608 = vector.broadcast %607 : f32 to vector<8x128xf32>
    %609 = arith.mulf %608, %24 : vector<8x128xf32>
    %610 = arith.addf %606, %609 : vector<8x128xf32>
    %611 = arith.addf %610, %599 : vector<8x128xf32>
    %612 = arith.addf %611, %528 : vector<8x128xf32>
    %cst_301 = arith.constant 0.000000e+00 : f32
    %613 = vector.broadcast %cst_301 : f32 to vector<8x128xf32>
    %614 = arith.maximumf %49, %613 : vector<8x128xf32>
    %c9_i32_302 = arith.constant 9 : i32
    %615 = tpu.dynamic_rotate %49 by %c9_i32_302 dim 1 : vector<8x128xf32>, i32 -> vector<8x128xf32>
    %c0_303 = arith.constant 0 : index
    %c0_304 = arith.constant 0 : index
    %c0_305 = arith.constant 0 : index
    %616 = vector.load %arg9[%c0_303, %c0_304, %c0_305] : memref<9x8x128xf32, #tpu.memory_space<vmem>>, vector<1x8x128xf32>
    %617 = vector.shape_cast %616 : vector<1x8x128xf32> to vector<8x128xf32>
    %618 = arith.addf %615, %617 : vector<8x128xf32>
    %cst_306 = arith.constant 0.000000e+00 : f32
    %619 = vector.broadcast %cst_306 : f32 to vector<8x128xf32>
    %620 = arith.maximumf %615, %619 : vector<8x128xf32>
    %c0_307 = arith.constant 0 : index
    %c0_308 = arith.constant 0 : index
    %c0_309 = arith.constant 0 : index
    %621 = vector.load %arg8[%c0_307, %c0_308, %c0_309] : memref<9x8x128xf32, #tpu.memory_space<vmem>>, vector<1x8x128xf32>
    %622 = vector.shape_cast %621 : vector<1x8x128xf32> to vector<8x128xf32>
    %623 = arith.mulf %615, %622 : vector<8x128xf32>
    %c8_i32_310 = arith.constant 8 : i32
    %624 = tpu.dynamic_rotate %49 by %c8_i32_310 dim 1 : vector<8x128xf32>, i32 -> vector<8x128xf32>
    %c1_311 = arith.constant 1 : index
    %c0_312 = arith.constant 0 : index
    %c0_313 = arith.constant 0 : index
    %625 = vector.load %arg9[%c1_311, %c0_312, %c0_313] : memref<9x8x128xf32, #tpu.memory_space<vmem>>, vector<1x8x128xf32>
    %626 = vector.shape_cast %625 : vector<1x8x128xf32> to vector<8x128xf32>
    %627 = arith.addf %624, %626 : vector<8x128xf32>
    %cst_314 = arith.constant 0.000000e+00 : f32
    %628 = vector.broadcast %cst_314 : f32 to vector<8x128xf32>
    %629 = arith.maximumf %624, %628 : vector<8x128xf32>
    %c1_315 = arith.constant 1 : index
    %c0_316 = arith.constant 0 : index
    %c0_317 = arith.constant 0 : index
    %630 = vector.load %arg8[%c1_315, %c0_316, %c0_317] : memref<9x8x128xf32, #tpu.memory_space<vmem>>, vector<1x8x128xf32>
    %631 = vector.shape_cast %630 : vector<1x8x128xf32> to vector<8x128xf32>
    %632 = arith.mulf %624, %631 : vector<8x128xf32>
    %633 = arith.maximumf %618, %627 : vector<8x128xf32>
    %634 = arith.addf %623, %632 : vector<8x128xf32>
    %c7_i32_318 = arith.constant 7 : i32
    %635 = tpu.dynamic_rotate %49 by %c7_i32_318 dim 1 : vector<8x128xf32>, i32 -> vector<8x128xf32>
    %c2_319 = arith.constant 2 : index
    %c0_320 = arith.constant 0 : index
    %c0_321 = arith.constant 0 : index
    %636 = vector.load %arg9[%c2_319, %c0_320, %c0_321] : memref<9x8x128xf32, #tpu.memory_space<vmem>>, vector<1x8x128xf32>
    %637 = vector.shape_cast %636 : vector<1x8x128xf32> to vector<8x128xf32>
    %638 = arith.addf %635, %637 : vector<8x128xf32>
    %cst_322 = arith.constant 0.000000e+00 : f32
    %639 = vector.broadcast %cst_322 : f32 to vector<8x128xf32>
    %640 = arith.maximumf %635, %639 : vector<8x128xf32>
    %c2_323 = arith.constant 2 : index
    %c0_324 = arith.constant 0 : index
    %c0_325 = arith.constant 0 : index
    %641 = vector.load %arg8[%c2_323, %c0_324, %c0_325] : memref<9x8x128xf32, #tpu.memory_space<vmem>>, vector<1x8x128xf32>
    %642 = vector.shape_cast %641 : vector<1x8x128xf32> to vector<8x128xf32>
    %643 = arith.mulf %635, %642 : vector<8x128xf32>
    %644 = arith.maximumf %633, %638 : vector<8x128xf32>
    %645 = arith.addf %634, %643 : vector<8x128xf32>
    %c1_i32_326 = arith.constant 1 : i32
    %646 = tpu.dynamic_rotate %49 by %c1_i32_326 dim 1 : vector<8x128xf32>, i32 -> vector<8x128xf32>
    %c3_327 = arith.constant 3 : index
    %c0_328 = arith.constant 0 : index
    %c0_329 = arith.constant 0 : index
    %647 = vector.load %arg9[%c3_327, %c0_328, %c0_329] : memref<9x8x128xf32, #tpu.memory_space<vmem>>, vector<1x8x128xf32>
    %648 = vector.shape_cast %647 : vector<1x8x128xf32> to vector<8x128xf32>
    %649 = arith.addf %646, %648 : vector<8x128xf32>
    %cst_330 = arith.constant 0.000000e+00 : f32
    %650 = vector.broadcast %cst_330 : f32 to vector<8x128xf32>
    %651 = arith.maximumf %646, %650 : vector<8x128xf32>
    %c3_331 = arith.constant 3 : index
    %c0_332 = arith.constant 0 : index
    %c0_333 = arith.constant 0 : index
    %652 = vector.load %arg8[%c3_331, %c0_332, %c0_333] : memref<9x8x128xf32, #tpu.memory_space<vmem>>, vector<1x8x128xf32>
    %653 = vector.shape_cast %652 : vector<1x8x128xf32> to vector<8x128xf32>
    %654 = arith.mulf %646, %653 : vector<8x128xf32>
    %655 = arith.maximumf %644, %649 : vector<8x128xf32>
    %656 = arith.addf %645, %654 : vector<8x128xf32>
    %c4_334 = arith.constant 4 : index
    %c0_335 = arith.constant 0 : index
    %c0_336 = arith.constant 0 : index
    %657 = vector.load %arg8[%c4_334, %c0_335, %c0_336] : memref<9x8x128xf32, #tpu.memory_space<vmem>>, vector<1x8x128xf32>
    %658 = vector.shape_cast %657 : vector<1x8x128xf32> to vector<8x128xf32>
    %659 = arith.mulf %49, %658 : vector<8x128xf32>
    %660 = arith.maximumf %655, %49 : vector<8x128xf32>
    %661 = arith.addf %656, %659 : vector<8x128xf32>
    %c127_i32_337 = arith.constant 127 : i32
    %662 = tpu.dynamic_rotate %49 by %c127_i32_337 dim 1 : vector<8x128xf32>, i32 -> vector<8x128xf32>
    %c5_338 = arith.constant 5 : index
    %c0_339 = arith.constant 0 : index
    %c0_340 = arith.constant 0 : index
    %663 = vector.load %arg9[%c5_338, %c0_339, %c0_340] : memref<9x8x128xf32, #tpu.memory_space<vmem>>, vector<1x8x128xf32>
    %664 = vector.shape_cast %663 : vector<1x8x128xf32> to vector<8x128xf32>
    %665 = arith.addf %662, %664 : vector<8x128xf32>
    %cst_341 = arith.constant 0.000000e+00 : f32
    %666 = vector.broadcast %cst_341 : f32 to vector<8x128xf32>
    %667 = arith.maximumf %662, %666 : vector<8x128xf32>
    %c5_342 = arith.constant 5 : index
    %c0_343 = arith.constant 0 : index
    %c0_344 = arith.constant 0 : index
    %668 = vector.load %arg8[%c5_342, %c0_343, %c0_344] : memref<9x8x128xf32, #tpu.memory_space<vmem>>, vector<1x8x128xf32>
    %669 = vector.shape_cast %668 : vector<1x8x128xf32> to vector<8x128xf32>
    %670 = arith.mulf %662, %669 : vector<8x128xf32>
    %671 = arith.maximumf %660, %665 : vector<8x128xf32>
    %672 = arith.addf %661, %670 : vector<8x128xf32>
    %c121_i32_345 = arith.constant 121 : i32
    %673 = tpu.dynamic_rotate %49 by %c121_i32_345 dim 1 : vector<8x128xf32>, i32 -> vector<8x128xf32>
    %c6_346 = arith.constant 6 : index
    %c0_347 = arith.constant 0 : index
    %c0_348 = arith.constant 0 : index
    %674 = vector.load %arg9[%c6_346, %c0_347, %c0_348] : memref<9x8x128xf32, #tpu.memory_space<vmem>>, vector<1x8x128xf32>
    %675 = vector.shape_cast %674 : vector<1x8x128xf32> to vector<8x128xf32>
    %676 = arith.addf %673, %675 : vector<8x128xf32>
    %cst_349 = arith.constant 0.000000e+00 : f32
    %677 = vector.broadcast %cst_349 : f32 to vector<8x128xf32>
    %678 = arith.maximumf %673, %677 : vector<8x128xf32>
    %c6_350 = arith.constant 6 : index
    %c0_351 = arith.constant 0 : index
    %c0_352 = arith.constant 0 : index
    %679 = vector.load %arg8[%c6_350, %c0_351, %c0_352] : memref<9x8x128xf32, #tpu.memory_space<vmem>>, vector<1x8x128xf32>
    %680 = vector.shape_cast %679 : vector<1x8x128xf32> to vector<8x128xf32>
    %681 = arith.mulf %673, %680 : vector<8x128xf32>
    %682 = arith.maximumf %671, %676 : vector<8x128xf32>
    %683 = arith.addf %672, %681 : vector<8x128xf32>
    %c120_i32_353 = arith.constant 120 : i32
    %684 = tpu.dynamic_rotate %49 by %c120_i32_353 dim 1 : vector<8x128xf32>, i32 -> vector<8x128xf32>
    %c7_354 = arith.constant 7 : index
    %c0_355 = arith.constant 0 : index
    %c0_356 = arith.constant 0 : index
    %685 = vector.load %arg9[%c7_354, %c0_355, %c0_356] : memref<9x8x128xf32, #tpu.memory_space<vmem>>, vector<1x8x128xf32>
    %686 = vector.shape_cast %685 : vector<1x8x128xf32> to vector<8x128xf32>
    %687 = arith.addf %684, %686 : vector<8x128xf32>
    %cst_357 = arith.constant 0.000000e+00 : f32
    %688 = vector.broadcast %cst_357 : f32 to vector<8x128xf32>
    %689 = arith.maximumf %684, %688 : vector<8x128xf32>
    %c7_358 = arith.constant 7 : index
    %c0_359 = arith.constant 0 : index
    %c0_360 = arith.constant 0 : index
    %690 = vector.load %arg8[%c7_358, %c0_359, %c0_360] : memref<9x8x128xf32, #tpu.memory_space<vmem>>, vector<1x8x128xf32>
    %691 = vector.shape_cast %690 : vector<1x8x128xf32> to vector<8x128xf32>
    %692 = arith.mulf %684, %691 : vector<8x128xf32>
    %693 = arith.maximumf %682, %687 : vector<8x128xf32>
    %694 = arith.addf %683, %692 : vector<8x128xf32>
    %c119_i32_361 = arith.constant 119 : i32
    %695 = tpu.dynamic_rotate %49 by %c119_i32_361 dim 1 : vector<8x128xf32>, i32 -> vector<8x128xf32>
    %c8_362 = arith.constant 8 : index
    %c0_363 = arith.constant 0 : index
    %c0_364 = arith.constant 0 : index
    %696 = vector.load %arg9[%c8_362, %c0_363, %c0_364] : memref<9x8x128xf32, #tpu.memory_space<vmem>>, vector<1x8x128xf32>
    %697 = vector.shape_cast %696 : vector<1x8x128xf32> to vector<8x128xf32>
    %698 = arith.addf %695, %697 : vector<8x128xf32>
    %cst_365 = arith.constant 0.000000e+00 : f32
    %699 = vector.broadcast %cst_365 : f32 to vector<8x128xf32>
    %700 = arith.maximumf %695, %699 : vector<8x128xf32>
    %c8_366 = arith.constant 8 : index
    %c0_367 = arith.constant 0 : index
    %c0_368 = arith.constant 0 : index
    %701 = vector.load %arg8[%c8_366, %c0_367, %c0_368] : memref<9x8x128xf32, #tpu.memory_space<vmem>>, vector<1x8x128xf32>
    %702 = vector.shape_cast %701 : vector<1x8x128xf32> to vector<8x128xf32>
    %703 = arith.mulf %695, %702 : vector<8x128xf32>
    %704 = arith.maximumf %693, %698 : vector<8x128xf32>
    %705 = arith.addf %694, %703 : vector<8x128xf32>
    %c18_i32_369 = arith.constant 18 : i32
    %706 = tpu.dynamic_rotate %49 by %c18_i32_369 dim 1 : vector<8x128xf32>, i32 -> vector<8x128xf32>
    %cst_370 = arith.constant 0.000000e+00 : f32
    %707 = vector.broadcast %cst_370 : f32 to vector<8x128xf32>
    %708 = arith.maximumf %706, %707 : vector<8x128xf32>
    %c16_i32_371 = arith.constant 16 : i32
    %709 = tpu.dynamic_rotate %49 by %c16_i32_371 dim 1 : vector<8x128xf32>, i32 -> vector<8x128xf32>
    %cst_372 = arith.constant 0.000000e+00 : f32
    %710 = vector.broadcast %cst_372 : f32 to vector<8x128xf32>
    %711 = arith.maximumf %709, %710 : vector<8x128xf32>
    %c14_i32_373 = arith.constant 14 : i32
    %712 = tpu.dynamic_rotate %49 by %c14_i32_373 dim 1 : vector<8x128xf32>, i32 -> vector<8x128xf32>
    %cst_374 = arith.constant 0.000000e+00 : f32
    %713 = vector.broadcast %cst_374 : f32 to vector<8x128xf32>
    %714 = arith.maximumf %712, %713 : vector<8x128xf32>
    %c2_i32_375 = arith.constant 2 : i32
    %715 = tpu.dynamic_rotate %49 by %c2_i32_375 dim 1 : vector<8x128xf32>, i32 -> vector<8x128xf32>
    %cst_376 = arith.constant 0.000000e+00 : f32
    %716 = vector.broadcast %cst_376 : f32 to vector<8x128xf32>
    %717 = arith.maximumf %715, %716 : vector<8x128xf32>
    %c126_i32_377 = arith.constant 126 : i32
    %718 = tpu.dynamic_rotate %49 by %c126_i32_377 dim 1 : vector<8x128xf32>, i32 -> vector<8x128xf32>
    %cst_378 = arith.constant 0.000000e+00 : f32
    %719 = vector.broadcast %cst_378 : f32 to vector<8x128xf32>
    %720 = arith.maximumf %718, %719 : vector<8x128xf32>
    %c114_i32_379 = arith.constant 114 : i32
    %721 = tpu.dynamic_rotate %49 by %c114_i32_379 dim 1 : vector<8x128xf32>, i32 -> vector<8x128xf32>
    %cst_380 = arith.constant 0.000000e+00 : f32
    %722 = vector.broadcast %cst_380 : f32 to vector<8x128xf32>
    %723 = arith.maximumf %721, %722 : vector<8x128xf32>
    %c112_i32_381 = arith.constant 112 : i32
    %724 = tpu.dynamic_rotate %49 by %c112_i32_381 dim 1 : vector<8x128xf32>, i32 -> vector<8x128xf32>
    %cst_382 = arith.constant 0.000000e+00 : f32
    %725 = vector.broadcast %cst_382 : f32 to vector<8x128xf32>
    %726 = arith.maximumf %724, %725 : vector<8x128xf32>
    %c110_i32_383 = arith.constant 110 : i32
    %727 = tpu.dynamic_rotate %49 by %c110_i32_383 dim 1 : vector<8x128xf32>, i32 -> vector<8x128xf32>
    %cst_384 = arith.constant 0.000000e+00 : f32
    %728 = vector.broadcast %cst_384 : f32 to vector<8x128xf32>
    %729 = arith.maximumf %727, %728 : vector<8x128xf32>
    %cst_385 = arith.constant dense<0.000000e+00> : vector<8xf32>
    %730 = vector.multi_reduction <add>, %704, %cst_385 [1] : vector<8x128xf32> to vector<8xf32>
    %731 = vector.shape_cast %730 : vector<8xf32> to vector<8x1xf32>
    %cst_386 = arith.constant 1.280000e+02 : f32
    %732 = vector.broadcast %cst_386 : f32 to vector<8x1xf32>
    %733 = arith.divf %731, %732 : vector<8x1xf32>
    %734 = arith.mulf %704, %704 : vector<8x128xf32>
    %cst_387 = arith.constant dense<0.000000e+00> : vector<8xf32>
    %735 = vector.multi_reduction <add>, %734, %cst_387 [1] : vector<8x128xf32> to vector<8xf32>
    %736 = vector.shape_cast %735 : vector<8xf32> to vector<8x1xf32>
    %cst_388 = arith.constant 1.280000e+02 : f32
    %737 = vector.broadcast %cst_388 : f32 to vector<8x1xf32>
    %738 = arith.divf %736, %737 : vector<8x1xf32>
    %739 = arith.mulf %733, %733 : vector<8x1xf32>
    %740 = arith.subf %738, %739 : vector<8x1xf32>
    %cst_389 = arith.constant 0.000000e+00 : f32
    %741 = vector.broadcast %cst_389 : f32 to vector<8x1xf32>
    %742 = arith.maximumf %740, %741 : vector<8x1xf32>
    %cst_390 = arith.constant 9.99999974E-6 : f32
    %743 = vector.broadcast %cst_390 : f32 to vector<8x1xf32>
    %744 = arith.addf %742, %743 : vector<8x1xf32>
    %745 = math.rsqrt %744 : vector<8x1xf32>
    %746 = vector.broadcast %733 : vector<8x1xf32> to vector<8x128xf32>
    %747 = arith.subf %704, %746 : vector<8x128xf32>
    %748 = vector.broadcast %745 : vector<8x1xf32> to vector<8x128xf32>
    %749 = arith.mulf %747, %748 : vector<8x128xf32>
    %cst_391 = arith.constant dense<0.000000e+00> : vector<8xf32>
    %750 = vector.multi_reduction <add>, %705, %cst_391 [1] : vector<8x128xf32> to vector<8xf32>
    %751 = vector.shape_cast %750 : vector<8xf32> to vector<8x1xf32>
    %cst_392 = arith.constant 1.280000e+02 : f32
    %752 = vector.broadcast %cst_392 : f32 to vector<8x1xf32>
    %753 = arith.divf %751, %752 : vector<8x1xf32>
    %754 = arith.mulf %705, %705 : vector<8x128xf32>
    %cst_393 = arith.constant dense<0.000000e+00> : vector<8xf32>
    %755 = vector.multi_reduction <add>, %754, %cst_393 [1] : vector<8x128xf32> to vector<8xf32>
    %756 = vector.shape_cast %755 : vector<8xf32> to vector<8x1xf32>
    %cst_394 = arith.constant 1.280000e+02 : f32
    %757 = vector.broadcast %cst_394 : f32 to vector<8x1xf32>
    %758 = arith.divf %756, %757 : vector<8x1xf32>
    %759 = arith.mulf %753, %753 : vector<8x1xf32>
    %760 = arith.subf %758, %759 : vector<8x1xf32>
    %cst_395 = arith.constant 0.000000e+00 : f32
    %761 = vector.broadcast %cst_395 : f32 to vector<8x1xf32>
    %762 = arith.maximumf %760, %761 : vector<8x1xf32>
    %cst_396 = arith.constant 9.99999974E-6 : f32
    %763 = vector.broadcast %cst_396 : f32 to vector<8x1xf32>
    %764 = arith.addf %762, %763 : vector<8x1xf32>
    %765 = math.rsqrt %764 : vector<8x1xf32>
    %766 = vector.broadcast %753 : vector<8x1xf32> to vector<8x128xf32>
    %767 = arith.subf %705, %766 : vector<8x128xf32>
    %768 = vector.broadcast %765 : vector<8x1xf32> to vector<8x128xf32>
    %769 = arith.mulf %767, %768 : vector<8x128xf32>
    %c27 = arith.constant 27 : index
    %c0_397 = arith.constant 0 : index
    %c0_398 = arith.constant 0 : index
    %770 = vector.load %arg5[%c27, %c0_397, %c0_398] : memref<135x8x128xf32, #tpu.memory_space<vmem>>, vector<1x8x128xf32>
    %771 = vector.shape_cast %770 : vector<1x8x128xf32> to vector<8x128xf32>
    %772 = arith.mulf %620, %771 : vector<8x128xf32>
    %c45 = arith.constant 45 : index
    %c0_399 = arith.constant 0 : index
    %c0_400 = arith.constant 0 : index
    %773 = vector.load %arg5[%c45, %c0_399, %c0_400] : memref<135x8x128xf32, #tpu.memory_space<vmem>>, vector<1x8x128xf32>
    %774 = vector.shape_cast %773 : vector<1x8x128xf32> to vector<8x128xf32>
    %775 = arith.mulf %708, %774 : vector<8x128xf32>
    %c28 = arith.constant 28 : index
    %c0_401 = arith.constant 0 : index
    %c0_402 = arith.constant 0 : index
    %776 = vector.load %arg5[%c28, %c0_401, %c0_402] : memref<135x8x128xf32, #tpu.memory_space<vmem>>, vector<1x8x128xf32>
    %777 = vector.shape_cast %776 : vector<1x8x128xf32> to vector<8x128xf32>
    %778 = arith.mulf %629, %777 : vector<8x128xf32>
    %779 = arith.addf %772, %778 : vector<8x128xf32>
    %c46 = arith.constant 46 : index
    %c0_403 = arith.constant 0 : index
    %c0_404 = arith.constant 0 : index
    %780 = vector.load %arg5[%c46, %c0_403, %c0_404] : memref<135x8x128xf32, #tpu.memory_space<vmem>>, vector<1x8x128xf32>
    %781 = vector.shape_cast %780 : vector<1x8x128xf32> to vector<8x128xf32>
    %782 = arith.mulf %711, %781 : vector<8x128xf32>
    %783 = arith.addf %775, %782 : vector<8x128xf32>
    %c29 = arith.constant 29 : index
    %c0_405 = arith.constant 0 : index
    %c0_406 = arith.constant 0 : index
    %784 = vector.load %arg5[%c29, %c0_405, %c0_406] : memref<135x8x128xf32, #tpu.memory_space<vmem>>, vector<1x8x128xf32>
    %785 = vector.shape_cast %784 : vector<1x8x128xf32> to vector<8x128xf32>
    %786 = arith.mulf %640, %785 : vector<8x128xf32>
    %787 = arith.addf %779, %786 : vector<8x128xf32>
    %c47 = arith.constant 47 : index
    %c0_407 = arith.constant 0 : index
    %c0_408 = arith.constant 0 : index
    %788 = vector.load %arg5[%c47, %c0_407, %c0_408] : memref<135x8x128xf32, #tpu.memory_space<vmem>>, vector<1x8x128xf32>
    %789 = vector.shape_cast %788 : vector<1x8x128xf32> to vector<8x128xf32>
    %790 = arith.mulf %714, %789 : vector<8x128xf32>
    %791 = arith.addf %783, %790 : vector<8x128xf32>
    %c30 = arith.constant 30 : index
    %c0_409 = arith.constant 0 : index
    %c0_410 = arith.constant 0 : index
    %792 = vector.load %arg5[%c30, %c0_409, %c0_410] : memref<135x8x128xf32, #tpu.memory_space<vmem>>, vector<1x8x128xf32>
    %793 = vector.shape_cast %792 : vector<1x8x128xf32> to vector<8x128xf32>
    %794 = arith.mulf %651, %793 : vector<8x128xf32>
    %795 = arith.addf %787, %794 : vector<8x128xf32>
    %c48 = arith.constant 48 : index
    %c0_411 = arith.constant 0 : index
    %c0_412 = arith.constant 0 : index
    %796 = vector.load %arg5[%c48, %c0_411, %c0_412] : memref<135x8x128xf32, #tpu.memory_space<vmem>>, vector<1x8x128xf32>
    %797 = vector.shape_cast %796 : vector<1x8x128xf32> to vector<8x128xf32>
    %798 = arith.mulf %717, %797 : vector<8x128xf32>
    %799 = arith.addf %791, %798 : vector<8x128xf32>
    %c31 = arith.constant 31 : index
    %c0_413 = arith.constant 0 : index
    %c0_414 = arith.constant 0 : index
    %800 = vector.load %arg5[%c31, %c0_413, %c0_414] : memref<135x8x128xf32, #tpu.memory_space<vmem>>, vector<1x8x128xf32>
    %801 = vector.shape_cast %800 : vector<1x8x128xf32> to vector<8x128xf32>
    %802 = arith.mulf %614, %801 : vector<8x128xf32>
    %803 = arith.addf %795, %802 : vector<8x128xf32>
    %c49 = arith.constant 49 : index
    %c0_415 = arith.constant 0 : index
    %c0_416 = arith.constant 0 : index
    %804 = vector.load %arg5[%c49, %c0_415, %c0_416] : memref<135x8x128xf32, #tpu.memory_space<vmem>>, vector<1x8x128xf32>
    %805 = vector.shape_cast %804 : vector<1x8x128xf32> to vector<8x128xf32>
    %806 = arith.mulf %614, %805 : vector<8x128xf32>
    %807 = arith.addf %799, %806 : vector<8x128xf32>
    %c32 = arith.constant 32 : index
    %c0_417 = arith.constant 0 : index
    %c0_418 = arith.constant 0 : index
    %808 = vector.load %arg5[%c32, %c0_417, %c0_418] : memref<135x8x128xf32, #tpu.memory_space<vmem>>, vector<1x8x128xf32>
    %809 = vector.shape_cast %808 : vector<1x8x128xf32> to vector<8x128xf32>
    %810 = arith.mulf %667, %809 : vector<8x128xf32>
    %811 = arith.addf %803, %810 : vector<8x128xf32>
    %c50 = arith.constant 50 : index
    %c0_419 = arith.constant 0 : index
    %c0_420 = arith.constant 0 : index
    %812 = vector.load %arg5[%c50, %c0_419, %c0_420] : memref<135x8x128xf32, #tpu.memory_space<vmem>>, vector<1x8x128xf32>
    %813 = vector.shape_cast %812 : vector<1x8x128xf32> to vector<8x128xf32>
    %814 = arith.mulf %720, %813 : vector<8x128xf32>
    %815 = arith.addf %807, %814 : vector<8x128xf32>
    %c33 = arith.constant 33 : index
    %c0_421 = arith.constant 0 : index
    %c0_422 = arith.constant 0 : index
    %816 = vector.load %arg5[%c33, %c0_421, %c0_422] : memref<135x8x128xf32, #tpu.memory_space<vmem>>, vector<1x8x128xf32>
    %817 = vector.shape_cast %816 : vector<1x8x128xf32> to vector<8x128xf32>
    %818 = arith.mulf %678, %817 : vector<8x128xf32>
    %819 = arith.addf %811, %818 : vector<8x128xf32>
    %c51 = arith.constant 51 : index
    %c0_423 = arith.constant 0 : index
    %c0_424 = arith.constant 0 : index
    %820 = vector.load %arg5[%c51, %c0_423, %c0_424] : memref<135x8x128xf32, #tpu.memory_space<vmem>>, vector<1x8x128xf32>
    %821 = vector.shape_cast %820 : vector<1x8x128xf32> to vector<8x128xf32>
    %822 = arith.mulf %723, %821 : vector<8x128xf32>
    %823 = arith.addf %815, %822 : vector<8x128xf32>
    %c34 = arith.constant 34 : index
    %c0_425 = arith.constant 0 : index
    %c0_426 = arith.constant 0 : index
    %824 = vector.load %arg5[%c34, %c0_425, %c0_426] : memref<135x8x128xf32, #tpu.memory_space<vmem>>, vector<1x8x128xf32>
    %825 = vector.shape_cast %824 : vector<1x8x128xf32> to vector<8x128xf32>
    %826 = arith.mulf %689, %825 : vector<8x128xf32>
    %827 = arith.addf %819, %826 : vector<8x128xf32>
    %c52 = arith.constant 52 : index
    %c0_427 = arith.constant 0 : index
    %c0_428 = arith.constant 0 : index
    %828 = vector.load %arg5[%c52, %c0_427, %c0_428] : memref<135x8x128xf32, #tpu.memory_space<vmem>>, vector<1x8x128xf32>
    %829 = vector.shape_cast %828 : vector<1x8x128xf32> to vector<8x128xf32>
    %830 = arith.mulf %726, %829 : vector<8x128xf32>
    %831 = arith.addf %823, %830 : vector<8x128xf32>
    %c35 = arith.constant 35 : index
    %c0_429 = arith.constant 0 : index
    %c0_430 = arith.constant 0 : index
    %832 = vector.load %arg5[%c35, %c0_429, %c0_430] : memref<135x8x128xf32, #tpu.memory_space<vmem>>, vector<1x8x128xf32>
    %833 = vector.shape_cast %832 : vector<1x8x128xf32> to vector<8x128xf32>
    %834 = arith.mulf %700, %833 : vector<8x128xf32>
    %835 = arith.addf %827, %834 : vector<8x128xf32>
    %c53 = arith.constant 53 : index
    %c0_431 = arith.constant 0 : index
    %c0_432 = arith.constant 0 : index
    %836 = vector.load %arg5[%c53, %c0_431, %c0_432] : memref<135x8x128xf32, #tpu.memory_space<vmem>>, vector<1x8x128xf32>
    %837 = vector.shape_cast %836 : vector<1x8x128xf32> to vector<8x128xf32>
    %838 = arith.mulf %729, %837 : vector<8x128xf32>
    %839 = arith.addf %831, %838 : vector<8x128xf32>
    %c1_433 = arith.constant 1 : index
    %c0_434 = arith.constant 0 : index
    %c0_435 = arith.constant 0 : index
    %840 = vector.load %arg6[%c1_433, %c0_434, %c0_435] : memref<5x16x16xf32, #tpu.memory_space<vmem>>, vector<1x16x16xf32>
    %841 = vector.shape_cast %840 : vector<1x16x16xf32> to vector<16x16xf32>
    %842 = tpu.concatenate %835, %839 in 0 : vector<8x128xf32>, vector<8x128xf32> -> vector<16x128xf32>
    %cst_436 = arith.constant dense<0.000000e+00> : vector<16x128xf32>
    %843 = tpu.matmul %841, %842, %cst_436 {dimension_numbers = #tpu.dot_dimension_numbers<[1], [0], [0], [1], [0, 0, 1, 1], [], []>} : vector<16x16xf32>, vector<16x128xf32>, vector<16x128xf32> -> vector<16x128xf32>
    %844 = vector.extract_strided_slice %843 {offsets = [0, 0], sizes = [8, 128], strides = [1, 1]} : vector<16x128xf32> to vector<8x128xf32>
    %cst_437 = arith.constant dense<0.000000e+00> : vector<8xf32>
    %845 = vector.multi_reduction <add>, %844, %cst_437 [1] : vector<8x128xf32> to vector<8xf32>
    %846 = vector.shape_cast %845 : vector<8xf32> to vector<8x1xf32>
    %cst_438 = arith.constant 1.280000e+02 : f32
    %847 = vector.broadcast %cst_438 : f32 to vector<8x1xf32>
    %848 = arith.divf %846, %847 : vector<8x1xf32>
    %849 = arith.mulf %844, %844 : vector<8x128xf32>
    %cst_439 = arith.constant dense<0.000000e+00> : vector<8xf32>
    %850 = vector.multi_reduction <add>, %849, %cst_439 [1] : vector<8x128xf32> to vector<8xf32>
    %851 = vector.shape_cast %850 : vector<8xf32> to vector<8x1xf32>
    %cst_440 = arith.constant 1.280000e+02 : f32
    %852 = vector.broadcast %cst_440 : f32 to vector<8x1xf32>
    %853 = arith.divf %851, %852 : vector<8x1xf32>
    %854 = arith.mulf %848, %848 : vector<8x1xf32>
    %855 = arith.subf %853, %854 : vector<8x1xf32>
    %cst_441 = arith.constant 0.000000e+00 : f32
    %856 = vector.broadcast %cst_441 : f32 to vector<8x1xf32>
    %857 = arith.maximumf %855, %856 : vector<8x1xf32>
    %cst_442 = arith.constant 9.99999974E-6 : f32
    %858 = vector.broadcast %cst_442 : f32 to vector<8x1xf32>
    %859 = arith.addf %857, %858 : vector<8x1xf32>
    %860 = math.rsqrt %859 : vector<8x1xf32>
    %861 = vector.broadcast %848 : vector<8x1xf32> to vector<8x128xf32>
    %862 = arith.subf %844, %861 : vector<8x128xf32>
    %863 = vector.broadcast %860 : vector<8x1xf32> to vector<8x128xf32>
    %864 = arith.mulf %862, %863 : vector<8x128xf32>
    %865 = vector.extract_strided_slice %843 {offsets = [8, 0], sizes = [8, 128], strides = [1, 1]} : vector<16x128xf32> to vector<8x128xf32>
    %c1_443 = arith.constant 1 : index
    %c5_444 = arith.constant 5 : index
    %866 = memref.load %arg0[%c1_443, %c5_444] : memref<5x6xf32, #tpu.memory_space<smem>>
    %cst_445 = arith.constant dense<0.000000e+00> : vector<8xf32>
    %867 = vector.multi_reduction <add>, %865, %cst_445 [1] : vector<8x128xf32> to vector<8xf32>
    %868 = vector.shape_cast %867 : vector<8xf32> to vector<8x1xf32>
    %cst_446 = arith.constant 1.280000e+02 : f32
    %869 = vector.broadcast %cst_446 : f32 to vector<8x1xf32>
    %870 = arith.divf %868, %869 : vector<8x1xf32>
    %871 = arith.mulf %865, %865 : vector<8x128xf32>
    %cst_447 = arith.constant dense<0.000000e+00> : vector<8xf32>
    %872 = vector.multi_reduction <add>, %871, %cst_447 [1] : vector<8x128xf32> to vector<8xf32>
    %873 = vector.shape_cast %872 : vector<8xf32> to vector<8x1xf32>
    %cst_448 = arith.constant 1.280000e+02 : f32
    %874 = vector.broadcast %cst_448 : f32 to vector<8x1xf32>
    %875 = arith.divf %873, %874 : vector<8x1xf32>
    %876 = arith.mulf %870, %870 : vector<8x1xf32>
    %877 = arith.subf %875, %876 : vector<8x1xf32>
    %cst_449 = arith.constant 0.000000e+00 : f32
    %878 = vector.broadcast %cst_449 : f32 to vector<8x1xf32>
    %879 = arith.maximumf %877, %878 : vector<8x1xf32>
    %cst_450 = arith.constant 9.99999974E-6 : f32
    %880 = vector.broadcast %cst_450 : f32 to vector<8x1xf32>
    %881 = arith.addf %879, %880 : vector<8x1xf32>
    %882 = math.rsqrt %881 : vector<8x1xf32>
    %883 = vector.broadcast %866 : f32 to vector<8x1xf32>
    %884 = arith.mulf %882, %883 : vector<8x1xf32>
    %885 = vector.broadcast %870 : vector<8x1xf32> to vector<8x128xf32>
    %886 = arith.subf %865, %885 : vector<8x128xf32>
    %887 = vector.broadcast %884 : vector<8x1xf32> to vector<8x128xf32>
    %888 = arith.mulf %886, %887 : vector<8x128xf32>
    %cst_451 = arith.constant 0.000000e+00 : f32
    %889 = vector.broadcast %cst_451 : f32 to vector<8x128xf32>
    %890 = arith.maximumf %864, %889 : vector<8x128xf32>
    %c9_i32_452 = arith.constant 9 : i32
    %891 = tpu.dynamic_rotate %890 by %c9_i32_452 dim 1 : vector<8x128xf32>, i32 -> vector<8x128xf32>
    %c36 = arith.constant 36 : index
    %c0_453 = arith.constant 0 : index
    %c0_454 = arith.constant 0 : index
    %892 = vector.load %arg5[%c36, %c0_453, %c0_454] : memref<135x8x128xf32, #tpu.memory_space<vmem>>, vector<1x8x128xf32>
    %893 = vector.shape_cast %892 : vector<1x8x128xf32> to vector<8x128xf32>
    %894 = arith.mulf %891, %893 : vector<8x128xf32>
    %c8_i32_455 = arith.constant 8 : i32
    %895 = tpu.dynamic_rotate %890 by %c8_i32_455 dim 1 : vector<8x128xf32>, i32 -> vector<8x128xf32>
    %c37 = arith.constant 37 : index
    %c0_456 = arith.constant 0 : index
    %c0_457 = arith.constant 0 : index
    %896 = vector.load %arg5[%c37, %c0_456, %c0_457] : memref<135x8x128xf32, #tpu.memory_space<vmem>>, vector<1x8x128xf32>
    %897 = vector.shape_cast %896 : vector<1x8x128xf32> to vector<8x128xf32>
    %898 = arith.mulf %895, %897 : vector<8x128xf32>
    %899 = arith.addf %894, %898 : vector<8x128xf32>
    %c7_i32_458 = arith.constant 7 : i32
    %900 = tpu.dynamic_rotate %890 by %c7_i32_458 dim 1 : vector<8x128xf32>, i32 -> vector<8x128xf32>
    %c38 = arith.constant 38 : index
    %c0_459 = arith.constant 0 : index
    %c0_460 = arith.constant 0 : index
    %901 = vector.load %arg5[%c38, %c0_459, %c0_460] : memref<135x8x128xf32, #tpu.memory_space<vmem>>, vector<1x8x128xf32>
    %902 = vector.shape_cast %901 : vector<1x8x128xf32> to vector<8x128xf32>
    %903 = arith.mulf %900, %902 : vector<8x128xf32>
    %904 = arith.addf %899, %903 : vector<8x128xf32>
    %c1_i32_461 = arith.constant 1 : i32
    %905 = tpu.dynamic_rotate %890 by %c1_i32_461 dim 1 : vector<8x128xf32>, i32 -> vector<8x128xf32>
    %c39 = arith.constant 39 : index
    %c0_462 = arith.constant 0 : index
    %c0_463 = arith.constant 0 : index
    %906 = vector.load %arg5[%c39, %c0_462, %c0_463] : memref<135x8x128xf32, #tpu.memory_space<vmem>>, vector<1x8x128xf32>
    %907 = vector.shape_cast %906 : vector<1x8x128xf32> to vector<8x128xf32>
    %908 = arith.mulf %905, %907 : vector<8x128xf32>
    %909 = arith.addf %904, %908 : vector<8x128xf32>
    %c40 = arith.constant 40 : index
    %c0_464 = arith.constant 0 : index
    %c0_465 = arith.constant 0 : index
    %910 = vector.load %arg5[%c40, %c0_464, %c0_465] : memref<135x8x128xf32, #tpu.memory_space<vmem>>, vector<1x8x128xf32>
    %911 = vector.shape_cast %910 : vector<1x8x128xf32> to vector<8x128xf32>
    %912 = arith.mulf %890, %911 : vector<8x128xf32>
    %913 = arith.addf %909, %912 : vector<8x128xf32>
    %c127_i32_466 = arith.constant 127 : i32
    %914 = tpu.dynamic_rotate %890 by %c127_i32_466 dim 1 : vector<8x128xf32>, i32 -> vector<8x128xf32>
    %c41 = arith.constant 41 : index
    %c0_467 = arith.constant 0 : index
    %c0_468 = arith.constant 0 : index
    %915 = vector.load %arg5[%c41, %c0_467, %c0_468] : memref<135x8x128xf32, #tpu.memory_space<vmem>>, vector<1x8x128xf32>
    %916 = vector.shape_cast %915 : vector<1x8x128xf32> to vector<8x128xf32>
    %917 = arith.mulf %914, %916 : vector<8x128xf32>
    %918 = arith.addf %913, %917 : vector<8x128xf32>
    %c121_i32_469 = arith.constant 121 : i32
    %919 = tpu.dynamic_rotate %890 by %c121_i32_469 dim 1 : vector<8x128xf32>, i32 -> vector<8x128xf32>
    %c42 = arith.constant 42 : index
    %c0_470 = arith.constant 0 : index
    %c0_471 = arith.constant 0 : index
    %920 = vector.load %arg5[%c42, %c0_470, %c0_471] : memref<135x8x128xf32, #tpu.memory_space<vmem>>, vector<1x8x128xf32>
    %921 = vector.shape_cast %920 : vector<1x8x128xf32> to vector<8x128xf32>
    %922 = arith.mulf %919, %921 : vector<8x128xf32>
    %923 = arith.addf %918, %922 : vector<8x128xf32>
    %c120_i32_472 = arith.constant 120 : i32
    %924 = tpu.dynamic_rotate %890 by %c120_i32_472 dim 1 : vector<8x128xf32>, i32 -> vector<8x128xf32>
    %c43 = arith.constant 43 : index
    %c0_473 = arith.constant 0 : index
    %c0_474 = arith.constant 0 : index
    %925 = vector.load %arg5[%c43, %c0_473, %c0_474] : memref<135x8x128xf32, #tpu.memory_space<vmem>>, vector<1x8x128xf32>
    %926 = vector.shape_cast %925 : vector<1x8x128xf32> to vector<8x128xf32>
    %927 = arith.mulf %924, %926 : vector<8x128xf32>
    %928 = arith.addf %923, %927 : vector<8x128xf32>
    %c119_i32_475 = arith.constant 119 : i32
    %929 = tpu.dynamic_rotate %890 by %c119_i32_475 dim 1 : vector<8x128xf32>, i32 -> vector<8x128xf32>
    %c44 = arith.constant 44 : index
    %c0_476 = arith.constant 0 : index
    %c0_477 = arith.constant 0 : index
    %930 = vector.load %arg5[%c44, %c0_476, %c0_477] : memref<135x8x128xf32, #tpu.memory_space<vmem>>, vector<1x8x128xf32>
    %931 = vector.shape_cast %930 : vector<1x8x128xf32> to vector<8x128xf32>
    %932 = arith.mulf %929, %931 : vector<8x128xf32>
    %933 = arith.addf %928, %932 : vector<8x128xf32>
    %c1_478 = arith.constant 1 : index
    %c0_479 = arith.constant 0 : index
    %c0_480 = arith.constant 0 : index
    %934 = vector.load %arg7[%c1_478, %c0_479, %c0_480] : memref<5x8x8xf32, #tpu.memory_space<vmem>>, vector<1x8x8xf32>
    %935 = vector.shape_cast %934 : vector<1x8x8xf32> to vector<8x8xf32>
    %c1_481 = arith.constant 1 : index
    %c4_482 = arith.constant 4 : index
    %936 = memref.load %arg0[%c1_481, %c4_482] : memref<5x6xf32, #tpu.memory_space<smem>>
    %cst_483 = arith.constant dense<0.000000e+00> : vector<8x128xf32>
    %937 = tpu.matmul %935, %933, %cst_483 {dimension_numbers = #tpu.dot_dimension_numbers<[1], [0], [0], [1], [0, 0, 1, 1], [], []>} : vector<8x8xf32>, vector<8x128xf32>, vector<8x128xf32> -> vector<8x128xf32>
    %cst_484 = arith.constant dense<0.000000e+00> : vector<8xf32>
    %938 = vector.multi_reduction <add>, %937, %cst_484 [1] : vector<8x128xf32> to vector<8xf32>
    %939 = vector.shape_cast %938 : vector<8xf32> to vector<8x1xf32>
    %cst_485 = arith.constant 1.280000e+02 : f32
    %940 = vector.broadcast %cst_485 : f32 to vector<8x1xf32>
    %941 = arith.divf %939, %940 : vector<8x1xf32>
    %942 = arith.mulf %937, %937 : vector<8x128xf32>
    %cst_486 = arith.constant dense<0.000000e+00> : vector<8xf32>
    %943 = vector.multi_reduction <add>, %942, %cst_486 [1] : vector<8x128xf32> to vector<8xf32>
    %944 = vector.shape_cast %943 : vector<8xf32> to vector<8x1xf32>
    %cst_487 = arith.constant 1.280000e+02 : f32
    %945 = vector.broadcast %cst_487 : f32 to vector<8x1xf32>
    %946 = arith.divf %944, %945 : vector<8x1xf32>
    %947 = arith.mulf %941, %941 : vector<8x1xf32>
    %948 = arith.subf %946, %947 : vector<8x1xf32>
    %cst_488 = arith.constant 0.000000e+00 : f32
    %949 = vector.broadcast %cst_488 : f32 to vector<8x1xf32>
    %950 = arith.maximumf %948, %949 : vector<8x1xf32>
    %cst_489 = arith.constant 9.99999974E-6 : f32
    %951 = vector.broadcast %cst_489 : f32 to vector<8x1xf32>
    %952 = arith.addf %950, %951 : vector<8x1xf32>
    %953 = math.rsqrt %952 : vector<8x1xf32>
    %954 = vector.broadcast %936 : f32 to vector<8x1xf32>
    %955 = arith.mulf %953, %954 : vector<8x1xf32>
    %956 = vector.broadcast %941 : vector<8x1xf32> to vector<8x128xf32>
    %957 = arith.subf %937, %956 : vector<8x128xf32>
    %958 = vector.broadcast %955 : vector<8x1xf32> to vector<8x128xf32>
    %959 = arith.mulf %957, %958 : vector<8x128xf32>
    %c1_490 = arith.constant 1 : index
    %c1_491 = arith.constant 1 : index
    %960 = memref.load %arg0[%c1_490, %c1_491] : memref<5x6xf32, #tpu.memory_space<smem>>
    %961 = vector.broadcast %960 : f32 to vector<8x128xf32>
    %962 = arith.mulf %961, %749 : vector<8x128xf32>
    %c1_492 = arith.constant 1 : index
    %c2_493 = arith.constant 2 : index
    %963 = memref.load %arg0[%c1_492, %c2_493] : memref<5x6xf32, #tpu.memory_space<smem>>
    %964 = vector.broadcast %963 : f32 to vector<8x128xf32>
    %965 = arith.mulf %964, %769 : vector<8x128xf32>
    %966 = arith.addf %962, %965 : vector<8x128xf32>
    %c1_494 = arith.constant 1 : index
    %c3_495 = arith.constant 3 : index
    %967 = memref.load %arg0[%c1_494, %c3_495] : memref<5x6xf32, #tpu.memory_space<smem>>
    %968 = vector.broadcast %967 : f32 to vector<8x128xf32>
    %969 = arith.mulf %968, %49 : vector<8x128xf32>
    %970 = arith.addf %966, %969 : vector<8x128xf32>
    %971 = arith.addf %970, %959 : vector<8x128xf32>
    %972 = arith.addf %971, %888 : vector<8x128xf32>
    %973 = arith.addf %409, %972 : vector<8x128xf32>
    %c81 = arith.constant 81 : index
    %c0_496 = arith.constant 0 : index
    %c0_497 = arith.constant 0 : index
    %974 = vector.load %arg5[%c81, %c0_496, %c0_497] : memref<135x8x128xf32, #tpu.memory_space<vmem>>, vector<1x8x128xf32>
    %975 = vector.shape_cast %974 : vector<1x8x128xf32> to vector<8x128xf32>
    %976 = arith.mulf %620, %975 : vector<8x128xf32>
    %c99 = arith.constant 99 : index
    %c0_498 = arith.constant 0 : index
    %c0_499 = arith.constant 0 : index
    %977 = vector.load %arg5[%c99, %c0_498, %c0_499] : memref<135x8x128xf32, #tpu.memory_space<vmem>>, vector<1x8x128xf32>
    %978 = vector.shape_cast %977 : vector<1x8x128xf32> to vector<8x128xf32>
    %979 = arith.mulf %708, %978 : vector<8x128xf32>
    %c82 = arith.constant 82 : index
    %c0_500 = arith.constant 0 : index
    %c0_501 = arith.constant 0 : index
    %980 = vector.load %arg5[%c82, %c0_500, %c0_501] : memref<135x8x128xf32, #tpu.memory_space<vmem>>, vector<1x8x128xf32>
    %981 = vector.shape_cast %980 : vector<1x8x128xf32> to vector<8x128xf32>
    %982 = arith.mulf %629, %981 : vector<8x128xf32>
    %983 = arith.addf %976, %982 : vector<8x128xf32>
    %c100 = arith.constant 100 : index
    %c0_502 = arith.constant 0 : index
    %c0_503 = arith.constant 0 : index
    %984 = vector.load %arg5[%c100, %c0_502, %c0_503] : memref<135x8x128xf32, #tpu.memory_space<vmem>>, vector<1x8x128xf32>
    %985 = vector.shape_cast %984 : vector<1x8x128xf32> to vector<8x128xf32>
    %986 = arith.mulf %711, %985 : vector<8x128xf32>
    %987 = arith.addf %979, %986 : vector<8x128xf32>
    %c83 = arith.constant 83 : index
    %c0_504 = arith.constant 0 : index
    %c0_505 = arith.constant 0 : index
    %988 = vector.load %arg5[%c83, %c0_504, %c0_505] : memref<135x8x128xf32, #tpu.memory_space<vmem>>, vector<1x8x128xf32>
    %989 = vector.shape_cast %988 : vector<1x8x128xf32> to vector<8x128xf32>
    %990 = arith.mulf %640, %989 : vector<8x128xf32>
    %991 = arith.addf %983, %990 : vector<8x128xf32>
    %c101 = arith.constant 101 : index
    %c0_506 = arith.constant 0 : index
    %c0_507 = arith.constant 0 : index
    %992 = vector.load %arg5[%c101, %c0_506, %c0_507] : memref<135x8x128xf32, #tpu.memory_space<vmem>>, vector<1x8x128xf32>
    %993 = vector.shape_cast %992 : vector<1x8x128xf32> to vector<8x128xf32>
    %994 = arith.mulf %714, %993 : vector<8x128xf32>
    %995 = arith.addf %987, %994 : vector<8x128xf32>
    %c84 = arith.constant 84 : index
    %c0_508 = arith.constant 0 : index
    %c0_509 = arith.constant 0 : index
    %996 = vector.load %arg5[%c84, %c0_508, %c0_509] : memref<135x8x128xf32, #tpu.memory_space<vmem>>, vector<1x8x128xf32>
    %997 = vector.shape_cast %996 : vector<1x8x128xf32> to vector<8x128xf32>
    %998 = arith.mulf %651, %997 : vector<8x128xf32>
    %999 = arith.addf %991, %998 : vector<8x128xf32>
    %c102 = arith.constant 102 : index
    %c0_510 = arith.constant 0 : index
    %c0_511 = arith.constant 0 : index
    %1000 = vector.load %arg5[%c102, %c0_510, %c0_511] : memref<135x8x128xf32, #tpu.memory_space<vmem>>, vector<1x8x128xf32>
    %1001 = vector.shape_cast %1000 : vector<1x8x128xf32> to vector<8x128xf32>
    %1002 = arith.mulf %717, %1001 : vector<8x128xf32>
    %1003 = arith.addf %995, %1002 : vector<8x128xf32>
    %c85 = arith.constant 85 : index
    %c0_512 = arith.constant 0 : index
    %c0_513 = arith.constant 0 : index
    %1004 = vector.load %arg5[%c85, %c0_512, %c0_513] : memref<135x8x128xf32, #tpu.memory_space<vmem>>, vector<1x8x128xf32>
    %1005 = vector.shape_cast %1004 : vector<1x8x128xf32> to vector<8x128xf32>
    %1006 = arith.mulf %614, %1005 : vector<8x128xf32>
    %1007 = arith.addf %999, %1006 : vector<8x128xf32>
    %c103 = arith.constant 103 : index
    %c0_514 = arith.constant 0 : index
    %c0_515 = arith.constant 0 : index
    %1008 = vector.load %arg5[%c103, %c0_514, %c0_515] : memref<135x8x128xf32, #tpu.memory_space<vmem>>, vector<1x8x128xf32>
    %1009 = vector.shape_cast %1008 : vector<1x8x128xf32> to vector<8x128xf32>
    %1010 = arith.mulf %614, %1009 : vector<8x128xf32>
    %1011 = arith.addf %1003, %1010 : vector<8x128xf32>
    %c86 = arith.constant 86 : index
    %c0_516 = arith.constant 0 : index
    %c0_517 = arith.constant 0 : index
    %1012 = vector.load %arg5[%c86, %c0_516, %c0_517] : memref<135x8x128xf32, #tpu.memory_space<vmem>>, vector<1x8x128xf32>
    %1013 = vector.shape_cast %1012 : vector<1x8x128xf32> to vector<8x128xf32>
    %1014 = arith.mulf %667, %1013 : vector<8x128xf32>
    %1015 = arith.addf %1007, %1014 : vector<8x128xf32>
    %c104 = arith.constant 104 : index
    %c0_518 = arith.constant 0 : index
    %c0_519 = arith.constant 0 : index
    %1016 = vector.load %arg5[%c104, %c0_518, %c0_519] : memref<135x8x128xf32, #tpu.memory_space<vmem>>, vector<1x8x128xf32>
    %1017 = vector.shape_cast %1016 : vector<1x8x128xf32> to vector<8x128xf32>
    %1018 = arith.mulf %720, %1017 : vector<8x128xf32>
    %1019 = arith.addf %1011, %1018 : vector<8x128xf32>
    %c87 = arith.constant 87 : index
    %c0_520 = arith.constant 0 : index
    %c0_521 = arith.constant 0 : index
    %1020 = vector.load %arg5[%c87, %c0_520, %c0_521] : memref<135x8x128xf32, #tpu.memory_space<vmem>>, vector<1x8x128xf32>
    %1021 = vector.shape_cast %1020 : vector<1x8x128xf32> to vector<8x128xf32>
    %1022 = arith.mulf %678, %1021 : vector<8x128xf32>
    %1023 = arith.addf %1015, %1022 : vector<8x128xf32>
    %c105 = arith.constant 105 : index
    %c0_522 = arith.constant 0 : index
    %c0_523 = arith.constant 0 : index
    %1024 = vector.load %arg5[%c105, %c0_522, %c0_523] : memref<135x8x128xf32, #tpu.memory_space<vmem>>, vector<1x8x128xf32>
    %1025 = vector.shape_cast %1024 : vector<1x8x128xf32> to vector<8x128xf32>
    %1026 = arith.mulf %723, %1025 : vector<8x128xf32>
    %1027 = arith.addf %1019, %1026 : vector<8x128xf32>
    %c88 = arith.constant 88 : index
    %c0_524 = arith.constant 0 : index
    %c0_525 = arith.constant 0 : index
    %1028 = vector.load %arg5[%c88, %c0_524, %c0_525] : memref<135x8x128xf32, #tpu.memory_space<vmem>>, vector<1x8x128xf32>
    %1029 = vector.shape_cast %1028 : vector<1x8x128xf32> to vector<8x128xf32>
    %1030 = arith.mulf %689, %1029 : vector<8x128xf32>
    %1031 = arith.addf %1023, %1030 : vector<8x128xf32>
    %c106 = arith.constant 106 : index
    %c0_526 = arith.constant 0 : index
    %c0_527 = arith.constant 0 : index
    %1032 = vector.load %arg5[%c106, %c0_526, %c0_527] : memref<135x8x128xf32, #tpu.memory_space<vmem>>, vector<1x8x128xf32>
    %1033 = vector.shape_cast %1032 : vector<1x8x128xf32> to vector<8x128xf32>
    %1034 = arith.mulf %726, %1033 : vector<8x128xf32>
    %1035 = arith.addf %1027, %1034 : vector<8x128xf32>
    %c89 = arith.constant 89 : index
    %c0_528 = arith.constant 0 : index
    %c0_529 = arith.constant 0 : index
    %1036 = vector.load %arg5[%c89, %c0_528, %c0_529] : memref<135x8x128xf32, #tpu.memory_space<vmem>>, vector<1x8x128xf32>
    %1037 = vector.shape_cast %1036 : vector<1x8x128xf32> to vector<8x128xf32>
    %1038 = arith.mulf %700, %1037 : vector<8x128xf32>
    %1039 = arith.addf %1031, %1038 : vector<8x128xf32>
    %c107 = arith.constant 107 : index
    %c0_530 = arith.constant 0 : index
    %c0_531 = arith.constant 0 : index
    %1040 = vector.load %arg5[%c107, %c0_530, %c0_531] : memref<135x8x128xf32, #tpu.memory_space<vmem>>, vector<1x8x128xf32>
    %1041 = vector.shape_cast %1040 : vector<1x8x128xf32> to vector<8x128xf32>
    %1042 = arith.mulf %729, %1041 : vector<8x128xf32>
    %1043 = arith.addf %1035, %1042 : vector<8x128xf32>
    %c3_532 = arith.constant 3 : index
    %c0_533 = arith.constant 0 : index
    %c0_534 = arith.constant 0 : index
    %1044 = vector.load %arg6[%c3_532, %c0_533, %c0_534] : memref<5x16x16xf32, #tpu.memory_space<vmem>>, vector<1x16x16xf32>
    %1045 = vector.shape_cast %1044 : vector<1x16x16xf32> to vector<16x16xf32>
    %1046 = tpu.concatenate %1039, %1043 in 0 : vector<8x128xf32>, vector<8x128xf32> -> vector<16x128xf32>
    %cst_535 = arith.constant dense<0.000000e+00> : vector<16x128xf32>
    %1047 = tpu.matmul %1045, %1046, %cst_535 {dimension_numbers = #tpu.dot_dimension_numbers<[1], [0], [0], [1], [0, 0, 1, 1], [], []>} : vector<16x16xf32>, vector<16x128xf32>, vector<16x128xf32> -> vector<16x128xf32>
    %1048 = vector.extract_strided_slice %1047 {offsets = [0, 0], sizes = [8, 128], strides = [1, 1]} : vector<16x128xf32> to vector<8x128xf32>
    %cst_536 = arith.constant dense<0.000000e+00> : vector<8xf32>
    %1049 = vector.multi_reduction <add>, %1048, %cst_536 [1] : vector<8x128xf32> to vector<8xf32>
    %1050 = vector.shape_cast %1049 : vector<8xf32> to vector<8x1xf32>
    %cst_537 = arith.constant 1.280000e+02 : f32
    %1051 = vector.broadcast %cst_537 : f32 to vector<8x1xf32>
    %1052 = arith.divf %1050, %1051 : vector<8x1xf32>
    %1053 = arith.mulf %1048, %1048 : vector<8x128xf32>
    %cst_538 = arith.constant dense<0.000000e+00> : vector<8xf32>
    %1054 = vector.multi_reduction <add>, %1053, %cst_538 [1] : vector<8x128xf32> to vector<8xf32>
    %1055 = vector.shape_cast %1054 : vector<8xf32> to vector<8x1xf32>
    %cst_539 = arith.constant 1.280000e+02 : f32
    %1056 = vector.broadcast %cst_539 : f32 to vector<8x1xf32>
    %1057 = arith.divf %1055, %1056 : vector<8x1xf32>
    %1058 = arith.mulf %1052, %1052 : vector<8x1xf32>
    %1059 = arith.subf %1057, %1058 : vector<8x1xf32>
    %cst_540 = arith.constant 0.000000e+00 : f32
    %1060 = vector.broadcast %cst_540 : f32 to vector<8x1xf32>
    %1061 = arith.maximumf %1059, %1060 : vector<8x1xf32>
    %cst_541 = arith.constant 9.99999974E-6 : f32
    %1062 = vector.broadcast %cst_541 : f32 to vector<8x1xf32>
    %1063 = arith.addf %1061, %1062 : vector<8x1xf32>
    %1064 = math.rsqrt %1063 : vector<8x1xf32>
    %1065 = vector.broadcast %1052 : vector<8x1xf32> to vector<8x128xf32>
    %1066 = arith.subf %1048, %1065 : vector<8x128xf32>
    %1067 = vector.broadcast %1064 : vector<8x1xf32> to vector<8x128xf32>
    %1068 = arith.mulf %1066, %1067 : vector<8x128xf32>
    %1069 = vector.extract_strided_slice %1047 {offsets = [8, 0], sizes = [8, 128], strides = [1, 1]} : vector<16x128xf32> to vector<8x128xf32>
    %c3_542 = arith.constant 3 : index
    %c5_543 = arith.constant 5 : index
    %1070 = memref.load %arg0[%c3_542, %c5_543] : memref<5x6xf32, #tpu.memory_space<smem>>
    %cst_544 = arith.constant dense<0.000000e+00> : vector<8xf32>
    %1071 = vector.multi_reduction <add>, %1069, %cst_544 [1] : vector<8x128xf32> to vector<8xf32>
    %1072 = vector.shape_cast %1071 : vector<8xf32> to vector<8x1xf32>
    %cst_545 = arith.constant 1.280000e+02 : f32
    %1073 = vector.broadcast %cst_545 : f32 to vector<8x1xf32>
    %1074 = arith.divf %1072, %1073 : vector<8x1xf32>
    %1075 = arith.mulf %1069, %1069 : vector<8x128xf32>
    %cst_546 = arith.constant dense<0.000000e+00> : vector<8xf32>
    %1076 = vector.multi_reduction <add>, %1075, %cst_546 [1] : vector<8x128xf32> to vector<8xf32>
    %1077 = vector.shape_cast %1076 : vector<8xf32> to vector<8x1xf32>
    %cst_547 = arith.constant 1.280000e+02 : f32
    %1078 = vector.broadcast %cst_547 : f32 to vector<8x1xf32>
    %1079 = arith.divf %1077, %1078 : vector<8x1xf32>
    %1080 = arith.mulf %1074, %1074 : vector<8x1xf32>
    %1081 = arith.subf %1079, %1080 : vector<8x1xf32>
    %cst_548 = arith.constant 0.000000e+00 : f32
    %1082 = vector.broadcast %cst_548 : f32 to vector<8x1xf32>
    %1083 = arith.maximumf %1081, %1082 : vector<8x1xf32>
    %cst_549 = arith.constant 9.99999974E-6 : f32
    %1084 = vector.broadcast %cst_549 : f32 to vector<8x1xf32>
    %1085 = arith.addf %1083, %1084 : vector<8x1xf32>
    %1086 = math.rsqrt %1085 : vector<8x1xf32>
    %1087 = vector.broadcast %1070 : f32 to vector<8x1xf32>
    %1088 = arith.mulf %1086, %1087 : vector<8x1xf32>
    %1089 = vector.broadcast %1074 : vector<8x1xf32> to vector<8x128xf32>
    %1090 = arith.subf %1069, %1089 : vector<8x128xf32>
    %1091 = vector.broadcast %1088 : vector<8x1xf32> to vector<8x128xf32>
    %1092 = arith.mulf %1090, %1091 : vector<8x128xf32>
    %cst_550 = arith.constant 0.000000e+00 : f32
    %1093 = vector.broadcast %cst_550 : f32 to vector<8x128xf32>
    %1094 = arith.maximumf %1068, %1093 : vector<8x128xf32>
    %c9_i32_551 = arith.constant 9 : i32
    %1095 = tpu.dynamic_rotate %1094 by %c9_i32_551 dim 1 : vector<8x128xf32>, i32 -> vector<8x128xf32>
    %c90 = arith.constant 90 : index
    %c0_552 = arith.constant 0 : index
    %c0_553 = arith.constant 0 : index
    %1096 = vector.load %arg5[%c90, %c0_552, %c0_553] : memref<135x8x128xf32, #tpu.memory_space<vmem>>, vector<1x8x128xf32>
    %1097 = vector.shape_cast %1096 : vector<1x8x128xf32> to vector<8x128xf32>
    %1098 = arith.mulf %1095, %1097 : vector<8x128xf32>
    %c8_i32_554 = arith.constant 8 : i32
    %1099 = tpu.dynamic_rotate %1094 by %c8_i32_554 dim 1 : vector<8x128xf32>, i32 -> vector<8x128xf32>
    %c91 = arith.constant 91 : index
    %c0_555 = arith.constant 0 : index
    %c0_556 = arith.constant 0 : index
    %1100 = vector.load %arg5[%c91, %c0_555, %c0_556] : memref<135x8x128xf32, #tpu.memory_space<vmem>>, vector<1x8x128xf32>
    %1101 = vector.shape_cast %1100 : vector<1x8x128xf32> to vector<8x128xf32>
    %1102 = arith.mulf %1099, %1101 : vector<8x128xf32>
    %1103 = arith.addf %1098, %1102 : vector<8x128xf32>
    %c7_i32_557 = arith.constant 7 : i32
    %1104 = tpu.dynamic_rotate %1094 by %c7_i32_557 dim 1 : vector<8x128xf32>, i32 -> vector<8x128xf32>
    %c92 = arith.constant 92 : index
    %c0_558 = arith.constant 0 : index
    %c0_559 = arith.constant 0 : index
    %1105 = vector.load %arg5[%c92, %c0_558, %c0_559] : memref<135x8x128xf32, #tpu.memory_space<vmem>>, vector<1x8x128xf32>
    %1106 = vector.shape_cast %1105 : vector<1x8x128xf32> to vector<8x128xf32>
    %1107 = arith.mulf %1104, %1106 : vector<8x128xf32>
    %1108 = arith.addf %1103, %1107 : vector<8x128xf32>
    %c1_i32_560 = arith.constant 1 : i32
    %1109 = tpu.dynamic_rotate %1094 by %c1_i32_560 dim 1 : vector<8x128xf32>, i32 -> vector<8x128xf32>
    %c93 = arith.constant 93 : index
    %c0_561 = arith.constant 0 : index
    %c0_562 = arith.constant 0 : index
    %1110 = vector.load %arg5[%c93, %c0_561, %c0_562] : memref<135x8x128xf32, #tpu.memory_space<vmem>>, vector<1x8x128xf32>
    %1111 = vector.shape_cast %1110 : vector<1x8x128xf32> to vector<8x128xf32>
    %1112 = arith.mulf %1109, %1111 : vector<8x128xf32>
    %1113 = arith.addf %1108, %1112 : vector<8x128xf32>
    %c94 = arith.constant 94 : index
    %c0_563 = arith.constant 0 : index
    %c0_564 = arith.constant 0 : index
    %1114 = vector.load %arg5[%c94, %c0_563, %c0_564] : memref<135x8x128xf32, #tpu.memory_space<vmem>>, vector<1x8x128xf32>
    %1115 = vector.shape_cast %1114 : vector<1x8x128xf32> to vector<8x128xf32>
    %1116 = arith.mulf %1094, %1115 : vector<8x128xf32>
    %1117 = arith.addf %1113, %1116 : vector<8x128xf32>
    %c127_i32_565 = arith.constant 127 : i32
    %1118 = tpu.dynamic_rotate %1094 by %c127_i32_565 dim 1 : vector<8x128xf32>, i32 -> vector<8x128xf32>
    %c95 = arith.constant 95 : index
    %c0_566 = arith.constant 0 : index
    %c0_567 = arith.constant 0 : index
    %1119 = vector.load %arg5[%c95, %c0_566, %c0_567] : memref<135x8x128xf32, #tpu.memory_space<vmem>>, vector<1x8x128xf32>
    %1120 = vector.shape_cast %1119 : vector<1x8x128xf32> to vector<8x128xf32>
    %1121 = arith.mulf %1118, %1120 : vector<8x128xf32>
    %1122 = arith.addf %1117, %1121 : vector<8x128xf32>
    %c121_i32_568 = arith.constant 121 : i32
    %1123 = tpu.dynamic_rotate %1094 by %c121_i32_568 dim 1 : vector<8x128xf32>, i32 -> vector<8x128xf32>
    %c96 = arith.constant 96 : index
    %c0_569 = arith.constant 0 : index
    %c0_570 = arith.constant 0 : index
    %1124 = vector.load %arg5[%c96, %c0_569, %c0_570] : memref<135x8x128xf32, #tpu.memory_space<vmem>>, vector<1x8x128xf32>
    %1125 = vector.shape_cast %1124 : vector<1x8x128xf32> to vector<8x128xf32>
    %1126 = arith.mulf %1123, %1125 : vector<8x128xf32>
    %1127 = arith.addf %1122, %1126 : vector<8x128xf32>
    %c120_i32_571 = arith.constant 120 : i32
    %1128 = tpu.dynamic_rotate %1094 by %c120_i32_571 dim 1 : vector<8x128xf32>, i32 -> vector<8x128xf32>
    %c97 = arith.constant 97 : index
    %c0_572 = arith.constant 0 : index
    %c0_573 = arith.constant 0 : index
    %1129 = vector.load %arg5[%c97, %c0_572, %c0_573] : memref<135x8x128xf32, #tpu.memory_space<vmem>>, vector<1x8x128xf32>
    %1130 = vector.shape_cast %1129 : vector<1x8x128xf32> to vector<8x128xf32>
    %1131 = arith.mulf %1128, %1130 : vector<8x128xf32>
    %1132 = arith.addf %1127, %1131 : vector<8x128xf32>
    %c119_i32_574 = arith.constant 119 : i32
    %1133 = tpu.dynamic_rotate %1094 by %c119_i32_574 dim 1 : vector<8x128xf32>, i32 -> vector<8x128xf32>
    %c98 = arith.constant 98 : index
    %c0_575 = arith.constant 0 : index
    %c0_576 = arith.constant 0 : index
    %1134 = vector.load %arg5[%c98, %c0_575, %c0_576] : memref<135x8x128xf32, #tpu.memory_space<vmem>>, vector<1x8x128xf32>
    %1135 = vector.shape_cast %1134 : vector<1x8x128xf32> to vector<8x128xf32>
    %1136 = arith.mulf %1133, %1135 : vector<8x128xf32>
    %1137 = arith.addf %1132, %1136 : vector<8x128xf32>
    %c3_577 = arith.constant 3 : index
    %c0_578 = arith.constant 0 : index
    %c0_579 = arith.constant 0 : index
    %1138 = vector.load %arg7[%c3_577, %c0_578, %c0_579] : memref<5x8x8xf32, #tpu.memory_space<vmem>>, vector<1x8x8xf32>
    %1139 = vector.shape_cast %1138 : vector<1x8x8xf32> to vector<8x8xf32>
    %c3_580 = arith.constant 3 : index
    %c4_581 = arith.constant 4 : index
    %1140 = memref.load %arg0[%c3_580, %c4_581] : memref<5x6xf32, #tpu.memory_space<smem>>
    %cst_582 = arith.constant dense<0.000000e+00> : vector<8x128xf32>
    %1141 = tpu.matmul %1139, %1137, %cst_582 {dimension_numbers = #tpu.dot_dimension_numbers<[1], [0], [0], [1], [0, 0, 1, 1], [], []>} : vector<8x8xf32>, vector<8x128xf32>, vector<8x128xf32> -> vector<8x128xf32>
    %cst_583 = arith.constant dense<0.000000e+00> : vector<8xf32>
    %1142 = vector.multi_reduction <add>, %1141, %cst_583 [1] : vector<8x128xf32> to vector<8xf32>
    %1143 = vector.shape_cast %1142 : vector<8xf32> to vector<8x1xf32>
    %cst_584 = arith.constant 1.280000e+02 : f32
    %1144 = vector.broadcast %cst_584 : f32 to vector<8x1xf32>
    %1145 = arith.divf %1143, %1144 : vector<8x1xf32>
    %1146 = arith.mulf %1141, %1141 : vector<8x128xf32>
    %cst_585 = arith.constant dense<0.000000e+00> : vector<8xf32>
    %1147 = vector.multi_reduction <add>, %1146, %cst_585 [1] : vector<8x128xf32> to vector<8xf32>
    %1148 = vector.shape_cast %1147 : vector<8xf32> to vector<8x1xf32>
    %cst_586 = arith.constant 1.280000e+02 : f32
    %1149 = vector.broadcast %cst_586 : f32 to vector<8x1xf32>
    %1150 = arith.divf %1148, %1149 : vector<8x1xf32>
    %1151 = arith.mulf %1145, %1145 : vector<8x1xf32>
    %1152 = arith.subf %1150, %1151 : vector<8x1xf32>
    %cst_587 = arith.constant 0.000000e+00 : f32
    %1153 = vector.broadcast %cst_587 : f32 to vector<8x1xf32>
    %1154 = arith.maximumf %1152, %1153 : vector<8x1xf32>
    %cst_588 = arith.constant 9.99999974E-6 : f32
    %1155 = vector.broadcast %cst_588 : f32 to vector<8x1xf32>
    %1156 = arith.addf %1154, %1155 : vector<8x1xf32>
    %1157 = math.rsqrt %1156 : vector<8x1xf32>
    %1158 = vector.broadcast %1140 : f32 to vector<8x1xf32>
    %1159 = arith.mulf %1157, %1158 : vector<8x1xf32>
    %1160 = vector.broadcast %1145 : vector<8x1xf32> to vector<8x128xf32>
    %1161 = arith.subf %1141, %1160 : vector<8x128xf32>
    %1162 = vector.broadcast %1159 : vector<8x1xf32> to vector<8x128xf32>
    %1163 = arith.mulf %1161, %1162 : vector<8x128xf32>
    %c3_589 = arith.constant 3 : index
    %c1_590 = arith.constant 1 : index
    %1164 = memref.load %arg0[%c3_589, %c1_590] : memref<5x6xf32, #tpu.memory_space<smem>>
    %1165 = vector.broadcast %1164 : f32 to vector<8x128xf32>
    %1166 = arith.mulf %1165, %749 : vector<8x128xf32>
    %c3_591 = arith.constant 3 : index
    %c2_592 = arith.constant 2 : index
    %1167 = memref.load %arg0[%c3_591, %c2_592] : memref<5x6xf32, #tpu.memory_space<smem>>
    %1168 = vector.broadcast %1167 : f32 to vector<8x128xf32>
    %1169 = arith.mulf %1168, %769 : vector<8x128xf32>
    %1170 = arith.addf %1166, %1169 : vector<8x128xf32>
    %c3_593 = arith.constant 3 : index
    %c3_594 = arith.constant 3 : index
    %1171 = memref.load %arg0[%c3_593, %c3_594] : memref<5x6xf32, #tpu.memory_space<smem>>
    %1172 = vector.broadcast %1171 : f32 to vector<8x128xf32>
    %1173 = arith.mulf %1172, %49 : vector<8x128xf32>
    %1174 = arith.addf %1170, %1173 : vector<8x128xf32>
    %1175 = arith.addf %1174, %1163 : vector<8x128xf32>
    %1176 = arith.addf %1175, %1092 : vector<8x128xf32>
    %1177 = arith.addf %612, %1176 : vector<8x128xf32>
    %cst_595 = arith.constant 0.000000e+00 : f32
    %1178 = vector.broadcast %cst_595 : f32 to vector<8x128xf32>
    %1179 = arith.maximumf %973, %1178 : vector<8x128xf32>
    %c9_i32_596 = arith.constant 9 : i32
    %1180 = tpu.dynamic_rotate %973 by %c9_i32_596 dim 1 : vector<8x128xf32>, i32 -> vector<8x128xf32>
    %c0_597 = arith.constant 0 : index
    %c0_598 = arith.constant 0 : index
    %c0_599 = arith.constant 0 : index
    %1181 = vector.load %arg9[%c0_597, %c0_598, %c0_599] : memref<9x8x128xf32, #tpu.memory_space<vmem>>, vector<1x8x128xf32>
    %1182 = vector.shape_cast %1181 : vector<1x8x128xf32> to vector<8x128xf32>
    %1183 = arith.addf %1180, %1182 : vector<8x128xf32>
    %cst_600 = arith.constant 0.000000e+00 : f32
    %1184 = vector.broadcast %cst_600 : f32 to vector<8x128xf32>
    %1185 = arith.maximumf %1180, %1184 : vector<8x128xf32>
    %c0_601 = arith.constant 0 : index
    %c0_602 = arith.constant 0 : index
    %c0_603 = arith.constant 0 : index
    %1186 = vector.load %arg8[%c0_601, %c0_602, %c0_603] : memref<9x8x128xf32, #tpu.memory_space<vmem>>, vector<1x8x128xf32>
    %1187 = vector.shape_cast %1186 : vector<1x8x128xf32> to vector<8x128xf32>
    %1188 = arith.mulf %1180, %1187 : vector<8x128xf32>
    %c8_i32_604 = arith.constant 8 : i32
    %1189 = tpu.dynamic_rotate %973 by %c8_i32_604 dim 1 : vector<8x128xf32>, i32 -> vector<8x128xf32>
    %c1_605 = arith.constant 1 : index
    %c0_606 = arith.constant 0 : index
    %c0_607 = arith.constant 0 : index
    %1190 = vector.load %arg9[%c1_605, %c0_606, %c0_607] : memref<9x8x128xf32, #tpu.memory_space<vmem>>, vector<1x8x128xf32>
    %1191 = vector.shape_cast %1190 : vector<1x8x128xf32> to vector<8x128xf32>
    %1192 = arith.addf %1189, %1191 : vector<8x128xf32>
    %cst_608 = arith.constant 0.000000e+00 : f32
    %1193 = vector.broadcast %cst_608 : f32 to vector<8x128xf32>
    %1194 = arith.maximumf %1189, %1193 : vector<8x128xf32>
    %c1_609 = arith.constant 1 : index
    %c0_610 = arith.constant 0 : index
    %c0_611 = arith.constant 0 : index
    %1195 = vector.load %arg8[%c1_609, %c0_610, %c0_611] : memref<9x8x128xf32, #tpu.memory_space<vmem>>, vector<1x8x128xf32>
    %1196 = vector.shape_cast %1195 : vector<1x8x128xf32> to vector<8x128xf32>
    %1197 = arith.mulf %1189, %1196 : vector<8x128xf32>
    %1198 = arith.maximumf %1183, %1192 : vector<8x128xf32>
    %1199 = arith.addf %1188, %1197 : vector<8x128xf32>
    %c7_i32_612 = arith.constant 7 : i32
    %1200 = tpu.dynamic_rotate %973 by %c7_i32_612 dim 1 : vector<8x128xf32>, i32 -> vector<8x128xf32>
    %c2_613 = arith.constant 2 : index
    %c0_614 = arith.constant 0 : index
    %c0_615 = arith.constant 0 : index
    %1201 = vector.load %arg9[%c2_613, %c0_614, %c0_615] : memref<9x8x128xf32, #tpu.memory_space<vmem>>, vector<1x8x128xf32>
    %1202 = vector.shape_cast %1201 : vector<1x8x128xf32> to vector<8x128xf32>
    %1203 = arith.addf %1200, %1202 : vector<8x128xf32>
    %cst_616 = arith.constant 0.000000e+00 : f32
    %1204 = vector.broadcast %cst_616 : f32 to vector<8x128xf32>
    %1205 = arith.maximumf %1200, %1204 : vector<8x128xf32>
    %c2_617 = arith.constant 2 : index
    %c0_618 = arith.constant 0 : index
    %c0_619 = arith.constant 0 : index
    %1206 = vector.load %arg8[%c2_617, %c0_618, %c0_619] : memref<9x8x128xf32, #tpu.memory_space<vmem>>, vector<1x8x128xf32>
    %1207 = vector.shape_cast %1206 : vector<1x8x128xf32> to vector<8x128xf32>
    %1208 = arith.mulf %1200, %1207 : vector<8x128xf32>
    %1209 = arith.maximumf %1198, %1203 : vector<8x128xf32>
    %1210 = arith.addf %1199, %1208 : vector<8x128xf32>
    %c1_i32_620 = arith.constant 1 : i32
    %1211 = tpu.dynamic_rotate %973 by %c1_i32_620 dim 1 : vector<8x128xf32>, i32 -> vector<8x128xf32>
    %c3_621 = arith.constant 3 : index
    %c0_622 = arith.constant 0 : index
    %c0_623 = arith.constant 0 : index
    %1212 = vector.load %arg9[%c3_621, %c0_622, %c0_623] : memref<9x8x128xf32, #tpu.memory_space<vmem>>, vector<1x8x128xf32>
    %1213 = vector.shape_cast %1212 : vector<1x8x128xf32> to vector<8x128xf32>
    %1214 = arith.addf %1211, %1213 : vector<8x128xf32>
    %cst_624 = arith.constant 0.000000e+00 : f32
    %1215 = vector.broadcast %cst_624 : f32 to vector<8x128xf32>
    %1216 = arith.maximumf %1211, %1215 : vector<8x128xf32>
    %c3_625 = arith.constant 3 : index
    %c0_626 = arith.constant 0 : index
    %c0_627 = arith.constant 0 : index
    %1217 = vector.load %arg8[%c3_625, %c0_626, %c0_627] : memref<9x8x128xf32, #tpu.memory_space<vmem>>, vector<1x8x128xf32>
    %1218 = vector.shape_cast %1217 : vector<1x8x128xf32> to vector<8x128xf32>
    %1219 = arith.mulf %1211, %1218 : vector<8x128xf32>
    %1220 = arith.maximumf %1209, %1214 : vector<8x128xf32>
    %1221 = arith.addf %1210, %1219 : vector<8x128xf32>
    %c4_628 = arith.constant 4 : index
    %c0_629 = arith.constant 0 : index
    %c0_630 = arith.constant 0 : index
    %1222 = vector.load %arg8[%c4_628, %c0_629, %c0_630] : memref<9x8x128xf32, #tpu.memory_space<vmem>>, vector<1x8x128xf32>
    %1223 = vector.shape_cast %1222 : vector<1x8x128xf32> to vector<8x128xf32>
    %1224 = arith.mulf %973, %1223 : vector<8x128xf32>
    %1225 = arith.maximumf %1220, %973 : vector<8x128xf32>
    %1226 = arith.addf %1221, %1224 : vector<8x128xf32>
    %c127_i32_631 = arith.constant 127 : i32
    %1227 = tpu.dynamic_rotate %973 by %c127_i32_631 dim 1 : vector<8x128xf32>, i32 -> vector<8x128xf32>
    %c5_632 = arith.constant 5 : index
    %c0_633 = arith.constant 0 : index
    %c0_634 = arith.constant 0 : index
    %1228 = vector.load %arg9[%c5_632, %c0_633, %c0_634] : memref<9x8x128xf32, #tpu.memory_space<vmem>>, vector<1x8x128xf32>
    %1229 = vector.shape_cast %1228 : vector<1x8x128xf32> to vector<8x128xf32>
    %1230 = arith.addf %1227, %1229 : vector<8x128xf32>
    %cst_635 = arith.constant 0.000000e+00 : f32
    %1231 = vector.broadcast %cst_635 : f32 to vector<8x128xf32>
    %1232 = arith.maximumf %1227, %1231 : vector<8x128xf32>
    %c5_636 = arith.constant 5 : index
    %c0_637 = arith.constant 0 : index
    %c0_638 = arith.constant 0 : index
    %1233 = vector.load %arg8[%c5_636, %c0_637, %c0_638] : memref<9x8x128xf32, #tpu.memory_space<vmem>>, vector<1x8x128xf32>
    %1234 = vector.shape_cast %1233 : vector<1x8x128xf32> to vector<8x128xf32>
    %1235 = arith.mulf %1227, %1234 : vector<8x128xf32>
    %1236 = arith.maximumf %1225, %1230 : vector<8x128xf32>
    %1237 = arith.addf %1226, %1235 : vector<8x128xf32>
    %c121_i32_639 = arith.constant 121 : i32
    %1238 = tpu.dynamic_rotate %973 by %c121_i32_639 dim 1 : vector<8x128xf32>, i32 -> vector<8x128xf32>
    %c6_640 = arith.constant 6 : index
    %c0_641 = arith.constant 0 : index
    %c0_642 = arith.constant 0 : index
    %1239 = vector.load %arg9[%c6_640, %c0_641, %c0_642] : memref<9x8x128xf32, #tpu.memory_space<vmem>>, vector<1x8x128xf32>
    %1240 = vector.shape_cast %1239 : vector<1x8x128xf32> to vector<8x128xf32>
    %1241 = arith.addf %1238, %1240 : vector<8x128xf32>
    %cst_643 = arith.constant 0.000000e+00 : f32
    %1242 = vector.broadcast %cst_643 : f32 to vector<8x128xf32>
    %1243 = arith.maximumf %1238, %1242 : vector<8x128xf32>
    %c6_644 = arith.constant 6 : index
    %c0_645 = arith.constant 0 : index
    %c0_646 = arith.constant 0 : index
    %1244 = vector.load %arg8[%c6_644, %c0_645, %c0_646] : memref<9x8x128xf32, #tpu.memory_space<vmem>>, vector<1x8x128xf32>
    %1245 = vector.shape_cast %1244 : vector<1x8x128xf32> to vector<8x128xf32>
    %1246 = arith.mulf %1238, %1245 : vector<8x128xf32>
    %1247 = arith.maximumf %1236, %1241 : vector<8x128xf32>
    %1248 = arith.addf %1237, %1246 : vector<8x128xf32>
    %c120_i32_647 = arith.constant 120 : i32
    %1249 = tpu.dynamic_rotate %973 by %c120_i32_647 dim 1 : vector<8x128xf32>, i32 -> vector<8x128xf32>
    %c7_648 = arith.constant 7 : index
    %c0_649 = arith.constant 0 : index
    %c0_650 = arith.constant 0 : index
    %1250 = vector.load %arg9[%c7_648, %c0_649, %c0_650] : memref<9x8x128xf32, #tpu.memory_space<vmem>>, vector<1x8x128xf32>
    %1251 = vector.shape_cast %1250 : vector<1x8x128xf32> to vector<8x128xf32>
    %1252 = arith.addf %1249, %1251 : vector<8x128xf32>
    %cst_651 = arith.constant 0.000000e+00 : f32
    %1253 = vector.broadcast %cst_651 : f32 to vector<8x128xf32>
    %1254 = arith.maximumf %1249, %1253 : vector<8x128xf32>
    %c7_652 = arith.constant 7 : index
    %c0_653 = arith.constant 0 : index
    %c0_654 = arith.constant 0 : index
    %1255 = vector.load %arg8[%c7_652, %c0_653, %c0_654] : memref<9x8x128xf32, #tpu.memory_space<vmem>>, vector<1x8x128xf32>
    %1256 = vector.shape_cast %1255 : vector<1x8x128xf32> to vector<8x128xf32>
    %1257 = arith.mulf %1249, %1256 : vector<8x128xf32>
    %1258 = arith.maximumf %1247, %1252 : vector<8x128xf32>
    %1259 = arith.addf %1248, %1257 : vector<8x128xf32>
    %c119_i32_655 = arith.constant 119 : i32
    %1260 = tpu.dynamic_rotate %973 by %c119_i32_655 dim 1 : vector<8x128xf32>, i32 -> vector<8x128xf32>
    %c8_656 = arith.constant 8 : index
    %c0_657 = arith.constant 0 : index
    %c0_658 = arith.constant 0 : index
    %1261 = vector.load %arg9[%c8_656, %c0_657, %c0_658] : memref<9x8x128xf32, #tpu.memory_space<vmem>>, vector<1x8x128xf32>
    %1262 = vector.shape_cast %1261 : vector<1x8x128xf32> to vector<8x128xf32>
    %1263 = arith.addf %1260, %1262 : vector<8x128xf32>
    %cst_659 = arith.constant 0.000000e+00 : f32
    %1264 = vector.broadcast %cst_659 : f32 to vector<8x128xf32>
    %1265 = arith.maximumf %1260, %1264 : vector<8x128xf32>
    %c8_660 = arith.constant 8 : index
    %c0_661 = arith.constant 0 : index
    %c0_662 = arith.constant 0 : index
    %1266 = vector.load %arg8[%c8_660, %c0_661, %c0_662] : memref<9x8x128xf32, #tpu.memory_space<vmem>>, vector<1x8x128xf32>
    %1267 = vector.shape_cast %1266 : vector<1x8x128xf32> to vector<8x128xf32>
    %1268 = arith.mulf %1260, %1267 : vector<8x128xf32>
    %1269 = arith.maximumf %1258, %1263 : vector<8x128xf32>
    %1270 = arith.addf %1259, %1268 : vector<8x128xf32>
    %c18_i32_663 = arith.constant 18 : i32
    %1271 = tpu.dynamic_rotate %973 by %c18_i32_663 dim 1 : vector<8x128xf32>, i32 -> vector<8x128xf32>
    %cst_664 = arith.constant 0.000000e+00 : f32
    %1272 = vector.broadcast %cst_664 : f32 to vector<8x128xf32>
    %1273 = arith.maximumf %1271, %1272 : vector<8x128xf32>
    %c16_i32_665 = arith.constant 16 : i32
    %1274 = tpu.dynamic_rotate %973 by %c16_i32_665 dim 1 : vector<8x128xf32>, i32 -> vector<8x128xf32>
    %cst_666 = arith.constant 0.000000e+00 : f32
    %1275 = vector.broadcast %cst_666 : f32 to vector<8x128xf32>
    %1276 = arith.maximumf %1274, %1275 : vector<8x128xf32>
    %c14_i32_667 = arith.constant 14 : i32
    %1277 = tpu.dynamic_rotate %973 by %c14_i32_667 dim 1 : vector<8x128xf32>, i32 -> vector<8x128xf32>
    %cst_668 = arith.constant 0.000000e+00 : f32
    %1278 = vector.broadcast %cst_668 : f32 to vector<8x128xf32>
    %1279 = arith.maximumf %1277, %1278 : vector<8x128xf32>
    %c2_i32_669 = arith.constant 2 : i32
    %1280 = tpu.dynamic_rotate %973 by %c2_i32_669 dim 1 : vector<8x128xf32>, i32 -> vector<8x128xf32>
    %cst_670 = arith.constant 0.000000e+00 : f32
    %1281 = vector.broadcast %cst_670 : f32 to vector<8x128xf32>
    %1282 = arith.maximumf %1280, %1281 : vector<8x128xf32>
    %c126_i32_671 = arith.constant 126 : i32
    %1283 = tpu.dynamic_rotate %973 by %c126_i32_671 dim 1 : vector<8x128xf32>, i32 -> vector<8x128xf32>
    %cst_672 = arith.constant 0.000000e+00 : f32
    %1284 = vector.broadcast %cst_672 : f32 to vector<8x128xf32>
    %1285 = arith.maximumf %1283, %1284 : vector<8x128xf32>
    %c114_i32_673 = arith.constant 114 : i32
    %1286 = tpu.dynamic_rotate %973 by %c114_i32_673 dim 1 : vector<8x128xf32>, i32 -> vector<8x128xf32>
    %cst_674 = arith.constant 0.000000e+00 : f32
    %1287 = vector.broadcast %cst_674 : f32 to vector<8x128xf32>
    %1288 = arith.maximumf %1286, %1287 : vector<8x128xf32>
    %c112_i32_675 = arith.constant 112 : i32
    %1289 = tpu.dynamic_rotate %973 by %c112_i32_675 dim 1 : vector<8x128xf32>, i32 -> vector<8x128xf32>
    %cst_676 = arith.constant 0.000000e+00 : f32
    %1290 = vector.broadcast %cst_676 : f32 to vector<8x128xf32>
    %1291 = arith.maximumf %1289, %1290 : vector<8x128xf32>
    %c110_i32_677 = arith.constant 110 : i32
    %1292 = tpu.dynamic_rotate %973 by %c110_i32_677 dim 1 : vector<8x128xf32>, i32 -> vector<8x128xf32>
    %cst_678 = arith.constant 0.000000e+00 : f32
    %1293 = vector.broadcast %cst_678 : f32 to vector<8x128xf32>
    %1294 = arith.maximumf %1292, %1293 : vector<8x128xf32>
    %cst_679 = arith.constant dense<0.000000e+00> : vector<8xf32>
    %1295 = vector.multi_reduction <add>, %1269, %cst_679 [1] : vector<8x128xf32> to vector<8xf32>
    %1296 = vector.shape_cast %1295 : vector<8xf32> to vector<8x1xf32>
    %cst_680 = arith.constant 1.280000e+02 : f32
    %1297 = vector.broadcast %cst_680 : f32 to vector<8x1xf32>
    %1298 = arith.divf %1296, %1297 : vector<8x1xf32>
    %1299 = arith.mulf %1269, %1269 : vector<8x128xf32>
    %cst_681 = arith.constant dense<0.000000e+00> : vector<8xf32>
    %1300 = vector.multi_reduction <add>, %1299, %cst_681 [1] : vector<8x128xf32> to vector<8xf32>
    %1301 = vector.shape_cast %1300 : vector<8xf32> to vector<8x1xf32>
    %cst_682 = arith.constant 1.280000e+02 : f32
    %1302 = vector.broadcast %cst_682 : f32 to vector<8x1xf32>
    %1303 = arith.divf %1301, %1302 : vector<8x1xf32>
    %1304 = arith.mulf %1298, %1298 : vector<8x1xf32>
    %1305 = arith.subf %1303, %1304 : vector<8x1xf32>
    %cst_683 = arith.constant 0.000000e+00 : f32
    %1306 = vector.broadcast %cst_683 : f32 to vector<8x1xf32>
    %1307 = arith.maximumf %1305, %1306 : vector<8x1xf32>
    %cst_684 = arith.constant 9.99999974E-6 : f32
    %1308 = vector.broadcast %cst_684 : f32 to vector<8x1xf32>
    %1309 = arith.addf %1307, %1308 : vector<8x1xf32>
    %1310 = math.rsqrt %1309 : vector<8x1xf32>
    %1311 = vector.broadcast %1298 : vector<8x1xf32> to vector<8x128xf32>
    %1312 = arith.subf %1269, %1311 : vector<8x128xf32>
    %1313 = vector.broadcast %1310 : vector<8x1xf32> to vector<8x128xf32>
    %1314 = arith.mulf %1312, %1313 : vector<8x128xf32>
    %cst_685 = arith.constant dense<0.000000e+00> : vector<8xf32>
    %1315 = vector.multi_reduction <add>, %1270, %cst_685 [1] : vector<8x128xf32> to vector<8xf32>
    %1316 = vector.shape_cast %1315 : vector<8xf32> to vector<8x1xf32>
    %cst_686 = arith.constant 1.280000e+02 : f32
    %1317 = vector.broadcast %cst_686 : f32 to vector<8x1xf32>
    %1318 = arith.divf %1316, %1317 : vector<8x1xf32>
    %1319 = arith.mulf %1270, %1270 : vector<8x128xf32>
    %cst_687 = arith.constant dense<0.000000e+00> : vector<8xf32>
    %1320 = vector.multi_reduction <add>, %1319, %cst_687 [1] : vector<8x128xf32> to vector<8xf32>
    %1321 = vector.shape_cast %1320 : vector<8xf32> to vector<8x1xf32>
    %cst_688 = arith.constant 1.280000e+02 : f32
    %1322 = vector.broadcast %cst_688 : f32 to vector<8x1xf32>
    %1323 = arith.divf %1321, %1322 : vector<8x1xf32>
    %1324 = arith.mulf %1318, %1318 : vector<8x1xf32>
    %1325 = arith.subf %1323, %1324 : vector<8x1xf32>
    %cst_689 = arith.constant 0.000000e+00 : f32
    %1326 = vector.broadcast %cst_689 : f32 to vector<8x1xf32>
    %1327 = arith.maximumf %1325, %1326 : vector<8x1xf32>
    %cst_690 = arith.constant 9.99999974E-6 : f32
    %1328 = vector.broadcast %cst_690 : f32 to vector<8x1xf32>
    %1329 = arith.addf %1327, %1328 : vector<8x1xf32>
    %1330 = math.rsqrt %1329 : vector<8x1xf32>
    %1331 = vector.broadcast %1318 : vector<8x1xf32> to vector<8x128xf32>
    %1332 = arith.subf %1270, %1331 : vector<8x128xf32>
    %1333 = vector.broadcast %1330 : vector<8x1xf32> to vector<8x128xf32>
    %1334 = arith.mulf %1332, %1333 : vector<8x128xf32>
    %c108 = arith.constant 108 : index
    %c0_691 = arith.constant 0 : index
    %c0_692 = arith.constant 0 : index
    %1335 = vector.load %arg5[%c108, %c0_691, %c0_692] : memref<135x8x128xf32, #tpu.memory_space<vmem>>, vector<1x8x128xf32>
    %1336 = vector.shape_cast %1335 : vector<1x8x128xf32> to vector<8x128xf32>
    %1337 = arith.mulf %1185, %1336 : vector<8x128xf32>
    %c126 = arith.constant 126 : index
    %c0_693 = arith.constant 0 : index
    %c0_694 = arith.constant 0 : index
    %1338 = vector.load %arg5[%c126, %c0_693, %c0_694] : memref<135x8x128xf32, #tpu.memory_space<vmem>>, vector<1x8x128xf32>
    %1339 = vector.shape_cast %1338 : vector<1x8x128xf32> to vector<8x128xf32>
    %1340 = arith.mulf %1273, %1339 : vector<8x128xf32>
    %c109 = arith.constant 109 : index
    %c0_695 = arith.constant 0 : index
    %c0_696 = arith.constant 0 : index
    %1341 = vector.load %arg5[%c109, %c0_695, %c0_696] : memref<135x8x128xf32, #tpu.memory_space<vmem>>, vector<1x8x128xf32>
    %1342 = vector.shape_cast %1341 : vector<1x8x128xf32> to vector<8x128xf32>
    %1343 = arith.mulf %1194, %1342 : vector<8x128xf32>
    %1344 = arith.addf %1337, %1343 : vector<8x128xf32>
    %c127 = arith.constant 127 : index
    %c0_697 = arith.constant 0 : index
    %c0_698 = arith.constant 0 : index
    %1345 = vector.load %arg5[%c127, %c0_697, %c0_698] : memref<135x8x128xf32, #tpu.memory_space<vmem>>, vector<1x8x128xf32>
    %1346 = vector.shape_cast %1345 : vector<1x8x128xf32> to vector<8x128xf32>
    %1347 = arith.mulf %1276, %1346 : vector<8x128xf32>
    %1348 = arith.addf %1340, %1347 : vector<8x128xf32>
    %c110 = arith.constant 110 : index
    %c0_699 = arith.constant 0 : index
    %c0_700 = arith.constant 0 : index
    %1349 = vector.load %arg5[%c110, %c0_699, %c0_700] : memref<135x8x128xf32, #tpu.memory_space<vmem>>, vector<1x8x128xf32>
    %1350 = vector.shape_cast %1349 : vector<1x8x128xf32> to vector<8x128xf32>
    %1351 = arith.mulf %1205, %1350 : vector<8x128xf32>
    %1352 = arith.addf %1344, %1351 : vector<8x128xf32>
    %c128 = arith.constant 128 : index
    %c0_701 = arith.constant 0 : index
    %c0_702 = arith.constant 0 : index
    %1353 = vector.load %arg5[%c128, %c0_701, %c0_702] : memref<135x8x128xf32, #tpu.memory_space<vmem>>, vector<1x8x128xf32>
    %1354 = vector.shape_cast %1353 : vector<1x8x128xf32> to vector<8x128xf32>
    %1355 = arith.mulf %1279, %1354 : vector<8x128xf32>
    %1356 = arith.addf %1348, %1355 : vector<8x128xf32>
    %c111 = arith.constant 111 : index
    %c0_703 = arith.constant 0 : index
    %c0_704 = arith.constant 0 : index
    %1357 = vector.load %arg5[%c111, %c0_703, %c0_704] : memref<135x8x128xf32, #tpu.memory_space<vmem>>, vector<1x8x128xf32>
    %1358 = vector.shape_cast %1357 : vector<1x8x128xf32> to vector<8x128xf32>
    %1359 = arith.mulf %1216, %1358 : vector<8x128xf32>
    %1360 = arith.addf %1352, %1359 : vector<8x128xf32>
    %c129 = arith.constant 129 : index
    %c0_705 = arith.constant 0 : index
    %c0_706 = arith.constant 0 : index
    %1361 = vector.load %arg5[%c129, %c0_705, %c0_706] : memref<135x8x128xf32, #tpu.memory_space<vmem>>, vector<1x8x128xf32>
    %1362 = vector.shape_cast %1361 : vector<1x8x128xf32> to vector<8x128xf32>
    %1363 = arith.mulf %1282, %1362 : vector<8x128xf32>
    %1364 = arith.addf %1356, %1363 : vector<8x128xf32>
    %c112 = arith.constant 112 : index
    %c0_707 = arith.constant 0 : index
    %c0_708 = arith.constant 0 : index
    %1365 = vector.load %arg5[%c112, %c0_707, %c0_708] : memref<135x8x128xf32, #tpu.memory_space<vmem>>, vector<1x8x128xf32>
    %1366 = vector.shape_cast %1365 : vector<1x8x128xf32> to vector<8x128xf32>
    %1367 = arith.mulf %1179, %1366 : vector<8x128xf32>
    %1368 = arith.addf %1360, %1367 : vector<8x128xf32>
    %c130 = arith.constant 130 : index
    %c0_709 = arith.constant 0 : index
    %c0_710 = arith.constant 0 : index
    %1369 = vector.load %arg5[%c130, %c0_709, %c0_710] : memref<135x8x128xf32, #tpu.memory_space<vmem>>, vector<1x8x128xf32>
    %1370 = vector.shape_cast %1369 : vector<1x8x128xf32> to vector<8x128xf32>
    %1371 = arith.mulf %1179, %1370 : vector<8x128xf32>
    %1372 = arith.addf %1364, %1371 : vector<8x128xf32>
    %c113 = arith.constant 113 : index
    %c0_711 = arith.constant 0 : index
    %c0_712 = arith.constant 0 : index
    %1373 = vector.load %arg5[%c113, %c0_711, %c0_712] : memref<135x8x128xf32, #tpu.memory_space<vmem>>, vector<1x8x128xf32>
    %1374 = vector.shape_cast %1373 : vector<1x8x128xf32> to vector<8x128xf32>
    %1375 = arith.mulf %1232, %1374 : vector<8x128xf32>
    %1376 = arith.addf %1368, %1375 : vector<8x128xf32>
    %c131 = arith.constant 131 : index
    %c0_713 = arith.constant 0 : index
    %c0_714 = arith.constant 0 : index
    %1377 = vector.load %arg5[%c131, %c0_713, %c0_714] : memref<135x8x128xf32, #tpu.memory_space<vmem>>, vector<1x8x128xf32>
    %1378 = vector.shape_cast %1377 : vector<1x8x128xf32> to vector<8x128xf32>
    %1379 = arith.mulf %1285, %1378 : vector<8x128xf32>
    %1380 = arith.addf %1372, %1379 : vector<8x128xf32>
    %c114 = arith.constant 114 : index
    %c0_715 = arith.constant 0 : index
    %c0_716 = arith.constant 0 : index
    %1381 = vector.load %arg5[%c114, %c0_715, %c0_716] : memref<135x8x128xf32, #tpu.memory_space<vmem>>, vector<1x8x128xf32>
    %1382 = vector.shape_cast %1381 : vector<1x8x128xf32> to vector<8x128xf32>
    %1383 = arith.mulf %1243, %1382 : vector<8x128xf32>
    %1384 = arith.addf %1376, %1383 : vector<8x128xf32>
    %c132 = arith.constant 132 : index
    %c0_717 = arith.constant 0 : index
    %c0_718 = arith.constant 0 : index
    %1385 = vector.load %arg5[%c132, %c0_717, %c0_718] : memref<135x8x128xf32, #tpu.memory_space<vmem>>, vector<1x8x128xf32>
    %1386 = vector.shape_cast %1385 : vector<1x8x128xf32> to vector<8x128xf32>
    %1387 = arith.mulf %1288, %1386 : vector<8x128xf32>
    %1388 = arith.addf %1380, %1387 : vector<8x128xf32>
    %c115 = arith.constant 115 : index
    %c0_719 = arith.constant 0 : index
    %c0_720 = arith.constant 0 : index
    %1389 = vector.load %arg5[%c115, %c0_719, %c0_720] : memref<135x8x128xf32, #tpu.memory_space<vmem>>, vector<1x8x128xf32>
    %1390 = vector.shape_cast %1389 : vector<1x8x128xf32> to vector<8x128xf32>
    %1391 = arith.mulf %1254, %1390 : vector<8x128xf32>
    %1392 = arith.addf %1384, %1391 : vector<8x128xf32>
    %c133 = arith.constant 133 : index
    %c0_721 = arith.constant 0 : index
    %c0_722 = arith.constant 0 : index
    %1393 = vector.load %arg5[%c133, %c0_721, %c0_722] : memref<135x8x128xf32, #tpu.memory_space<vmem>>, vector<1x8x128xf32>
    %1394 = vector.shape_cast %1393 : vector<1x8x128xf32> to vector<8x128xf32>
    %1395 = arith.mulf %1291, %1394 : vector<8x128xf32>
    %1396 = arith.addf %1388, %1395 : vector<8x128xf32>
    %c116 = arith.constant 116 : index
    %c0_723 = arith.constant 0 : index
    %c0_724 = arith.constant 0 : index
    %1397 = vector.load %arg5[%c116, %c0_723, %c0_724] : memref<135x8x128xf32, #tpu.memory_space<vmem>>, vector<1x8x128xf32>
    %1398 = vector.shape_cast %1397 : vector<1x8x128xf32> to vector<8x128xf32>
    %1399 = arith.mulf %1265, %1398 : vector<8x128xf32>
    %1400 = arith.addf %1392, %1399 : vector<8x128xf32>
    %c134 = arith.constant 134 : index
    %c0_725 = arith.constant 0 : index
    %c0_726 = arith.constant 0 : index
    %1401 = vector.load %arg5[%c134, %c0_725, %c0_726] : memref<135x8x128xf32, #tpu.memory_space<vmem>>, vector<1x8x128xf32>
    %1402 = vector.shape_cast %1401 : vector<1x8x128xf32> to vector<8x128xf32>
    %1403 = arith.mulf %1294, %1402 : vector<8x128xf32>
    %1404 = arith.addf %1396, %1403 : vector<8x128xf32>
    %c4_727 = arith.constant 4 : index
    %c0_728 = arith.constant 0 : index
    %c0_729 = arith.constant 0 : index
    %1405 = vector.load %arg6[%c4_727, %c0_728, %c0_729] : memref<5x16x16xf32, #tpu.memory_space<vmem>>, vector<1x16x16xf32>
    %1406 = vector.shape_cast %1405 : vector<1x16x16xf32> to vector<16x16xf32>
    %1407 = tpu.concatenate %1400, %1404 in 0 : vector<8x128xf32>, vector<8x128xf32> -> vector<16x128xf32>
    %cst_730 = arith.constant dense<0.000000e+00> : vector<16x128xf32>
    %1408 = tpu.matmul %1406, %1407, %cst_730 {dimension_numbers = #tpu.dot_dimension_numbers<[1], [0], [0], [1], [0, 0, 1, 1], [], []>} : vector<16x16xf32>, vector<16x128xf32>, vector<16x128xf32> -> vector<16x128xf32>
    %1409 = vector.extract_strided_slice %1408 {offsets = [0, 0], sizes = [8, 128], strides = [1, 1]} : vector<16x128xf32> to vector<8x128xf32>
    %cst_731 = arith.constant dense<0.000000e+00> : vector<8xf32>
    %1410 = vector.multi_reduction <add>, %1409, %cst_731 [1] : vector<8x128xf32> to vector<8xf32>
    %1411 = vector.shape_cast %1410 : vector<8xf32> to vector<8x1xf32>
    %cst_732 = arith.constant 1.280000e+02 : f32
    %1412 = vector.broadcast %cst_732 : f32 to vector<8x1xf32>
    %1413 = arith.divf %1411, %1412 : vector<8x1xf32>
    %1414 = arith.mulf %1409, %1409 : vector<8x128xf32>
    %cst_733 = arith.constant dense<0.000000e+00> : vector<8xf32>
    %1415 = vector.multi_reduction <add>, %1414, %cst_733 [1] : vector<8x128xf32> to vector<8xf32>
    %1416 = vector.shape_cast %1415 : vector<8xf32> to vector<8x1xf32>
    %cst_734 = arith.constant 1.280000e+02 : f32
    %1417 = vector.broadcast %cst_734 : f32 to vector<8x1xf32>
    %1418 = arith.divf %1416, %1417 : vector<8x1xf32>
    %1419 = arith.mulf %1413, %1413 : vector<8x1xf32>
    %1420 = arith.subf %1418, %1419 : vector<8x1xf32>
    %cst_735 = arith.constant 0.000000e+00 : f32
    %1421 = vector.broadcast %cst_735 : f32 to vector<8x1xf32>
    %1422 = arith.maximumf %1420, %1421 : vector<8x1xf32>
    %cst_736 = arith.constant 9.99999974E-6 : f32
    %1423 = vector.broadcast %cst_736 : f32 to vector<8x1xf32>
    %1424 = arith.addf %1422, %1423 : vector<8x1xf32>
    %1425 = math.rsqrt %1424 : vector<8x1xf32>
    %1426 = vector.broadcast %1413 : vector<8x1xf32> to vector<8x128xf32>
    %1427 = arith.subf %1409, %1426 : vector<8x128xf32>
    %1428 = vector.broadcast %1425 : vector<8x1xf32> to vector<8x128xf32>
    %1429 = arith.mulf %1427, %1428 : vector<8x128xf32>
    %1430 = vector.extract_strided_slice %1408 {offsets = [8, 0], sizes = [8, 128], strides = [1, 1]} : vector<16x128xf32> to vector<8x128xf32>
    %c4_737 = arith.constant 4 : index
    %c5_738 = arith.constant 5 : index
    %1431 = memref.load %arg0[%c4_737, %c5_738] : memref<5x6xf32, #tpu.memory_space<smem>>
    %cst_739 = arith.constant dense<0.000000e+00> : vector<8xf32>
    %1432 = vector.multi_reduction <add>, %1430, %cst_739 [1] : vector<8x128xf32> to vector<8xf32>
    %1433 = vector.shape_cast %1432 : vector<8xf32> to vector<8x1xf32>
    %cst_740 = arith.constant 1.280000e+02 : f32
    %1434 = vector.broadcast %cst_740 : f32 to vector<8x1xf32>
    %1435 = arith.divf %1433, %1434 : vector<8x1xf32>
    %1436 = arith.mulf %1430, %1430 : vector<8x128xf32>
    %cst_741 = arith.constant dense<0.000000e+00> : vector<8xf32>
    %1437 = vector.multi_reduction <add>, %1436, %cst_741 [1] : vector<8x128xf32> to vector<8xf32>
    %1438 = vector.shape_cast %1437 : vector<8xf32> to vector<8x1xf32>
    %cst_742 = arith.constant 1.280000e+02 : f32
    %1439 = vector.broadcast %cst_742 : f32 to vector<8x1xf32>
    %1440 = arith.divf %1438, %1439 : vector<8x1xf32>
    %1441 = arith.mulf %1435, %1435 : vector<8x1xf32>
    %1442 = arith.subf %1440, %1441 : vector<8x1xf32>
    %cst_743 = arith.constant 0.000000e+00 : f32
    %1443 = vector.broadcast %cst_743 : f32 to vector<8x1xf32>
    %1444 = arith.maximumf %1442, %1443 : vector<8x1xf32>
    %cst_744 = arith.constant 9.99999974E-6 : f32
    %1445 = vector.broadcast %cst_744 : f32 to vector<8x1xf32>
    %1446 = arith.addf %1444, %1445 : vector<8x1xf32>
    %1447 = math.rsqrt %1446 : vector<8x1xf32>
    %1448 = vector.broadcast %1431 : f32 to vector<8x1xf32>
    %1449 = arith.mulf %1447, %1448 : vector<8x1xf32>
    %1450 = vector.broadcast %1435 : vector<8x1xf32> to vector<8x128xf32>
    %1451 = arith.subf %1430, %1450 : vector<8x128xf32>
    %1452 = vector.broadcast %1449 : vector<8x1xf32> to vector<8x128xf32>
    %1453 = arith.mulf %1451, %1452 : vector<8x128xf32>
    %cst_745 = arith.constant 0.000000e+00 : f32
    %1454 = vector.broadcast %cst_745 : f32 to vector<8x128xf32>
    %1455 = arith.maximumf %1429, %1454 : vector<8x128xf32>
    %c9_i32_746 = arith.constant 9 : i32
    %1456 = tpu.dynamic_rotate %1455 by %c9_i32_746 dim 1 : vector<8x128xf32>, i32 -> vector<8x128xf32>
    %c117 = arith.constant 117 : index
    %c0_747 = arith.constant 0 : index
    %c0_748 = arith.constant 0 : index
    %1457 = vector.load %arg5[%c117, %c0_747, %c0_748] : memref<135x8x128xf32, #tpu.memory_space<vmem>>, vector<1x8x128xf32>
    %1458 = vector.shape_cast %1457 : vector<1x8x128xf32> to vector<8x128xf32>
    %1459 = arith.mulf %1456, %1458 : vector<8x128xf32>
    %c8_i32_749 = arith.constant 8 : i32
    %1460 = tpu.dynamic_rotate %1455 by %c8_i32_749 dim 1 : vector<8x128xf32>, i32 -> vector<8x128xf32>
    %c118 = arith.constant 118 : index
    %c0_750 = arith.constant 0 : index
    %c0_751 = arith.constant 0 : index
    %1461 = vector.load %arg5[%c118, %c0_750, %c0_751] : memref<135x8x128xf32, #tpu.memory_space<vmem>>, vector<1x8x128xf32>
    %1462 = vector.shape_cast %1461 : vector<1x8x128xf32> to vector<8x128xf32>
    %1463 = arith.mulf %1460, %1462 : vector<8x128xf32>
    %1464 = arith.addf %1459, %1463 : vector<8x128xf32>
    %c7_i32_752 = arith.constant 7 : i32
    %1465 = tpu.dynamic_rotate %1455 by %c7_i32_752 dim 1 : vector<8x128xf32>, i32 -> vector<8x128xf32>
    %c119 = arith.constant 119 : index
    %c0_753 = arith.constant 0 : index
    %c0_754 = arith.constant 0 : index
    %1466 = vector.load %arg5[%c119, %c0_753, %c0_754] : memref<135x8x128xf32, #tpu.memory_space<vmem>>, vector<1x8x128xf32>
    %1467 = vector.shape_cast %1466 : vector<1x8x128xf32> to vector<8x128xf32>
    %1468 = arith.mulf %1465, %1467 : vector<8x128xf32>
    %1469 = arith.addf %1464, %1468 : vector<8x128xf32>
    %c1_i32_755 = arith.constant 1 : i32
    %1470 = tpu.dynamic_rotate %1455 by %c1_i32_755 dim 1 : vector<8x128xf32>, i32 -> vector<8x128xf32>
    %c120 = arith.constant 120 : index
    %c0_756 = arith.constant 0 : index
    %c0_757 = arith.constant 0 : index
    %1471 = vector.load %arg5[%c120, %c0_756, %c0_757] : memref<135x8x128xf32, #tpu.memory_space<vmem>>, vector<1x8x128xf32>
    %1472 = vector.shape_cast %1471 : vector<1x8x128xf32> to vector<8x128xf32>
    %1473 = arith.mulf %1470, %1472 : vector<8x128xf32>
    %1474 = arith.addf %1469, %1473 : vector<8x128xf32>
    %c121 = arith.constant 121 : index
    %c0_758 = arith.constant 0 : index
    %c0_759 = arith.constant 0 : index
    %1475 = vector.load %arg5[%c121, %c0_758, %c0_759] : memref<135x8x128xf32, #tpu.memory_space<vmem>>, vector<1x8x128xf32>
    %1476 = vector.shape_cast %1475 : vector<1x8x128xf32> to vector<8x128xf32>
    %1477 = arith.mulf %1455, %1476 : vector<8x128xf32>
    %1478 = arith.addf %1474, %1477 : vector<8x128xf32>
    %c127_i32_760 = arith.constant 127 : i32
    %1479 = tpu.dynamic_rotate %1455 by %c127_i32_760 dim 1 : vector<8x128xf32>, i32 -> vector<8x128xf32>
    %c122 = arith.constant 122 : index
    %c0_761 = arith.constant 0 : index
    %c0_762 = arith.constant 0 : index
    %1480 = vector.load %arg5[%c122, %c0_761, %c0_762] : memref<135x8x128xf32, #tpu.memory_space<vmem>>, vector<1x8x128xf32>
    %1481 = vector.shape_cast %1480 : vector<1x8x128xf32> to vector<8x128xf32>
    %1482 = arith.mulf %1479, %1481 : vector<8x128xf32>
    %1483 = arith.addf %1478, %1482 : vector<8x128xf32>
    %c121_i32_763 = arith.constant 121 : i32
    %1484 = tpu.dynamic_rotate %1455 by %c121_i32_763 dim 1 : vector<8x128xf32>, i32 -> vector<8x128xf32>
    %c123 = arith.constant 123 : index
    %c0_764 = arith.constant 0 : index
    %c0_765 = arith.constant 0 : index
    %1485 = vector.load %arg5[%c123, %c0_764, %c0_765] : memref<135x8x128xf32, #tpu.memory_space<vmem>>, vector<1x8x128xf32>
    %1486 = vector.shape_cast %1485 : vector<1x8x128xf32> to vector<8x128xf32>
    %1487 = arith.mulf %1484, %1486 : vector<8x128xf32>
    %1488 = arith.addf %1483, %1487 : vector<8x128xf32>
    %c120_i32_766 = arith.constant 120 : i32
    %1489 = tpu.dynamic_rotate %1455 by %c120_i32_766 dim 1 : vector<8x128xf32>, i32 -> vector<8x128xf32>
    %c124 = arith.constant 124 : index
    %c0_767 = arith.constant 0 : index
    %c0_768 = arith.constant 0 : index
    %1490 = vector.load %arg5[%c124, %c0_767, %c0_768] : memref<135x8x128xf32, #tpu.memory_space<vmem>>, vector<1x8x128xf32>
    %1491 = vector.shape_cast %1490 : vector<1x8x128xf32> to vector<8x128xf32>
    %1492 = arith.mulf %1489, %1491 : vector<8x128xf32>
    %1493 = arith.addf %1488, %1492 : vector<8x128xf32>
    %c119_i32_769 = arith.constant 119 : i32
    %1494 = tpu.dynamic_rotate %1455 by %c119_i32_769 dim 1 : vector<8x128xf32>, i32 -> vector<8x128xf32>
    %c125 = arith.constant 125 : index
    %c0_770 = arith.constant 0 : index
    %c0_771 = arith.constant 0 : index
    %1495 = vector.load %arg5[%c125, %c0_770, %c0_771] : memref<135x8x128xf32, #tpu.memory_space<vmem>>, vector<1x8x128xf32>
    %1496 = vector.shape_cast %1495 : vector<1x8x128xf32> to vector<8x128xf32>
    %1497 = arith.mulf %1494, %1496 : vector<8x128xf32>
    %1498 = arith.addf %1493, %1497 : vector<8x128xf32>
    %c4_772 = arith.constant 4 : index
    %c0_773 = arith.constant 0 : index
    %c0_774 = arith.constant 0 : index
    %1499 = vector.load %arg7[%c4_772, %c0_773, %c0_774] : memref<5x8x8xf32, #tpu.memory_space<vmem>>, vector<1x8x8xf32>
    %1500 = vector.shape_cast %1499 : vector<1x8x8xf32> to vector<8x8xf32>
    %c4_775 = arith.constant 4 : index
    %c4_776 = arith.constant 4 : index
    %1501 = memref.load %arg0[%c4_775, %c4_776] : memref<5x6xf32, #tpu.memory_space<smem>>
    %cst_777 = arith.constant dense<0.000000e+00> : vector<8x128xf32>
    %1502 = tpu.matmul %1500, %1498, %cst_777 {dimension_numbers = #tpu.dot_dimension_numbers<[1], [0], [0], [1], [0, 0, 1, 1], [], []>} : vector<8x8xf32>, vector<8x128xf32>, vector<8x128xf32> -> vector<8x128xf32>
    %cst_778 = arith.constant dense<0.000000e+00> : vector<8xf32>
    %1503 = vector.multi_reduction <add>, %1502, %cst_778 [1] : vector<8x128xf32> to vector<8xf32>
    %1504 = vector.shape_cast %1503 : vector<8xf32> to vector<8x1xf32>
    %cst_779 = arith.constant 1.280000e+02 : f32
    %1505 = vector.broadcast %cst_779 : f32 to vector<8x1xf32>
    %1506 = arith.divf %1504, %1505 : vector<8x1xf32>
    %1507 = arith.mulf %1502, %1502 : vector<8x128xf32>
    %cst_780 = arith.constant dense<0.000000e+00> : vector<8xf32>
    %1508 = vector.multi_reduction <add>, %1507, %cst_780 [1] : vector<8x128xf32> to vector<8xf32>
    %1509 = vector.shape_cast %1508 : vector<8xf32> to vector<8x1xf32>
    %cst_781 = arith.constant 1.280000e+02 : f32
    %1510 = vector.broadcast %cst_781 : f32 to vector<8x1xf32>
    %1511 = arith.divf %1509, %1510 : vector<8x1xf32>
    %1512 = arith.mulf %1506, %1506 : vector<8x1xf32>
    %1513 = arith.subf %1511, %1512 : vector<8x1xf32>
    %cst_782 = arith.constant 0.000000e+00 : f32
    %1514 = vector.broadcast %cst_782 : f32 to vector<8x1xf32>
    %1515 = arith.maximumf %1513, %1514 : vector<8x1xf32>
    %cst_783 = arith.constant 9.99999974E-6 : f32
    %1516 = vector.broadcast %cst_783 : f32 to vector<8x1xf32>
    %1517 = arith.addf %1515, %1516 : vector<8x1xf32>
    %1518 = math.rsqrt %1517 : vector<8x1xf32>
    %1519 = vector.broadcast %1501 : f32 to vector<8x1xf32>
    %1520 = arith.mulf %1518, %1519 : vector<8x1xf32>
    %1521 = vector.broadcast %1506 : vector<8x1xf32> to vector<8x128xf32>
    %1522 = arith.subf %1502, %1521 : vector<8x128xf32>
    %1523 = vector.broadcast %1520 : vector<8x1xf32> to vector<8x128xf32>
    %1524 = arith.mulf %1522, %1523 : vector<8x128xf32>
    %c4_784 = arith.constant 4 : index
    %c1_785 = arith.constant 1 : index
    %1525 = memref.load %arg0[%c4_784, %c1_785] : memref<5x6xf32, #tpu.memory_space<smem>>
    %1526 = vector.broadcast %1525 : f32 to vector<8x128xf32>
    %1527 = arith.mulf %1526, %1314 : vector<8x128xf32>
    %c4_786 = arith.constant 4 : index
    %c2_787 = arith.constant 2 : index
    %1528 = memref.load %arg0[%c4_786, %c2_787] : memref<5x6xf32, #tpu.memory_space<smem>>
    %1529 = vector.broadcast %1528 : f32 to vector<8x128xf32>
    %1530 = arith.mulf %1529, %1334 : vector<8x128xf32>
    %1531 = arith.addf %1527, %1530 : vector<8x128xf32>
    %c4_788 = arith.constant 4 : index
    %c3_789 = arith.constant 3 : index
    %1532 = memref.load %arg0[%c4_788, %c3_789] : memref<5x6xf32, #tpu.memory_space<smem>>
    %1533 = vector.broadcast %1532 : f32 to vector<8x128xf32>
    %1534 = arith.mulf %1533, %973 : vector<8x128xf32>
    %1535 = arith.addf %1531, %1534 : vector<8x128xf32>
    %1536 = arith.addf %1535, %1524 : vector<8x128xf32>
    %1537 = arith.addf %1536, %1453 : vector<8x128xf32>
    %1538 = arith.addf %1177, %1537 : vector<8x128xf32>
    %c0_790 = arith.constant 0 : index
    %c0_791 = arith.constant 0 : index
    %1539 = vector.load %arg10[%c0_790, %c0_791] : memref<16x128xf32, #tpu.memory_space<vmem>>, vector<8x128xf32>
    tpu.vector_store %arg10[%c0_790, %c0_791], %973 {strides = array<i32>} : memref<16x128xf32, #tpu.memory_space<vmem>>, vector<8x128xf32>,
    %c8_792 = arith.constant 8 : index
    %c0_793 = arith.constant 0 : index
    %1540 = vector.load %arg10[%c8_792, %c0_793] : memref<16x128xf32, #tpu.memory_space<vmem>>, vector<8x128xf32>
    tpu.vector_store %arg10[%c8_792, %c0_793], %1538 {strides = array<i32>} : memref<16x128xf32, #tpu.memory_space<vmem>>, vector<8x128xf32>,
    return
  }
}

</mosaic_0001>

<llo_original>
// kernel: _lambda_.1
$region0: #{_lambda_.1}
  #allocation0 [shape = 'u32[]', space=smem, size = 0x4, offset = 0x4, fixed_abs, tag = 'smem constant byte address 0x4 - core index']
  #allocation1 [shape = 'u32[72,128]{1,0:T(1,128)}', space=vmem, size = 0x9000, scoped, tag = 'internal scratch']
  %s0 = inlined_call_operand.vmem [shape: f32[5,6], index: 0, kind: input, shape index: {}]
  %s1 = inlined_call_operand.vmem [shape: f32[8,128], index: 1, kind: input, shape index: {}]
  %s2 = inlined_call_operand.vmem [shape: f32[8,128], index: 2, kind: input, shape index: {}]
  %s3 = inlined_call_operand.vmem [shape: f32[8,8], index: 3, kind: input, shape index: {}]
  %s4 = inlined_call_operand.vmem [shape: f32[8,8], index: 4, kind: input, shape index: {}]
  %s5 = inlined_call_operand.vmem [shape: f32[135,8,128], index: 5, kind: input, shape index: {}]
  %s6 = inlined_call_operand.vmem [shape: f32[5,16,16], index: 6, kind: input, shape index: {}]
  %s7 = inlined_call_operand.vmem [shape: f32[5,8,8], index: 7, kind: input, shape index: {}]
  %s8 = inlined_call_operand.vmem [shape: f32[9,8,128], index: 8, kind: input, shape index: {}]
  %s9 = inlined_call_operand.vmem [shape: f32[9,8,128], index: 9, kind: input, shape index: {}]
  %s10 = inlined_call_operand.vmem [shape: f32[16,128], index: 10, kind: output, shape index: {}]
  %s11 = sld [smem:[#allocation0]]
  $region54: #{_lambda_.1} parent=0
    _
  %s13 = ssub.s32 1, %s11
  %s14 = scalar_select 0, %s13, %s11
  $region1: #{_lambda_.1} parent=0
    #allocation2 [shape = 'u8[4096]{0}', space=smem, size = 0x1000, scoped, tag = 'input window, operand 0, single buffered']
    #allocation3 [shape = 's32[1]{0}', space=sflag, size = 0x4, scoped, tag = 'scoped memory for _lambda_.1']
    %15 = vsyncpa [#allocation3], 0
    // Predicated region
    $region2: #{_lambda_.1} parent=1 // pred_check
      _
    $region3: #{_lambda_.1} parent=1 // pred_check_branch
      %17 = sbr.rel (0) target = $region5
    $region4: #{_lambda_.1} parent=1 // pred_region
      %19 = vsyncadd [#allocation3], 0
      %s21 = sshll.u32 %s0, 4
      %s22 = int_to_ptr.vmem [resolvable:$true] %s21
      %24 = dma.vmem_to_smem %s22, 128, [#allocation2], [#allocation3]
    $region5: #{_lambda_.1} parent=1 // pred_fallthru
      _
    // Predicated region
    $region6: #{_lambda_.1} parent=1 // pred_check
      _
    $region7: #{_lambda_.1} parent=1 // pred_check_branch
      %26 = sbr.rel (0) target = $region9
    $region8: #{_lambda_.1} parent=1 // pred_region
      _
    $region9: #{_lambda_.1} parent=1 // pred_fallthru
      _
    // Predicated region
    $region10: #{_lambda_.1} parent=1 // pred_check
      _
    $region11: #{_lambda_.1} parent=1 // pred_check_branch
      %28 = sbr.rel (0) target = $region13
    $region12: #{_lambda_.1} parent=1 // pred_region
      _
    $region13: #{_lambda_.1} parent=1 // pred_fallthru
      _
    // Predicated region
    $region14: #{_lambda_.1} parent=1 // pred_check
      _
    $region15: #{_lambda_.1} parent=1 // pred_check_branch
      %30 = sbr.rel (0) target = $region17
    $region16: #{_lambda_.1} parent=1 // pred_region
      _
    $region17: #{_lambda_.1} parent=1 // pred_fallthru
      _
    // Predicated region
    $region18: #{_lambda_.1} parent=1 // pred_check
      _
    $region19: #{_lambda_.1} parent=1 // pred_check_branch
      %32 = sbr.rel (0) target = $region21
    $region20: #{_lambda_.1} parent=1 // pred_region
      _
    $region21: #{_lambda_.1} parent=1 // pred_fallthru
      _
    // Predicated region
    $region22: #{_lambda_.1} parent=1 // pred_check
      _
    $region23: #{_lambda_.1} parent=1 // pred_check_branch
      %34 = sbr.rel (0) target = $region25
    $region24: #{_lambda_.1} parent=1 // pred_region
      _
    $region25: #{_lambda_.1} parent=1 // pred_fallthru
      _
    // Predicated region
    $region26: #{_lambda_.1} parent=1 // pred_check
      _
    $region27: #{_lambda_.1} parent=1 // pred_check_branch
      %36 = sbr.rel (0) target = $region29
    $region28: #{_lambda_.1} parent=1 // pred_region
      _
    $region29: #{_lambda_.1} parent=1 // pred_fallthru
      _
    // Predicated region
    $region30: #{_lambda_.1} parent=1 // pred_check
      _
    $region31: #{_lambda_.1} parent=1 // pred_check_branch
      %38 = sbr.rel (0) target = $region33
    $region32: #{_lambda_.1} parent=1 // pred_region
      _
    $region33: #{_lambda_.1} parent=1 // pred_fallthru
      _
    // Predicated region
    $region34: #{_lambda_.1} parent=1 // pred_check
      _
    $region35: #{_lambda_.1} parent=1 // pred_check_branch
      %40 = sbr.rel (0) target = $region37
    $region36: #{_lambda_.1} parent=1 // pred_region
      _
    $region37: #{_lambda_.1} parent=1 // pred_fallthru
      _
    // Predicated region
    $region38: #{_lambda_.1} parent=1 // pred_check
      _
    $region39: #{_lambda_.1} parent=1 // pred_check_branch
      %42 = sbr.rel (0) target = $region41
    $region40: #{_lambda_.1} parent=1 // pred_region
      _
    $region41: #{_lambda_.1} parent=1 // pred_fallthru
      _
    // Predicated region
    $region42: #{_lambda_.1} parent=1 // pred_check
      _
    $region43: #{_lambda_.1} parent=1 // pred_check_branch
      %44 = sbr.rel (0) target = $region45
    $region44: #{_lambda_.1} parent=1 // pred_region
      %46 = dma.done [#allocation3], 128
    $region45: #{_lambda_.1} parent=1 // pred_fallthru
      _
    %47 = sfence
    %v48 = vld [vmem:[%s1] sm:$0xff]
    %v49 = vmax.f32 %v48, 0.0
    %v50 = vld [vmem:[%s3] sm:$0xff]
    %vm51 = vcmask 64512
    %v53 = vsel %vm51, %v50, 0
    %55 = vmatpush.msra.mxu0 0.0
    %56 = vmatpush.msra.mxu0 0.0
    %57 = vmatpush.msra.mxu0 0.0
    %58 = vmatpush.msra.mxu0 0.0
    %59 = vmatpush.msra.mxu0 0.0
    %60 = vmatpush.msra.mxu0 0.0
    %61 = vmatpush.msra.mxu0 0.0
    %62 = vmatpush.msra.mxu0 0.0
    %63 = vmatpush.msra.mxu0 0.0
    %64 = vmatpush.msra.mxu0 0.0
    %65 = vmatpush.msra.mxu0 0.0
    %66 = vmatpush.msra.mxu0 0.0
    %67 = vmatpush.msra.mxu0 0.0
    %68 = vmatpush.msra.mxu0 0.0
    %69 = vmatpush.msra.mxu0 0.0
    %70 = vmatpush.msra.mxu0 %v49
    %71 = vmatmul.f32.gmra.mxu0 %v53
    %v72 = vpop.f32.mrf.mxu0
    %v73 = vadd.f32 0.0, %v72
    %74 = vdwg.mxu0
    %75 = vadd.xlane.f32.xlu0 %v73
    %v76 = vpop.xlane.xlu0 %75
    %v77 = vrcp.pop 128.0
    %v78 = vmul.f32 128.0, %v77
    %v79 = vsub.f32 1.0, %v78
    %v80 = vmul.f32 %v77, %v79
    %v81 = vadd.f32 %v77, %v80
    %vm82 = vweird.f32 %v77
    %v83 = vsel %vm82, %v77, %v81
    %v84 = vmul.f32 %v76, %v83
    %v85 = vmul.f32 %v73, %v73
    %86 = vadd.xlane.f32.xlu0 %v85
    %v87 = vpop.xlane.xlu0 %86
    %v88 = vmul.f32 %v87, %v83
    %v89 = vmul.f32 %v84, %v84
    %v90 = vsub.f32 %v88, %v89
    %v91 = vmax.f32 %v90, 0.0
    %v92 = vadd.f32 %v91, 1e-05
    %v93 = vrsqrt.pop %v92
    %v94 = vmul.f32 %v93, %v92
    %v95 = vmul.f32 %v94, %v93
    %v96 = vmul.f32 0.5, %v95
    %v97 = vsub.f32 1.5, %v96
    %v98 = vmul.f32 %v93, %v97
    %vm99 = vweird.f32 %v92
    %vm100 = vweird.f32 %v93
    %vm101 = vmor %vm99, %vm100
    %v102 = vsel %vm101, %v93, %v98
    %v103 = vsub.f32 %v73, %v84
    %v104 = vmul.f32 %v103, %v102
    %v105 = vld [vmem:[%s2] sm:$0xff]
    %v106 = vmax.f32 %v105, 0.0
    %v107 = vld [vmem:[%s4] sm:$0xff]
    %v109 = vsel %vm51, %v107, 0
    %111 = vmatpush.msra.mxu0 0.0
    %112 = vmatpush.msra.mxu0 0.0
    %113 = vmatpush.msra.mxu0 0.0
    %114 = vmatpush.msra.mxu0 0.0
    %115 = vmatpush.msra.mxu0 0.0
    %116 = vmatpush.msra.mxu0 0.0
    %117 = vmatpush.msra.mxu0 0.0
    %118 = vmatpush.msra.mxu0 0.0
    %119 = vmatpush.msra.mxu0 0.0
    %120 = vmatpush.msra.mxu0 0.0
    %121 = vmatpush.msra.mxu0 0.0
    %122 = vmatpush.msra.mxu0 0.0
    %123 = vmatpush.msra.mxu0 0.0
    %124 = vmatpush.msra.mxu0 0.0
    %125 = vmatpush.msra.mxu0 0.0
    %126 = vmatpush.msra.mxu0 %v106
    %127 = vmatmul.f32.gmra.mxu0 %v109
    %v128 = vpop.f32.mrf.mxu0
    %v129 = vadd.f32 0.0, %v128
    %130 = vdwg.mxu0
    %131 = vadd.xlane.f32.xlu0 %v129
    %v132 = vpop.xlane.xlu0 %131
    %v133 = vmul.f32 %v132, %v83
    %v134 = vmul.f32 %v129, %v129
    %135 = vadd.xlane.f32.xlu0 %v134
    %v136 = vpop.xlane.xlu0 %135
    %v137 = vmul.f32 %v136, %v83
    %v138 = vmul.f32 %v133, %v133
    %v139 = vsub.f32 %v137, %v138
    %v140 = vmax.f32 %v139, 0.0
    %v141 = vadd.f32 %v140, 1e-05
    %v142 = vrsqrt.pop %v141
    %v143 = vmul.f32 %v142, %v141
    %v144 = vmul.f32 %v143, %v142
    %v145 = vmul.f32 0.5, %v144
    %v146 = vsub.f32 1.5, %v145
    %v147 = vmul.f32 %v142, %v146
    %vm148 = vweird.f32 %v141
    %vm149 = vweird.f32 %v142
    %vm150 = vmor %vm148, %vm149
    %v151 = vsel %vm150, %v142, %v147
    %v152 = vsub.f32 %v129, %v133
    %v153 = vmul.f32 %v152, %v151
    %v154 = vmax.f32 %v104, 0.0
    %155 = vrot.lane.b32.xlu0 %v104, 9
    %v156 = vpop.permute.xlu0 %155
    %v157 = vld [vmem:[%s9] sm:$0xff]
    %v158 = vadd.f32 %v156, %v157
    %v159 = vmax.f32 %v156, 0.0
    %v160 = vld [vmem:[%s8] sm:$0xff]
    %v161 = vmul.f32 %v156, %v160
    %162 = vrot.lane.b32.xlu0 %v104, 8
    %v163 = vpop.permute.xlu0 %162
    %s164 = scalar_lea.vmem %s9, 8
    %v165 = vld [vmem:[%s164] sm:$0xff]
    %v166 = vadd.f32 %v163, %v165
    %v167 = vmax.f32 %v163, 0.0
    %s168 = scalar_lea.vmem %s8, 8
    %v169 = vld [vmem:[%s168] sm:$0xff]
    %v170 = vmul.f32 %v163, %v169
    %v171 = vmax.f32 %v158, %v166
    %v172 = vadd.f32 %v161, %v170
    %173 = vrot.lane.b32.xlu0 %v104, 7
    %v174 = vpop.permute.xlu0 %173
    %s175 = scalar_lea.vmem %s9, 16
    %v176 = vld [vmem:[%s175] sm:$0xff]
    %v177 = vadd.f32 %v174, %v176
    %v178 = vmax.f32 %v174, 0.0
    %s179 = scalar_lea.vmem %s8, 16
    %v180 = vld [vmem:[%s179] sm:$0xff]
    %v181 = vmul.f32 %v174, %v180
    %v182 = vmax.f32 %v171, %v177
    %v183 = vadd.f32 %v172, %v181
    %184 = vrot.lane.b32.xlu0 %v104, 1
    %v185 = vpop.permute.xlu0 %184
    %s186 = scalar_lea.vmem %s9, 24
    %v187 = vld [vmem:[%s186] sm:$0xff]
    %v188 = vadd.f32 %v185, %v187
    %v189 = vmax.f32 %v185, 0.0
    %s190 = scalar_lea.vmem %s8, 24
    %v191 = vld [vmem:[%s190] sm:$0xff]
    %v192 = vmul.f32 %v185, %v191
    %v193 = vmax.f32 %v182, %v188
    %v194 = vadd.f32 %v183, %v192
    %s195 = scalar_lea.vmem %s8, 32
    %v196 = vld [vmem:[%s195] sm:$0xff]
    %v197 = vmul.f32 %v104, %v196
    %v198 = vmax.f32 %v193, %v104
    %v199 = vadd.f32 %v194, %v197
    %200 = vrot.lane.b32.xlu0 %v104, 127
    %v201 = vpop.permute.xlu0 %200
    %s202 = scalar_lea.vmem %s9, 40
    %v203 = vld [vmem:[%s202] sm:$0xff]
    %v204 = vadd.f32 %v201, %v203
    %v205 = vmax.f32 %v201, 0.0
    %s206 = scalar_lea.vmem %s8, 40
    %v207 = vld [vmem:[%s206] sm:$0xff]
    %v208 = vmul.f32 %v201, %v207
    %v209 = vmax.f32 %v198, %v204
    %v210 = vadd.f32 %v199, %v208
    %211 = vrot.lane.b32.xlu0 %v104, 121
    %v212 = vpop.permute.xlu0 %211
    %s213 = scalar_lea.vmem %s9, 48
    %v214 = vld [vmem:[%s213] sm:$0xff]
    %v215 = vadd.f32 %v212, %v214
    %v216 = vmax.f32 %v212, 0.0
    %s217 = scalar_lea.vmem %s8, 48
    %v218 = vld [vmem:[%s217] sm:$0xff]
    %v219 = vmul.f32 %v212, %v218
    %v220 = vmax.f32 %v209, %v215
    %v221 = vadd.f32 %v210, %v219
    %222 = vrot.lane.b32.xlu0 %v104, 120
    %v223 = vpop.permute.xlu0 %222
    %s224 = scalar_lea.vmem %s9, 56
    %v225 = vld [vmem:[%s224] sm:$0xff]
    %v226 = vadd.f32 %v223, %v225
    %v227 = vmax.f32 %v223, 0.0
    %s228 = scalar_lea.vmem %s8, 56
    %v229 = vld [vmem:[%s228] sm:$0xff]
    %v230 = vmul.f32 %v223, %v229
    %v231 = vmax.f32 %v220, %v226
    %v232 = vadd.f32 %v221, %v230
    %233 = vrot.lane.b32.xlu0 %v104, 119
    %v234 = vpop.permute.xlu0 %233
    %s235 = scalar_lea.vmem %s9, 64
    %v236 = vld [vmem:[%s235] sm:$0xff]
    %v237 = vadd.f32 %v234, %v236
    %v238 = vmax.f32 %v234, 0.0
    %s239 = scalar_lea.vmem %s8, 64
    %v240 = vld [vmem:[%s239] sm:$0xff]
    %v241 = vmul.f32 %v234, %v240
    %v242 = vmax.f32 %v231, %v237
    %v243 = vadd.f32 %v232, %v241
    %244 = vrot.lane.b32.xlu0 %v104, 18
    %v245 = vpop.permute.xlu0 %244
    %v246 = vmax.f32 %v245, 0.0
    %247 = vrot.lane.b32.xlu0 %v104, 16
    %v248 = vpop.permute.xlu0 %247
    %v249 = vmax.f32 %v248, 0.0
    %250 = vrot.lane.b32.xlu0 %v104, 14
    %v251 = vpop.permute.xlu0 %250
    %v252 = vmax.f32 %v251, 0.0
    %253 = vrot.lane.b32.xlu0 %v104, 2
    %v254 = vpop.permute.xlu0 %253
    %v255 = vmax.f32 %v254, 0.0
    %256 = vrot.lane.b32.xlu0 %v104, 126
    %v257 = vpop.permute.xlu0 %256
    %v258 = vmax.f32 %v257, 0.0
    %259 = vrot.lane.b32.xlu0 %v104, 114
    %v260 = vpop.permute.xlu0 %259
    %v261 = vmax.f32 %v260, 0.0
    %262 = vrot.lane.b32.xlu0 %v104, 112
    %v263 = vpop.permute.xlu0 %262
    %v264 = vmax.f32 %v263, 0.0
    %265 = vrot.lane.b32.xlu0 %v104, 110
    %v266 = vpop.permute.xlu0 %265
    %v267 = vmax.f32 %v266, 0.0
    %268 = vadd.xlane.f32.xlu0 %v242
    %v269 = vpop.xlane.xlu0 %268
    %v270 = vmul.f32 %v269, %v83
    %v271 = vmul.f32 %v242, %v242
    %272 = vadd.xlane.f32.xlu0 %v271
    %v273 = vpop.xlane.xlu0 %272
    %v274 = vmul.f32 %v273, %v83
    %v275 = vmul.f32 %v270, %v270
    %v276 = vsub.f32 %v274, %v275
    %v277 = vmax.f32 %v276, 0.0
    %v278 = vadd.f32 %v277, 1e-05
    %v279 = vrsqrt.pop %v278
    %v280 = vmul.f32 %v279, %v278
    %v281 = vmul.f32 %v280, %v279
    %v282 = vmul.f32 0.5, %v281
    %v283 = vsub.f32 1.5, %v282
    %v284 = vmul.f32 %v279, %v283
    %vm285 = vweird.f32 %v278
    %vm286 = vweird.f32 %v279
    %vm287 = vmor %vm285, %vm286
    %v288 = vsel %vm287, %v279, %v284
    %v289 = vsub.f32 %v242, %v270
    %v290 = vmul.f32 %v289, %v288
    %291 = vadd.xlane.f32.xlu0 %v243
    %v292 = vpop.xlane.xlu0 %291
    %v293 = vmul.f32 %v292, %v83
    %v294 = vmul.f32 %v243, %v243
    %295 = vadd.xlane.f32.xlu0 %v294
    %v296 = vpop.xlane.xlu0 %295
    %v297 = vmul.f32 %v296, %v83
    %v298 = vmul.f32 %v293, %v293
    %v299 = vsub.f32 %v297, %v298
    %v300 = vmax.f32 %v299, 0.0
    %v301 = vadd.f32 %v300, 1e-05
    %v302 = vrsqrt.pop %v301
    %v303 = vmul.f32 %v302, %v301
    %v304 = vmul.f32 %v303, %v302
    %v305 = vmul.f32 0.5, %v304
    %v306 = vsub.f32 1.5, %v305
    %v307 = vmul.f32 %v302, %v306
    %vm308 = vweird.f32 %v301
    %vm309 = vweird.f32 %v302
    %vm310 = vmor %vm308, %vm309
    %v311 = vsel %vm310, %v302, %v307
    %v312 = vsub.f32 %v243, %v293
    %v313 = vmul.f32 %v312, %v311
    %v314 = vld [vmem:[%s5] sm:$0xff]
    %v315 = vmul.f32 %v159, %v314
    %s316 = scalar_lea.vmem %s5, 144
    %v317 = vld [vmem:[%s316] sm:$0xff]
    %v318 = vmul.f32 %v246, %v317
    %s319 = scalar_lea.vmem %s5, 8
    %v320 = vld [vmem:[%s319] sm:$0xff]
    %v321 = vmul.f32 %v167, %v320
    %v322 = vadd.f32 %v315, %v321
    %s323 = scalar_lea.vmem %s5, 152
    %v324 = vld [vmem:[%s323] sm:$0xff]
    %v325 = vmul.f32 %v249, %v324
    %v326 = vadd.f32 %v318, %v325
    %s327 = scalar_lea.vmem %s5, 16
    %v328 = vld [vmem:[%s327] sm:$0xff]
    %v329 = vmul.f32 %v178, %v328
    %v330 = vadd.f32 %v322, %v329
    %s331 = scalar_lea.vmem %s5, 160
    %v332 = vld [vmem:[%s331] sm:$0xff]
    %v333 = vmul.f32 %v252, %v332
    %v334 = vadd.f32 %v326, %v333
    %s335 = scalar_lea.vmem %s5, 24
    %v336 = vld [vmem:[%s335] sm:$0xff]
    %v337 = vmul.f32 %v189, %v336
    %v338 = vadd.f32 %v330, %v337
    %s339 = scalar_lea.vmem %s5, 168
    %v340 = vld [vmem:[%s339] sm:$0xff]
    %v341 = vmul.f32 %v255, %v340
    %v342 = vadd.f32 %v334, %v341
    %s343 = scalar_lea.vmem %s5, 32
    %v344 = vld [vmem:[%s343] sm:$0xff]
    %v345 = vmul.f32 %v154, %v344
    %v346 = vadd.f32 %v338, %v345
    %s347 = scalar_lea.vmem %s5, 176
    %v348 = vld [vmem:[%s347] sm:$0xff]
    %v349 = vmul.f32 %v154, %v348
    %v350 = vadd.f32 %v342, %v349
    %s351 = scalar_lea.vmem %s5, 40
    %v352 = vld [vmem:[%s351] sm:$0xff]
    %v353 = vmul.f32 %v205, %v352
    %v354 = vadd.f32 %v346, %v353
    %s355 = scalar_lea.vmem %s5, 184
    %v356 = vld [vmem:[%s355] sm:$0xff]
    %v357 = vmul.f32 %v258, %v356
    %v358 = vadd.f32 %v350, %v357
    %s359 = scalar_lea.vmem %s5, 48
    %v360 = vld [vmem:[%s359] sm:$0xff]
    %v361 = vmul.f32 %v216, %v360
    %v362 = vadd.f32 %v354, %v361
    %s363 = scalar_lea.vmem %s5, 192
    %v364 = vld [vmem:[%s363] sm:$0xff]
    %v365 = vmul.f32 %v261, %v364
    %v366 = vadd.f32 %v358, %v365
    %s367 = scalar_lea.vmem %s5, 56
    %v368 = vld [vmem:[%s367] sm:$0xff]
    %v369 = vmul.f32 %v227, %v368
    %v370 = vadd.f32 %v362, %v369
    %s371 = scalar_lea.vmem %s5, 200
    %v372 = vld [vmem:[%s371] sm:$0xff]
    %v373 = vmul.f32 %v264, %v372
    %v374 = vadd.f32 %v366, %v373
    %s375 = scalar_lea.vmem %s5, 64
    %v376 = vld [vmem:[%s375] sm:$0xff]
    %v377 = vmul.f32 %v238, %v376
    %v378 = vadd.f32 %v370, %v377
    %s379 = scalar_lea.vmem %s5, 208
    %v380 = vld [vmem:[%s379] sm:$0xff]
    %v381 = vmul.f32 %v267, %v380
    %v382 = vadd.f32 %v374, %v381
    %v383 = vld [vmem:[%s6] sm:$0xff]
    %v384 = vld [vmem:[%s6 + $0x8] sm:$0xff]
    %vm385 = vcmask 130048
    %v387 = vsel %vm385, %v383, 0
    %v390 = vsel %vm385, %v384, 0
    %392 = vmatpush.msra.mxu0 0.0
    %393 = vmatpush.msra.mxu0 0.0
    %394 = vmatpush.msra.mxu0 0.0
    %395 = vmatpush.msra.mxu0 0.0
    %396 = vmatpush.msra.mxu0 0.0
    %397 = vmatpush.msra.mxu0 0.0
    %398 = vmatpush.msra.mxu0 0.0
    %399 = vmatpush.msra.mxu0 0.0
    %400 = vmatpush.msra.mxu0 0.0
    %401 = vmatpush.msra.mxu0 0.0
    %402 = vmatpush.msra.mxu0 0.0
    %403 = vmatpush.msra.mxu0 0.0
    %404 = vmatpush.msra.mxu0 0.0
    %405 = vmatpush.msra.mxu0 0.0
    %406 = vmatpush.msra.mxu0 %v382
    %407 = vmatpush.msra.mxu0 %v378
    %408 = vmatmul.f32.gmra.mxu0 %v387
    %v409 = vpop.f32.mrf.mxu0
    %v410 = vadd.f32 0.0, %v409
    %411 = vmatmul.f32.gmra.mxu0 %v390
    %v412 = vpop.f32.mrf.mxu0
    %v413 = vadd.f32 0.0, %v412
    %414 = vdwg.mxu0
    %415 = vadd.xlane.f32.xlu0 %v410
    %v416 = vpop.xlane.xlu0 %415
    %v417 = vmul.f32 %v416, %v83
    %v418 = vmul.f32 %v410, %v410
    %419 = vadd.xlane.f32.xlu0 %v418
    %v420 = vpop.xlane.xlu0 %419
    %v421 = vmul.f32 %v420, %v83
    %v422 = vmul.f32 %v417, %v417
    %v423 = vsub.f32 %v421, %v422
    %v424 = vmax.f32 %v423, 0.0
    %v425 = vadd.f32 %v424, 1e-05
    %v426 = vrsqrt.pop %v425
    %v427 = vmul.f32 %v426, %v425
    %v428 = vmul.f32 %v427, %v426
    %v429 = vmul.f32 0.5, %v428
    %v430 = vsub.f32 1.5, %v429
    %v431 = vmul.f32 %v426, %v430
    %vm432 = vweird.f32 %v425
    %vm433 = vweird.f32 %v426
    %vm434 = vmor %vm432, %vm433
    %v435 = vsel %vm434, %v426, %v431
    %v436 = vsub.f32 %v410, %v417
    %v437 = vmul.f32 %v436, %v435
    %s438 = sld [smem:[#allocation2 + $0x5]]
    %439 = vadd.xlane.f32.xlu0 %v413
    %v440 = vpop.xlane.xlu0 %439
    %v441 = vmul.f32 %v440, %v83
    %v442 = vmul.f32 %v413, %v413
    %443 = vadd.xlane.f32.xlu0 %v442
    %v444 = vpop.xlane.xlu0 %443
    %v445 = vmul.f32 %v444, %v83
    %v446 = vmul.f32 %v441, %v441
    %v447 = vsub.f32 %v445, %v446
    %v448 = vmax.f32 %v447, 0.0
    %v449 = vadd.f32 %v448, 1e-05
    %v450 = vrsqrt.pop %v449
    %v451 = vmul.f32 %v450, %v449
    %v452 = vmul.f32 %v451, %v450
    %v453 = vmul.f32 0.5, %v452
    %v454 = vsub.f32 1.5, %v453
    %v455 = vmul.f32 %v450, %v454
    %vm456 = vweird.f32 %v449
    %vm457 = vweird.f32 %v450
    %vm458 = vmor %vm456, %vm457
    %v459 = vsel %vm458, %v450, %v455
    %v460 = vstv %s438
    %v461 = vmul.f32 %v459, %v460
    %v462 = vsub.f32 %v413, %v441
    %v463 = vmul.f32 %v462, %v461
    %v464 = vmax.f32 %v437, 0.0
    %465 = vrot.lane.b32.xlu0 %v464, 9
    %v466 = vpop.permute.xlu0 %465
    %s467 = scalar_lea.vmem %s5, 72
    %v468 = vld [vmem:[%s467] sm:$0xff]
    %v469 = vmul.f32 %v466, %v468
    %470 = vrot.lane.b32.xlu0 %v464, 8
    %v471 = vpop.permute.xlu0 %470
    %s472 = scalar_lea.vmem %s5, 80
    %v473 = vld [vmem:[%s472] sm:$0xff]
    %v474 = vmul.f32 %v471, %v473
    %v475 = vadd.f32 %v469, %v474
    %476 = vrot.lane.b32.xlu0 %v464, 7
    %v477 = vpop.permute.xlu0 %476
    %s478 = scalar_lea.vmem %s5, 88
    %v479 = vld [vmem:[%s478] sm:$0xff]
    %v480 = vmul.f32 %v477, %v479
    %v481 = vadd.f32 %v475, %v480
    %482 = vrot.lane.b32.xlu0 %v464, 1
    %v483 = vpop.permute.xlu0 %482
    %s484 = scalar_lea.vmem %s5, 96
    %v485 = vld [vmem:[%s484] sm:$0xff]
    %v486 = vmul.f32 %v483, %v485
    %v487 = vadd.f32 %v481, %v486
    %s488 = scalar_lea.vmem %s5, 104
    %v489 = vld [vmem:[%s488] sm:$0xff]
    %v490 = vmul.f32 %v464, %v489
    %v491 = vadd.f32 %v487, %v490
    %492 = vrot.lane.b32.xlu0 %v464, 127
    %v493 = vpop.permute.xlu0 %492
    %s494 = scalar_lea.vmem %s5, 112
    %v495 = vld [vmem:[%s494] sm:$0xff]
    %v496 = vmul.f32 %v493, %v495
    %v497 = vadd.f32 %v491, %v496
    %498 = vrot.lane.b32.xlu0 %v464, 121
    %v499 = vpop.permute.xlu0 %498
    %s500 = scalar_lea.vmem %s5, 120
    %v501 = vld [vmem:[%s500] sm:$0xff]
    %v502 = vmul.f32 %v499, %v501
    %v503 = vadd.f32 %v497, %v502
    %504 = vrot.lane.b32.xlu0 %v464, 120
    %v505 = vpop.permute.xlu0 %504
    %s506 = scalar_lea.vmem %s5, 128
    %v507 = vld [vmem:[%s506] sm:$0xff]
    %v508 = vmul.f32 %v505, %v507
    %v509 = vadd.f32 %v503, %v508
    %510 = vrot.lane.b32.xlu0 %v464, 119
    %v511 = vpop.permute.xlu0 %510
    %s512 = scalar_lea.vmem %s5, 136
    %v513 = vld [vmem:[%s512] sm:$0xff]
    %v514 = vmul.f32 %v511, %v513
    %v515 = vadd.f32 %v509, %v514
    %v516 = vld [vmem:[%s7] sm:$0xff]
    %s517 = sld [smem:[#allocation2 + $0x4]]
    %v519 = vsel %vm51, %v516, 0
    %521 = vmatpush.msra.mxu0 0.0
    %522 = vmatpush.msra.mxu0 0.0
    %523 = vmatpush.msra.mxu0 0.0
    %524 = vmatpush.msra.mxu0 0.0
    %525 = vmatpush.msra.mxu0 0.0
    %526 = vmatpush.msra.mxu0 0.0
    %527 = vmatpush.msra.mxu0 0.0
    %528 = vmatpush.msra.mxu0 0.0
    %529 = vmatpush.msra.mxu0 0.0
    %530 = vmatpush.msra.mxu0 0.0
    %531 = vmatpush.msra.mxu0 0.0
    %532 = vmatpush.msra.mxu0 0.0
    %533 = vmatpush.msra.mxu0 0.0
    %534 = vmatpush.msra.mxu0 0.0
    %535 = vmatpush.msra.mxu0 0.0
    %536 = vmatpush.msra.mxu0 %v515
    %537 = vmatmul.f32.gmra.mxu0 %v519
    %v538 = vpop.f32.mrf.mxu0
    %v539 = vadd.f32 0.0, %v538
    %540 = vdwg.mxu0
    %541 = vadd.xlane.f32.xlu0 %v539
    %v542 = vpop.xlane.xlu0 %541
    %v543 = vmul.f32 %v542, %v83
    %v544 = vmul.f32 %v539, %v539
    %545 = vadd.xlane.f32.xlu0 %v544
    %v546 = vpop.xlane.xlu0 %545
    %v547 = vmul.f32 %v546, %v83
    %v548 = vmul.f32 %v543, %v543
    %v549 = vsub.f32 %v547, %v548
    %v550 = vmax.f32 %v549, 0.0
    %v551 = vadd.f32 %v550, 1e-05
    %v552 = vrsqrt.pop %v551
    %v553 = vmul.f32 %v552, %v551
    %v554 = vmul.f32 %v553, %v552
    %v555 = vmul.f32 0.5, %v554
    %v556 = vsub.f32 1.5, %v555
    %v557 = vmul.f32 %v552, %v556
    %vm558 = vweird.f32 %v551
    %vm559 = vweird.f32 %v552
    %vm560 = vmor %vm558, %vm559
    %v561 = vsel %vm560, %v552, %v557
    %v562 = vstv %s517
    %v563 = vmul.f32 %v561, %v562
    %v564 = vsub.f32 %v539, %v543
    %v565 = vmul.f32 %v564, %v563
    %s566 = sld [smem:[#allocation2 + $0x1]]
    %v567 = vstv %s566
    %v568 = vmul.f32 %v567, %v290
    %s569 = sld [smem:[#allocation2 + $0x2]]
    %v570 = vstv %s569
    %v571 = vmul.f32 %v570, %v313
    %v572 = vadd.f32 %v568, %v571
    %s573 = sld [smem:[#allocation2 + $0x3]]
    %v574 = vstv %s573
    %v575 = vmul.f32 %v574, %v104
    %v576 = vadd.f32 %v572, %v575
    %v577 = vadd.f32 %v576, %v565
    %v578 = vadd.f32 %v577, %v463
    %s579 = scalar_lea.vmem %s5, 432
    %v580 = vld [vmem:[%s579] sm:$0xff]
    %v581 = vmul.f32 %v159, %v580
    %s582 = scalar_lea.vmem %s5, 576
    %v583 = vld [vmem:[%s582] sm:$0xff]
    %v584 = vmul.f32 %v246, %v583
    %s585 = scalar_lea.vmem %s5, 440
    %v586 = vld [vmem:[%s585] sm:$0xff]
    %v587 = vmul.f32 %v167, %v586
    %v588 = vadd.f32 %v581, %v587
    %s589 = scalar_lea.vmem %s5, 584
    %v590 = vld [vmem:[%s589] sm:$0xff]
    %v591 = vmul.f32 %v249, %v590
    %v592 = vadd.f32 %v584, %v591
    %s593 = scalar_lea.vmem %s5, 448
    %v594 = vld [vmem:[%s593] sm:$0xff]
    %v595 = vmul.f32 %v178, %v594
    %v596 = vadd.f32 %v588, %v595
    %s597 = scalar_lea.vmem %s5, 592
    %v598 = vld [vmem:[%s597] sm:$0xff]
    %v599 = vmul.f32 %v252, %v598
    %v600 = vadd.f32 %v592, %v599
    %s601 = scalar_lea.vmem %s5, 456
    %v602 = vld [vmem:[%s601] sm:$0xff]
    %v603 = vmul.f32 %v189, %v602
    %v604 = vadd.f32 %v596, %v603
    %s605 = scalar_lea.vmem %s5, 600
    %v606 = vld [vmem:[%s605] sm:$0xff]
    %v607 = vmul.f32 %v255, %v606
    %v608 = vadd.f32 %v600, %v607
    %s609 = scalar_lea.vmem %s5, 464
    %v610 = vld [vmem:[%s609] sm:$0xff]
    %v611 = vmul.f32 %v154, %v610
    %v612 = vadd.f32 %v604, %v611
    %s613 = scalar_lea.vmem %s5, 608
    %v614 = vld [vmem:[%s613] sm:$0xff]
    %v615 = vmul.f32 %v154, %v614
    %v616 = vadd.f32 %v608, %v615
    %s617 = scalar_lea.vmem %s5, 472
    %v618 = vld [vmem:[%s617] sm:$0xff]
    %v619 = vmul.f32 %v205, %v618
    %v620 = vadd.f32 %v612, %v619
    %s621 = scalar_lea.vmem %s5, 616
    %v622 = vld [vmem:[%s621] sm:$0xff]
    %v623 = vmul.f32 %v258, %v622
    %v624 = vadd.f32 %v616, %v623
    %s625 = scalar_lea.vmem %s5, 480
    %v626 = vld [vmem:[%s625] sm:$0xff]
    %v627 = vmul.f32 %v216, %v626
    %v628 = vadd.f32 %v620, %v627
    %s629 = scalar_lea.vmem %s5, 624
    %v630 = vld [vmem:[%s629] sm:$0xff]
    %v631 = vmul.f32 %v261, %v630
    %v632 = vadd.f32 %v624, %v631
    %s633 = scalar_lea.vmem %s5, 488
    %v634 = vld [vmem:[%s633] sm:$0xff]
    %v635 = vmul.f32 %v227, %v634
    %v636 = vadd.f32 %v628, %v635
    %s637 = scalar_lea.vmem %s5, 632
    %v638 = vld [vmem:[%s637] sm:$0xff]
    %v639 = vmul.f32 %v264, %v638
    %v640 = vadd.f32 %v632, %v639
    %s641 = scalar_lea.vmem %s5, 496
    %v642 = vld [vmem:[%s641] sm:$0xff]
    %v643 = vmul.f32 %v238, %v642
    %v644 = vadd.f32 %v636, %v643
    %s645 = scalar_lea.vmem %s5, 640
    %v646 = vld [vmem:[%s645] sm:$0xff]
    %v647 = vmul.f32 %v267, %v646
    %v648 = vadd.f32 %v640, %v647
    %s649 = scalar_lea.vmem %s6, 32
    %v650 = vld [vmem:[%s649] sm:$0xff]
    %v651 = vld [vmem:[%s649 + $0x8] sm:$0xff]
    %v653 = vsel %vm385, %v650, 0
    %v656 = vsel %vm385, %v651, 0
    %658 = vmatpush.msra.mxu0 0.0
    %659 = vmatpush.msra.mxu0 0.0
    %660 = vmatpush.msra.mxu0 0.0
    %661 = vmatpush.msra.mxu0 0.0
    %662 = vmatpush.msra.mxu0 0.0
    %663 = vmatpush.msra.mxu0 0.0
    %664 = vmatpush.msra.mxu0 0.0
    %665 = vmatpush.msra.mxu0 0.0
    %666 = vmatpush.msra.mxu0 0.0
    %667 = vmatpush.msra.mxu0 0.0
    %668 = vmatpush.msra.mxu0 0.0
    %669 = vmatpush.msra.mxu0 0.0
    %670 = vmatpush.msra.mxu0 0.0
    %671 = vmatpush.msra.mxu0 0.0
    %672 = vmatpush.msra.mxu0 %v648
    %673 = vmatpush.msra.mxu0 %v644
    %674 = vmatmul.f32.gmra.mxu0 %v653
    %v675 = vpop.f32.mrf.mxu0
    %v676 = vadd.f32 0.0, %v675
    %677 = vmatmul.f32.gmra.mxu0 %v656
    %v678 = vpop.f32.mrf.mxu0
    %v679 = vadd.f32 0.0, %v678
    %680 = vdwg.mxu0
    %681 = vadd.xlane.f32.xlu0 %v676
    %v682 = vpop.xlane.xlu0 %681
    %v683 = vmul.f32 %v682, %v83
    %v684 = vmul.f32 %v676, %v676
    %685 = vadd.xlane.f32.xlu0 %v684
    %v686 = vpop.xlane.xlu0 %685
    %v687 = vmul.f32 %v686, %v83
    %v688 = vmul.f32 %v683, %v683
    %v689 = vsub.f32 %v687, %v688
    %v690 = vmax.f32 %v689, 0.0
    %v691 = vadd.f32 %v690, 1e-05
    %v692 = vrsqrt.pop %v691
    %v693 = vmul.f32 %v692, %v691
    %v694 = vmul.f32 %v693, %v692
    %v695 = vmul.f32 0.5, %v694
    %v696 = vsub.f32 1.5, %v695
    %v697 = vmul.f32 %v692, %v696
    %vm698 = vweird.f32 %v691
    %vm699 = vweird.f32 %v692
    %vm700 = vmor %vm698, %vm699
    %v701 = vsel %vm700, %v692, %v697
    %v702 = vsub.f32 %v676, %v683
    %v703 = vmul.f32 %v702, %v701
    %s704 = sld [smem:[#allocation2 + $0x105]]
    %705 = vadd.xlane.f32.xlu0 %v679
    %v706 = vpop.xlane.xlu0 %705
    %v707 = vmul.f32 %v706, %v83
    %v708 = vmul.f32 %v679, %v679
    %709 = vadd.xlane.f32.xlu0 %v708
    %v710 = vpop.xlane.xlu0 %709
    %v711 = vmul.f32 %v710, %v83
    %v712 = vmul.f32 %v707, %v707
    %v713 = vsub.f32 %v711, %v712
    %v714 = vmax.f32 %v713, 0.0
    %v715 = vadd.f32 %v714, 1e-05
    %v716 = vrsqrt.pop %v715
    %v717 = vmul.f32 %v716, %v715
    %v718 = vmul.f32 %v717, %v716
    %v719 = vmul.f32 0.5, %v718
    %v720 = vsub.f32 1.5, %v719
    %v721 = vmul.f32 %v716, %v720
    %vm722 = vweird.f32 %v715
    %vm723 = vweird.f32 %v716
    %vm724 = vmor %vm722, %vm723
    %v725 = vsel %vm724, %v716, %v721
    %v726 = vstv %s704
    %v727 = vmul.f32 %v725, %v726
    %v728 = vsub.f32 %v679, %v707
    %v729 = vmul.f32 %v728, %v727
    %v730 = vmax.f32 %v703, 0.0
    %731 = vrot.lane.b32.xlu0 %v730, 9
    %v732 = vpop.permute.xlu0 %731
    %s733 = scalar_lea.vmem %s5, 504
    %v734 = vld [vmem:[%s733] sm:$0xff]
    %v735 = vmul.f32 %v732, %v734
    %736 = vrot.lane.b32.xlu0 %v730, 8
    %v737 = vpop.permute.xlu0 %736
    %s738 = scalar_lea.vmem %s5, 512
    %v739 = vld [vmem:[%s738] sm:$0xff]
    %v740 = vmul.f32 %v737, %v739
    %v741 = vadd.f32 %v735, %v740
    %742 = vrot.lane.b32.xlu0 %v730, 7
    %v743 = vpop.permute.xlu0 %742
    %s744 = scalar_lea.vmem %s5, 520
    %v745 = vld [vmem:[%s744] sm:$0xff]
    %v746 = vmul.f32 %v743, %v745
    %v747 = vadd.f32 %v741, %v746
    %748 = vrot.lane.b32.xlu0 %v730, 1
    %v749 = vpop.permute.xlu0 %748
    %s750 = scalar_lea.vmem %s5, 528
    %v751 = vld [vmem:[%s750] sm:$0xff]
    %v752 = vmul.f32 %v749, %v751
    %v753 = vadd.f32 %v747, %v752
    %s754 = scalar_lea.vmem %s5, 536
    %v755 = vld [vmem:[%s754] sm:$0xff]
    %v756 = vmul.f32 %v730, %v755
    %v757 = vadd.f32 %v753, %v756
    %758 = vrot.lane.b32.xlu0 %v730, 127
    %v759 = vpop.permute.xlu0 %758
    %s760 = scalar_lea.vmem %s5, 544
    %v761 = vld [vmem:[%s760] sm:$0xff]
    %v762 = vmul.f32 %v759, %v761
    %v763 = vadd.f32 %v757, %v762
    %764 = vrot.lane.b32.xlu0 %v730, 121
    %v765 = vpop.permute.xlu0 %764
    %s766 = scalar_lea.vmem %s5, 552
    %v767 = vld [vmem:[%s766] sm:$0xff]
    %v768 = vmul.f32 %v765, %v767
    %v769 = vadd.f32 %v763, %v768
    %770 = vrot.lane.b32.xlu0 %v730, 120
    %v771 = vpop.permute.xlu0 %770
    %s772 = scalar_lea.vmem %s5, 560
    %v773 = vld [vmem:[%s772] sm:$0xff]
    %v774 = vmul.f32 %v771, %v773
    %v775 = vadd.f32 %v769, %v774
    %776 = vrot.lane.b32.xlu0 %v730, 119
    %v777 = vpop.permute.xlu0 %776
    %s778 = scalar_lea.vmem %s5, 568
    %v779 = vld [vmem:[%s778] sm:$0xff]
    %v780 = vmul.f32 %v777, %v779
    %v781 = vadd.f32 %v775, %v780
    %s782 = scalar_lea.vmem %s7, 16
    %v783 = vld [vmem:[%s782] sm:$0xff]
    %s784 = sld [smem:[#allocation2 + $0x104]]
    %v786 = vsel %vm51, %v783, 0
    %788 = vmatpush.msra.mxu0 0.0
    %789 = vmatpush.msra.mxu0 0.0
    %790 = vmatpush.msra.mxu0 0.0
    %791 = vmatpush.msra.mxu0 0.0
    %792 = vmatpush.msra.mxu0 0.0
    %793 = vmatpush.msra.mxu0 0.0
    %794 = vmatpush.msra.mxu0 0.0
    %795 = vmatpush.msra.mxu0 0.0
    %796 = vmatpush.msra.mxu0 0.0
    %797 = vmatpush.msra.mxu0 0.0
    %798 = vmatpush.msra.mxu0 0.0
    %799 = vmatpush.msra.mxu0 0.0
    %800 = vmatpush.msra.mxu0 0.0
    %801 = vmatpush.msra.mxu0 0.0
    %802 = vmatpush.msra.mxu0 0.0
    %803 = vmatpush.msra.mxu0 %v781
    %804 = vmatmul.f32.gmra.mxu0 %v786
    %v805 = vpop.f32.mrf.mxu0
    %v806 = vadd.f32 0.0, %v805
    %807 = vdwg.mxu0
    %808 = vadd.xlane.f32.xlu0 %v806
    %v809 = vpop.xlane.xlu0 %808
    %v810 = vmul.f32 %v809, %v83
    %v811 = vmul.f32 %v806, %v806
    %812 = vadd.xlane.f32.xlu0 %v811
    %v813 = vpop.xlane.xlu0 %812
    %v814 = vmul.f32 %v813, %v83
    %v815 = vmul.f32 %v810, %v810
    %v816 = vsub.f32 %v814, %v815
    %v817 = vmax.f32 %v816, 0.0
    %v818 = vadd.f32 %v817, 1e-05
    %v819 = vrsqrt.pop %v818
    %v820 = vmul.f32 %v819, %v818
    %v821 = vmul.f32 %v820, %v819
    %v822 = vmul.f32 0.5, %v821
    %v823 = vsub.f32 1.5, %v822
    %v824 = vmul.f32 %v819, %v823
    %vm825 = vweird.f32 %v818
    %vm826 = vweird.f32 %v819
    %vm827 = vmor %vm825, %vm826
    %v828 = vsel %vm827, %v819, %v824
    %v829 = vstv %s784
    %v830 = vmul.f32 %v828, %v829
    %v831 = vsub.f32 %v806, %v810
    %v832 = vmul.f32 %v831, %v830
    %s833 = sld [smem:[#allocation2 + $0x101]]
    %v834 = vstv %s833
    %v835 = vmul.f32 %v834, %v290
    %s836 = sld [smem:[#allocation2 + $0x102]]
    %v837 = vstv %s836
    %v838 = vmul.f32 %v837, %v313
    %v839 = vadd.f32 %v835, %v838
    %s840 = sld [smem:[#allocation2 + $0x103]]
    %v841 = vstv %s840
    %v842 = vmul.f32 %v841, %v104
    %v843 = vadd.f32 %v839, %v842
    %v844 = vadd.f32 %v843, %v832
    %v845 = vadd.f32 %v844, %v729
    %v846 = vmax.f32 %v153, 0.0
    %847 = vrot.lane.b32.xlu0 %v153, 9
    %v848 = vpop.permute.xlu0 %847
    %v849 = vadd.f32 %v848, %v157
    %v850 = vmax.f32 %v848, 0.0
    %v851 = vmul.f32 %v848, %v160
    %852 = vrot.lane.b32.xlu0 %v153, 8
    %v853 = vpop.permute.xlu0 %852
    %v854 = vadd.f32 %v853, %v165
    %v855 = vmax.f32 %v853, 0.0
    %v856 = vmul.f32 %v853, %v169
    %v857 = vmax.f32 %v849, %v854
    %v858 = vadd.f32 %v851, %v856
    %859 = vrot.lane.b32.xlu0 %v153, 7
    %v860 = vpop.permute.xlu0 %859
    %v861 = vadd.f32 %v860, %v176
    %v862 = vmax.f32 %v860, 0.0
    %v863 = vmul.f32 %v860, %v180
    %v864 = vmax.f32 %v857, %v861
    %v865 = vadd.f32 %v858, %v863
    %866 = vrot.lane.b32.xlu0 %v153, 1
    %v867 = vpop.permute.xlu0 %866
    %v868 = vadd.f32 %v867, %v187
    %v869 = vmax.f32 %v867, 0.0
    %v870 = vmul.f32 %v867, %v191
    %v871 = vmax.f32 %v864, %v868
    %v872 = vadd.f32 %v865, %v870
    %v873 = vmul.f32 %v153, %v196
    %v874 = vmax.f32 %v871, %v153
    %v875 = vadd.f32 %v872, %v873
    %876 = vrot.lane.b32.xlu0 %v153, 127
    %v877 = vpop.permute.xlu0 %876
    %v878 = vadd.f32 %v877, %v203
    %v879 = vmax.f32 %v877, 0.0
    %v880 = vmul.f32 %v877, %v207
    %v881 = vmax.f32 %v874, %v878
    %v882 = vadd.f32 %v875, %v880
    %883 = vrot.lane.b32.xlu0 %v153, 121
    %v884 = vpop.permute.xlu0 %883
    %v885 = vadd.f32 %v884, %v214
    %v886 = vmax.f32 %v884, 0.0
    %v887 = vmul.f32 %v884, %v218
    %v888 = vmax.f32 %v881, %v885
    %v889 = vadd.f32 %v882, %v887
    %890 = vrot.lane.b32.xlu0 %v153, 120
    %v891 = vpop.permute.xlu0 %890
    %v892 = vadd.f32 %v891, %v225
    %v893 = vmax.f32 %v891, 0.0
    %v894 = vmul.f32 %v891, %v229
    %v895 = vmax.f32 %v888, %v892
    %v896 = vadd.f32 %v889, %v894
    %897 = vrot.lane.b32.xlu0 %v153, 119
    %v898 = vpop.permute.xlu0 %897
    %v899 = vadd.f32 %v898, %v236
    %v900 = vmax.f32 %v898, 0.0
    %v901 = vmul.f32 %v898, %v240
    %v902 = vmax.f32 %v895, %v899
    %v903 = vadd.f32 %v896, %v901
    %904 = vrot.lane.b32.xlu0 %v153, 18
    %v905 = vpop.permute.xlu0 %904
    %v906 = vmax.f32 %v905, 0.0
    %907 = vrot.lane.b32.xlu0 %v153, 16
    %v908 = vpop.permute.xlu0 %907
    %v909 = vmax.f32 %v908, 0.0
    %910 = vrot.lane.b32.xlu0 %v153, 14
    %v911 = vpop.permute.xlu0 %910
    %v912 = vmax.f32 %v911, 0.0
    %913 = vrot.lane.b32.xlu0 %v153, 2
    %v914 = vpop.permute.xlu0 %913
    %v915 = vmax.f32 %v914, 0.0
    %916 = vrot.lane.b32.xlu0 %v153, 126
    %v917 = vpop.permute.xlu0 %916
    %v918 = vmax.f32 %v917, 0.0
    %919 = vrot.lane.b32.xlu0 %v153, 114
    %v920 = vpop.permute.xlu0 %919
    %v921 = vmax.f32 %v920, 0.0
    %922 = vrot.lane.b32.xlu0 %v153, 112
    %v923 = vpop.permute.xlu0 %922
    %v924 = vmax.f32 %v923, 0.0
    %925 = vrot.lane.b32.xlu0 %v153, 110
    %v926 = vpop.permute.xlu0 %925
    %v927 = vmax.f32 %v926, 0.0
    %928 = vadd.xlane.f32.xlu0 %v902
    %v929 = vpop.xlane.xlu0 %928
    %v930 = vmul.f32 %v929, %v83
    %v931 = vmul.f32 %v902, %v902
    %932 = vadd.xlane.f32.xlu0 %v931
    %v933 = vpop.xlane.xlu0 %932
    %v934 = vmul.f32 %v933, %v83
    %v935 = vmul.f32 %v930, %v930
    %v936 = vsub.f32 %v934, %v935
    %v937 = vmax.f32 %v936, 0.0
    %v938 = vadd.f32 %v937, 1e-05
    %v939 = vrsqrt.pop %v938
    %v940 = vmul.f32 %v939, %v938
    %v941 = vmul.f32 %v940, %v939
    %v942 = vmul.f32 0.5, %v941
    %v943 = vsub.f32 1.5, %v942
    %v944 = vmul.f32 %v939, %v943
    %vm945 = vweird.f32 %v938
    %vm946 = vweird.f32 %v939
    %vm947 = vmor %vm945, %vm946
    %v948 = vsel %vm947, %v939, %v944
    %v949 = vsub.f32 %v902, %v930
    %v950 = vmul.f32 %v949, %v948
    %951 = vadd.xlane.f32.xlu0 %v903
    %v952 = vpop.xlane.xlu0 %951
    %v953 = vmul.f32 %v952, %v83
    %v954 = vmul.f32 %v903, %v903
    %955 = vadd.xlane.f32.xlu0 %v954
    %v956 = vpop.xlane.xlu0 %955
    %v957 = vmul.f32 %v956, %v83
    %v958 = vmul.f32 %v953, %v953
    %v959 = vsub.f32 %v957, %v958
    %v960 = vmax.f32 %v959, 0.0
    %v961 = vadd.f32 %v960, 1e-05
    %v962 = vrsqrt.pop %v961
    %v963 = vmul.f32 %v962, %v961
    %v964 = vmul.f32 %v963, %v962
    %v965 = vmul.f32 0.5, %v964
    %v966 = vsub.f32 1.5, %v965
    %v967 = vmul.f32 %v962, %v966
    %vm968 = vweird.f32 %v961
    %vm969 = vweird.f32 %v962
    %vm970 = vmor %vm968, %vm969
    %v971 = vsel %vm970, %v962, %v967
    %v972 = vsub.f32 %v903, %v953
    %v973 = vmul.f32 %v972, %v971
    %s974 = scalar_lea.vmem %s5, 216
    %v975 = vld [vmem:[%s974] sm:$0xff]
    %v976 = vmul.f32 %v850, %v975
    %s977 = scalar_lea.vmem %s5, 360
    %v978 = vld [vmem:[%s977] sm:$0xff]
    %v979 = vmul.f32 %v906, %v978
    %s980 = scalar_lea.vmem %s5, 224
    %v981 = vld [vmem:[%s980] sm:$0xff]
    %v982 = vmul.f32 %v855, %v981
    %v983 = vadd.f32 %v976, %v982
    %s984 = scalar_lea.vmem %s5, 368
    %v985 = vld [vmem:[%s984] sm:$0xff]
    %v986 = vmul.f32 %v909, %v985
    %v987 = vadd.f32 %v979, %v986
    %s988 = scalar_lea.vmem %s5, 232
    %v989 = vld [vmem:[%s988] sm:$0xff]
    %v990 = vmul.f32 %v862, %v989
    %v991 = vadd.f32 %v983, %v990
    %s992 = scalar_lea.vmem %s5, 376
    %v993 = vld [vmem:[%s992] sm:$0xff]
    %v994 = vmul.f32 %v912, %v993
    %v995 = vadd.f32 %v987, %v994
    %s996 = scalar_lea.vmem %s5, 240
    %v997 = vld [vmem:[%s996] sm:$0xff]
    %v998 = vmul.f32 %v869, %v997
    %v999 = vadd.f32 %v991, %v998
    %s1000 = scalar_lea.vmem %s5, 384
    %v1001 = vld [vmem:[%s1000] sm:$0xff]
    %v1002 = vmul.f32 %v915, %v1001
    %v1003 = vadd.f32 %v995, %v1002
    %s1004 = scalar_lea.vmem %s5, 248
    %v1005 = vld [vmem:[%s1004] sm:$0xff]
    %v1006 = vmul.f32 %v846, %v1005
    %v1007 = vadd.f32 %v999, %v1006
    %s1008 = scalar_lea.vmem %s5, 392
    %v1009 = vld [vmem:[%s1008] sm:$0xff]
    %v1010 = vmul.f32 %v846, %v1009
    %v1011 = vadd.f32 %v1003, %v1010
    %s1012 = scalar_lea.vmem %s5, 256
    %v1013 = vld [vmem:[%s1012] sm:$0xff]
    %v1014 = vmul.f32 %v879, %v1013
    %v1015 = vadd.f32 %v1007, %v1014
    %s1016 = scalar_lea.vmem %s5, 400
    %v1017 = vld [vmem:[%s1016] sm:$0xff]
    %v1018 = vmul.f32 %v918, %v1017
    %v1019 = vadd.f32 %v1011, %v1018
    %s1020 = scalar_lea.vmem %s5, 264
    %v1021 = vld [vmem:[%s1020] sm:$0xff]
    %v1022 = vmul.f32 %v886, %v1021
    %v1023 = vadd.f32 %v1015, %v1022
    %s1024 = scalar_lea.vmem %s5, 408
    %v1025 = vld [vmem:[%s1024] sm:$0xff]
    %v1026 = vmul.f32 %v921, %v1025
    %v1027 = vadd.f32 %v1019, %v1026
    %s1028 = scalar_lea.vmem %s5, 272
    %v1029 = vld [vmem:[%s1028] sm:$0xff]
    %v1030 = vmul.f32 %v893, %v1029
    %v1031 = vadd.f32 %v1023, %v1030
    %s1032 = scalar_lea.vmem %s5, 416
    %v1033 = vld [vmem:[%s1032] sm:$0xff]
    %v1034 = vmul.f32 %v924, %v1033
    %v1035 = vadd.f32 %v1027, %v1034
    %s1036 = scalar_lea.vmem %s5, 280
    %v1037 = vld [vmem:[%s1036] sm:$0xff]
    %v1038 = vmul.f32 %v900, %v1037
    %v1039 = vadd.f32 %v1031, %v1038
    %s1040 = scalar_lea.vmem %s5, 424
    %v1041 = vld [vmem:[%s1040] sm:$0xff]
    %v1042 = vmul.f32 %v927, %v1041
    %v1043 = vadd.f32 %v1035, %v1042
    %s1044 = scalar_lea.vmem %s6, 16
    %v1045 = vld [vmem:[%s1044] sm:$0xff]
    %v1046 = vld [vmem:[%s1044 + $0x8] sm:$0xff]
    %v1048 = vsel %vm385, %v1045, 0
    %v1051 = vsel %vm385, %v1046, 0
    %1053 = vmatpush.msra.mxu0 0.0
    %1054 = vmatpush.msra.mxu0 0.0
    %1055 = vmatpush.msra.mxu0 0.0
    %1056 = vmatpush.msra.mxu0 0.0
    %1057 = vmatpush.msra.mxu0 0.0
    %1058 = vmatpush.msra.mxu0 0.0
    %1059 = vmatpush.msra.mxu0 0.0
    %1060 = vmatpush.msra.mxu0 0.0
    %1061 = vmatpush.msra.mxu0 0.0
    %1062 = vmatpush.msra.mxu0 0.0
    %1063 = vmatpush.msra.mxu0 0.0
    %1064 = vmatpush.msra.mxu0 0.0
    %1065 = vmatpush.msra.mxu0 0.0
    %1066 = vmatpush.msra.mxu0 0.0
    %1067 = vmatpush.msra.mxu0 %v1043
    %1068 = vmatpush.msra.mxu0 %v1039
    %1069 = vmatmul.f32.gmra.mxu0 %v1048
    %v1070 = vpop.f32.mrf.mxu0
    %v1071 = vadd.f32 0.0, %v1070
    %1072 = vmatmul.f32.gmra.mxu0 %v1051
    %v1073 = vpop.f32.mrf.mxu0
    %v1074 = vadd.f32 0.0, %v1073
    %1075 = vdwg.mxu0
    %1076 = vadd.xlane.f32.xlu0 %v1071
    %v1077 = vpop.xlane.xlu0 %1076
    %v1078 = vmul.f32 %v1077, %v83
    %v1079 = vmul.f32 %v1071, %v1071
    %1080 = vadd.xlane.f32.xlu0 %v1079
    %v1081 = vpop.xlane.xlu0 %1080
    %v1082 = vmul.f32 %v1081, %v83
    %v1083 = vmul.f32 %v1078, %v1078
    %v1084 = vsub.f32 %v1082, %v1083
    %v1085 = vmax.f32 %v1084, 0.0
    %v1086 = vadd.f32 %v1085, 1e-05
    %v1087 = vrsqrt.pop %v1086
    %v1088 = vmul.f32 %v1087, %v1086
    %v1089 = vmul.f32 %v1088, %v1087
    %v1090 = vmul.f32 0.5, %v1089
    %v1091 = vsub.f32 1.5, %v1090
    %v1092 = vmul.f32 %v1087, %v1091
    %vm1093 = vweird.f32 %v1086
    %vm1094 = vweird.f32 %v1087
    %vm1095 = vmor %vm1093, %vm1094
    %v1096 = vsel %vm1095, %v1087, %v1092
    %v1097 = vsub.f32 %v1071, %v1078
    %v1098 = vmul.f32 %v1097, %v1096
    %s1099 = sld [smem:[#allocation2 + $0x85]]
    %1100 = vadd.xlane.f32.xlu0 %v1074
    %v1101 = vpop.xlane.xlu0 %1100
    %v1102 = vmul.f32 %v1101, %v83
    %v1103 = vmul.f32 %v1074, %v1074
    %1104 = vadd.xlane.f32.xlu0 %v1103
    %v1105 = vpop.xlane.xlu0 %1104
    %v1106 = vmul.f32 %v1105, %v83
    %v1107 = vmul.f32 %v1102, %v1102
    %v1108 = vsub.f32 %v1106, %v1107
    %v1109 = vmax.f32 %v1108, 0.0
    %v1110 = vadd.f32 %v1109, 1e-05
    %v1111 = vrsqrt.pop %v1110
    %v1112 = vmul.f32 %v1111, %v1110
    %v1113 = vmul.f32 %v1112, %v1111
    %v1114 = vmul.f32 0.5, %v1113
    %v1115 = vsub.f32 1.5, %v1114
    %v1116 = vmul.f32 %v1111, %v1115
    %vm1117 = vweird.f32 %v1110
    %vm1118 = vweird.f32 %v1111
    %vm1119 = vmor %vm1117, %vm1118
    %v1120 = vsel %vm1119, %v1111, %v1116
    %v1121 = vstv %s1099
    %v1122 = vmul.f32 %v1120, %v1121
    %v1123 = vsub.f32 %v1074, %v1102
    %v1124 = vmul.f32 %v1123, %v1122
    %v1125 = vmax.f32 %v1098, 0.0
    %1126 = vrot.lane.b32.xlu0 %v1125, 9
    %v1127 = vpop.permute.xlu0 %1126
    %s1128 = scalar_lea.vmem %s5, 288
    %v1129 = vld [vmem:[%s1128] sm:$0xff]
    %v1130 = vmul.f32 %v1127, %v1129
    %1131 = vrot.lane.b32.xlu0 %v1125, 8
    %v1132 = vpop.permute.xlu0 %1131
    %s1133 = scalar_lea.vmem %s5, 296
    %v1134 = vld [vmem:[%s1133] sm:$0xff]
    %v1135 = vmul.f32 %v1132, %v1134
    %v1136 = vadd.f32 %v1130, %v1135
    %1137 = vrot.lane.b32.xlu0 %v1125, 7
    %v1138 = vpop.permute.xlu0 %1137
    %s1139 = scalar_lea.vmem %s5, 304
    %v1140 = vld [vmem:[%s1139] sm:$0xff]
    %v1141 = vmul.f32 %v1138, %v1140
    %v1142 = vadd.f32 %v1136, %v1141
    %1143 = vrot.lane.b32.xlu0 %v1125, 1
    %v1144 = vpop.permute.xlu0 %1143
    %s1145 = scalar_lea.vmem %s5, 312
    %v1146 = vld [vmem:[%s1145] sm:$0xff]
    %v1147 = vmul.f32 %v1144, %v1146
    %v1148 = vadd.f32 %v1142, %v1147
    %s1149 = scalar_lea.vmem %s5, 320
    %v1150 = vld [vmem:[%s1149] sm:$0xff]
    %v1151 = vmul.f32 %v1125, %v1150
    %v1152 = vadd.f32 %v1148, %v1151
    %1153 = vrot.lane.b32.xlu0 %v1125, 127
    %v1154 = vpop.permute.xlu0 %1153
    %s1155 = scalar_lea.vmem %s5, 328
    %v1156 = vld [vmem:[%s1155] sm:$0xff]
    %v1157 = vmul.f32 %v1154, %v1156
    %v1158 = vadd.f32 %v1152, %v1157
    %1159 = vrot.lane.b32.xlu0 %v1125, 121
    %v1160 = vpop.permute.xlu0 %1159
    %s1161 = scalar_lea.vmem %s5, 336
    %v1162 = vld [vmem:[%s1161] sm:$0xff]
    %v1163 = vmul.f32 %v1160, %v1162
    %v1164 = vadd.f32 %v1158, %v1163
    %1165 = vrot.lane.b32.xlu0 %v1125, 120
    %v1166 = vpop.permute.xlu0 %1165
    %s1167 = scalar_lea.vmem %s5, 344
    %v1168 = vld [vmem:[%s1167] sm:$0xff]
    %v1169 = vmul.f32 %v1166, %v1168
    %v1170 = vadd.f32 %v1164, %v1169
    %1171 = vrot.lane.b32.xlu0 %v1125, 119
    %v1172 = vpop.permute.xlu0 %1171
    %s1173 = scalar_lea.vmem %s5, 352
    %v1174 = vld [vmem:[%s1173] sm:$0xff]
    %v1175 = vmul.f32 %v1172, %v1174
    %v1176 = vadd.f32 %v1170, %v1175
    %s1177 = scalar_lea.vmem %s7, 8
    %v1178 = vld [vmem:[%s1177] sm:$0xff]
    %s1179 = sld [smem:[#allocation2 + $0x84]]
    %v1181 = vsel %vm51, %v1178, 0
    %1183 = vmatpush.msra.mxu0 0.0
    %1184 = vmatpush.msra.mxu0 0.0
    %1185 = vmatpush.msra.mxu0 0.0
    %1186 = vmatpush.msra.mxu0 0.0
    %1187 = vmatpush.msra.mxu0 0.0
    %1188 = vmatpush.msra.mxu0 0.0
    %1189 = vmatpush.msra.mxu0 0.0
    %1190 = vmatpush.msra.mxu0 0.0
    %1191 = vmatpush.msra.mxu0 0.0
    %1192 = vmatpush.msra.mxu0 0.0
    %1193 = vmatpush.msra.mxu0 0.0
    %1194 = vmatpush.msra.mxu0 0.0
    %1195 = vmatpush.msra.mxu0 0.0
    %1196 = vmatpush.msra.mxu0 0.0
    %1197 = vmatpush.msra.mxu0 0.0
    %1198 = vmatpush.msra.mxu0 %v1176
    %1199 = vmatmul.f32.gmra.mxu0 %v1181
    %v1200 = vpop.f32.mrf.mxu0
    %v1201 = vadd.f32 0.0, %v1200
    %1202 = vdwg.mxu0
    %1203 = vadd.xlane.f32.xlu0 %v1201
    %v1204 = vpop.xlane.xlu0 %1203
    %v1205 = vmul.f32 %v1204, %v83
    %v1206 = vmul.f32 %v1201, %v1201
    %1207 = vadd.xlane.f32.xlu0 %v1206
    %v1208 = vpop.xlane.xlu0 %1207
    %v1209 = vmul.f32 %v1208, %v83
    %v1210 = vmul.f32 %v1205, %v1205
    %v1211 = vsub.f32 %v1209, %v1210
    %v1212 = vmax.f32 %v1211, 0.0
    %v1213 = vadd.f32 %v1212, 1e-05
    %v1214 = vrsqrt.pop %v1213
    %v1215 = vmul.f32 %v1214, %v1213
    %v1216 = vmul.f32 %v1215, %v1214
    %v1217 = vmul.f32 0.5, %v1216
    %v1218 = vsub.f32 1.5, %v1217
    %v1219 = vmul.f32 %v1214, %v1218
    %vm1220 = vweird.f32 %v1213
    %vm1221 = vweird.f32 %v1214
    %vm1222 = vmor %vm1220, %vm1221
    %v1223 = vsel %vm1222, %v1214, %v1219
    %v1224 = vstv %s1179
    %v1225 = vmul.f32 %v1223, %v1224
    %v1226 = vsub.f32 %v1201, %v1205
    %v1227 = vmul.f32 %v1226, %v1225
    %s1228 = sld [smem:[#allocation2 + $0x81]]
    %v1229 = vstv %s1228
    %v1230 = vmul.f32 %v1229, %v950
    %s1231 = sld [smem:[#allocation2 + $0x82]]
    %v1232 = vstv %s1231
    %v1233 = vmul.f32 %v1232, %v973
    %v1234 = vadd.f32 %v1230, %v1233
    %s1235 = sld [smem:[#allocation2 + $0x83]]
    %v1236 = vstv %s1235
    %v1237 = vmul.f32 %v1236, %v153
    %v1238 = vadd.f32 %v1234, %v1237
    %v1239 = vadd.f32 %v1238, %v1227
    %v1240 = vadd.f32 %v1239, %v1124
    %v1241 = vadd.f32 %v578, %v1240
    %s1242 = scalar_lea.vmem %s5, 648
    %v1243 = vld [vmem:[%s1242] sm:$0xff]
    %v1244 = vmul.f32 %v850, %v1243
    %s1245 = scalar_lea.vmem %s5, 792
    %v1246 = vld [vmem:[%s1245] sm:$0xff]
    %v1247 = vmul.f32 %v906, %v1246
    %s1248 = scalar_lea.vmem %s5, 656
    %v1249 = vld [vmem:[%s1248] sm:$0xff]
    %v1250 = vmul.f32 %v855, %v1249
    %v1251 = vadd.f32 %v1244, %v1250
    %s1252 = scalar_lea.vmem %s5, 800
    %v1253 = vld [vmem:[%s1252] sm:$0xff]
    %v1254 = vmul.f32 %v909, %v1253
    %v1255 = vadd.f32 %v1247, %v1254
    %s1256 = scalar_lea.vmem %s5, 664
    %v1257 = vld [vmem:[%s1256] sm:$0xff]
    %v1258 = vmul.f32 %v862, %v1257
    %v1259 = vadd.f32 %v1251, %v1258
    %s1260 = scalar_lea.vmem %s5, 808
    %v1261 = vld [vmem:[%s1260] sm:$0xff]
    %v1262 = vmul.f32 %v912, %v1261
    %v1263 = vadd.f32 %v1255, %v1262
    %s1264 = scalar_lea.vmem %s5, 672
    %v1265 = vld [vmem:[%s1264] sm:$0xff]
    %v1266 = vmul.f32 %v869, %v1265
    %v1267 = vadd.f32 %v1259, %v1266
    %s1268 = scalar_lea.vmem %s5, 816
    %v1269 = vld [vmem:[%s1268] sm:$0xff]
    %v1270 = vmul.f32 %v915, %v1269
    %v1271 = vadd.f32 %v1263, %v1270
    %s1272 = scalar_lea.vmem %s5, 680
    %v1273 = vld [vmem:[%s1272] sm:$0xff]
    %v1274 = vmul.f32 %v846, %v1273
    %v1275 = vadd.f32 %v1267, %v1274
    %s1276 = scalar_lea.vmem %s5, 824
    %v1277 = vld [vmem:[%s1276] sm:$0xff]
    %v1278 = vmul.f32 %v846, %v1277
    %v1279 = vadd.f32 %v1271, %v1278
    %s1280 = scalar_lea.vmem %s5, 688
    %v1281 = vld [vmem:[%s1280] sm:$0xff]
    %v1282 = vmul.f32 %v879, %v1281
    %v1283 = vadd.f32 %v1275, %v1282
    %s1284 = scalar_lea.vmem %s5, 832
    %v1285 = vld [vmem:[%s1284] sm:$0xff]
    %v1286 = vmul.f32 %v918, %v1285
    %v1287 = vadd.f32 %v1279, %v1286
    %s1288 = scalar_lea.vmem %s5, 696
    %v1289 = vld [vmem:[%s1288] sm:$0xff]
    %v1290 = vmul.f32 %v886, %v1289
    %v1291 = vadd.f32 %v1283, %v1290
    %s1292 = scalar_lea.vmem %s5, 840
    %v1293 = vld [vmem:[%s1292] sm:$0xff]
    %v1294 = vmul.f32 %v921, %v1293
    %v1295 = vadd.f32 %v1287, %v1294
    %s1296 = scalar_lea.vmem %s5, 704
    %v1297 = vld [vmem:[%s1296] sm:$0xff]
    %v1298 = vmul.f32 %v893, %v1297
    %v1299 = vadd.f32 %v1291, %v1298
    %s1300 = scalar_lea.vmem %s5, 848
    %v1301 = vld [vmem:[%s1300] sm:$0xff]
    %v1302 = vmul.f32 %v924, %v1301
    %v1303 = vadd.f32 %v1295, %v1302
    %s1304 = scalar_lea.vmem %s5, 712
    %v1305 = vld [vmem:[%s1304] sm:$0xff]
    %v1306 = vmul.f32 %v900, %v1305
    %v1307 = vadd.f32 %v1299, %v1306
    %s1308 = scalar_lea.vmem %s5, 856
    %v1309 = vld [vmem:[%s1308] sm:$0xff]
    %v1310 = vmul.f32 %v927, %v1309
    %v1311 = vadd.f32 %v1303, %v1310
    %s1312 = scalar_lea.vmem %s6, 48
    %v1313 = vld [vmem:[%s1312] sm:$0xff]
    %v1314 = vld [vmem:[%s1312 + $0x8] sm:$0xff]
    %v1316 = vsel %vm385, %v1313, 0
    %v1319 = vsel %vm385, %v1314, 0
    %1321 = vmatpush.msra.mxu0 0.0
    %1322 = vmatpush.msra.mxu0 0.0
    %1323 = vmatpush.msra.mxu0 0.0
    %1324 = vmatpush.msra.mxu0 0.0
    %1325 = vmatpush.msra.mxu0 0.0
    %1326 = vmatpush.msra.mxu0 0.0
    %1327 = vmatpush.msra.mxu0 0.0
    %1328 = vmatpush.msra.mxu0 0.0
    %1329 = vmatpush.msra.mxu0 0.0
    %1330 = vmatpush.msra.mxu0 0.0
    %1331 = vmatpush.msra.mxu0 0.0
    %1332 = vmatpush.msra.mxu0 0.0
    %1333 = vmatpush.msra.mxu0 0.0
    %1334 = vmatpush.msra.mxu0 0.0
    %1335 = vmatpush.msra.mxu0 %v1311
    %1336 = vmatpush.msra.mxu0 %v1307
    %1337 = vmatmul.f32.gmra.mxu0 %v1316
    %v1338 = vpop.f32.mrf.mxu0
    %v1339 = vadd.f32 0.0, %v1338
    %1340 = vmatmul.f32.gmra.mxu0 %v1319
    %v1341 = vpop.f32.mrf.mxu0
    %v1342 = vadd.f32 0.0, %v1341
    %1343 = vdwg.mxu0
    %1344 = vadd.xlane.f32.xlu0 %v1339
    %v1345 = vpop.xlane.xlu0 %1344
    %v1346 = vmul.f32 %v1345, %v83
    %v1347 = vmul.f32 %v1339, %v1339
    %1348 = vadd.xlane.f32.xlu0 %v1347
    %v1349 = vpop.xlane.xlu0 %1348
    %v1350 = vmul.f32 %v1349, %v83
    %v1351 = vmul.f32 %v1346, %v1346
    %v1352 = vsub.f32 %v1350, %v1351
    %v1353 = vmax.f32 %v1352, 0.0
    %v1354 = vadd.f32 %v1353, 1e-05
    %v1355 = vrsqrt.pop %v1354
    %v1356 = vmul.f32 %v1355, %v1354
    %v1357 = vmul.f32 %v1356, %v1355
    %v1358 = vmul.f32 0.5, %v1357
    %v1359 = vsub.f32 1.5, %v1358
    %v1360 = vmul.f32 %v1355, %v1359
    %vm1361 = vweird.f32 %v1354
    %vm1362 = vweird.f32 %v1355
    %vm1363 = vmor %vm1361, %vm1362
    %v1364 = vsel %vm1363, %v1355, %v1360
    %v1365 = vsub.f32 %v1339, %v1346
    %v1366 = vmul.f32 %v1365, %v1364
    %s1367 = sld [smem:[#allocation2 + $0x185]]
    %1368 = vadd.xlane.f32.xlu0 %v1342
    %v1369 = vpop.xlane.xlu0 %1368
    %v1370 = vmul.f32 %v1369, %v83
    %v1371 = vmul.f32 %v1342, %v1342
    %1372 = vadd.xlane.f32.xlu0 %v1371
    %v1373 = vpop.xlane.xlu0 %1372
    %v1374 = vmul.f32 %v1373, %v83
    %v1375 = vmul.f32 %v1370, %v1370
    %v1376 = vsub.f32 %v1374, %v1375
    %v1377 = vmax.f32 %v1376, 0.0
    %v1378 = vadd.f32 %v1377, 1e-05
    %v1379 = vrsqrt.pop %v1378
    %v1380 = vmul.f32 %v1379, %v1378
    %v1381 = vmul.f32 %v1380, %v1379
    %v1382 = vmul.f32 0.5, %v1381
    %v1383 = vsub.f32 1.5, %v1382
    %v1384 = vmul.f32 %v1379, %v1383
    %vm1385 = vweird.f32 %v1378
    %vm1386 = vweird.f32 %v1379
    %vm1387 = vmor %vm1385, %vm1386
    %v1388 = vsel %vm1387, %v1379, %v1384
    %v1389 = vstv %s1367
    %v1390 = vmul.f32 %v1388, %v1389
    %v1391 = vsub.f32 %v1342, %v1370
    %v1392 = vmul.f32 %v1391, %v1390
    %v1393 = vmax.f32 %v1366, 0.0
    %1394 = vrot.lane.b32.xlu0 %v1393, 9
    %v1395 = vpop.permute.xlu0 %1394
    %s1396 = scalar_lea.vmem %s5, 720
    %v1397 = vld [vmem:[%s1396] sm:$0xff]
    %v1398 = vmul.f32 %v1395, %v1397
    %1399 = vrot.lane.b32.xlu0 %v1393, 8
    %v1400 = vpop.permute.xlu0 %1399
    %s1401 = scalar_lea.vmem %s5, 728
    %v1402 = vld [vmem:[%s1401] sm:$0xff]
    %v1403 = vmul.f32 %v1400, %v1402
    %v1404 = vadd.f32 %v1398, %v1403
    %1405 = vrot.lane.b32.xlu0 %v1393, 7
    %v1406 = vpop.permute.xlu0 %1405
    %s1407 = scalar_lea.vmem %s5, 736
    %v1408 = vld [vmem:[%s1407] sm:$0xff]
    %v1409 = vmul.f32 %v1406, %v1408
    %v1410 = vadd.f32 %v1404, %v1409
    %1411 = vrot.lane.b32.xlu0 %v1393, 1
    %v1412 = vpop.permute.xlu0 %1411
    %s1413 = scalar_lea.vmem %s5, 744
    %v1414 = vld [vmem:[%s1413] sm:$0xff]
    %v1415 = vmul.f32 %v1412, %v1414
    %v1416 = vadd.f32 %v1410, %v1415
    %s1417 = scalar_lea.vmem %s5, 752
    %v1418 = vld [vmem:[%s1417] sm:$0xff]
    %v1419 = vmul.f32 %v1393, %v1418
    %v1420 = vadd.f32 %v1416, %v1419
    %1421 = vrot.lane.b32.xlu0 %v1393, 127
    %v1422 = vpop.permute.xlu0 %1421
    %s1423 = scalar_lea.vmem %s5, 760
    %v1424 = vld [vmem:[%s1423] sm:$0xff]
    %v1425 = vmul.f32 %v1422, %v1424
    %v1426 = vadd.f32 %v1420, %v1425
    %1427 = vrot.lane.b32.xlu0 %v1393, 121
    %v1428 = vpop.permute.xlu0 %1427
    %s1429 = scalar_lea.vmem %s5, 768
    %v1430 = vld [vmem:[%s1429] sm:$0xff]
    %v1431 = vmul.f32 %v1428, %v1430
    %v1432 = vadd.f32 %v1426, %v1431
    %1433 = vrot.lane.b32.xlu0 %v1393, 120
    %v1434 = vpop.permute.xlu0 %1433
    %s1435 = scalar_lea.vmem %s5, 776
    %v1436 = vld [vmem:[%s1435] sm:$0xff]
    %v1437 = vmul.f32 %v1434, %v1436
    %v1438 = vadd.f32 %v1432, %v1437
    %1439 = vrot.lane.b32.xlu0 %v1393, 119
    %v1440 = vpop.permute.xlu0 %1439
    %s1441 = scalar_lea.vmem %s5, 784
    %v1442 = vld [vmem:[%s1441] sm:$0xff]
    %v1443 = vmul.f32 %v1440, %v1442
    %v1444 = vadd.f32 %v1438, %v1443
    %s1445 = scalar_lea.vmem %s7, 24
    %v1446 = vld [vmem:[%s1445] sm:$0xff]
    %s1447 = sld [smem:[#allocation2 + $0x184]]
    %v1449 = vsel %vm51, %v1446, 0
    %1451 = vmatpush.msra.mxu0 0.0
    %1452 = vmatpush.msra.mxu0 0.0
    %1453 = vmatpush.msra.mxu0 0.0
    %1454 = vmatpush.msra.mxu0 0.0
    %1455 = vmatpush.msra.mxu0 0.0
    %1456 = vmatpush.msra.mxu0 0.0
    %1457 = vmatpush.msra.mxu0 0.0
    %1458 = vmatpush.msra.mxu0 0.0
    %1459 = vmatpush.msra.mxu0 0.0
    %1460 = vmatpush.msra.mxu0 0.0
    %1461 = vmatpush.msra.mxu0 0.0
    %1462 = vmatpush.msra.mxu0 0.0
    %1463 = vmatpush.msra.mxu0 0.0
    %1464 = vmatpush.msra.mxu0 0.0
    %1465 = vmatpush.msra.mxu0 0.0
    %1466 = vmatpush.msra.mxu0 %v1444
    %1467 = vmatmul.f32.gmra.mxu0 %v1449
    %v1468 = vpop.f32.mrf.mxu0
    %v1469 = vadd.f32 0.0, %v1468
    %1470 = vdwg.mxu0
    %1471 = vadd.xlane.f32.xlu0 %v1469
    %v1472 = vpop.xlane.xlu0 %1471
    %v1473 = vmul.f32 %v1472, %v83
    %v1474 = vmul.f32 %v1469, %v1469
    %1475 = vadd.xlane.f32.xlu0 %v1474
    %v1476 = vpop.xlane.xlu0 %1475
    %v1477 = vmul.f32 %v1476, %v83
    %v1478 = vmul.f32 %v1473, %v1473
    %v1479 = vsub.f32 %v1477, %v1478
    %v1480 = vmax.f32 %v1479, 0.0
    %v1481 = vadd.f32 %v1480, 1e-05
    %v1482 = vrsqrt.pop %v1481
    %v1483 = vmul.f32 %v1482, %v1481
    %v1484 = vmul.f32 %v1483, %v1482
    %v1485 = vmul.f32 0.5, %v1484
    %v1486 = vsub.f32 1.5, %v1485
    %v1487 = vmul.f32 %v1482, %v1486
    %vm1488 = vweird.f32 %v1481
    %vm1489 = vweird.f32 %v1482
    %vm1490 = vmor %vm1488, %vm1489
    %v1491 = vsel %vm1490, %v1482, %v1487
    %v1492 = vstv %s1447
    %v1493 = vmul.f32 %v1491, %v1492
    %v1494 = vsub.f32 %v1469, %v1473
    %v1495 = vmul.f32 %v1494, %v1493
    %s1496 = sld [smem:[#allocation2 + $0x181]]
    %v1497 = vstv %s1496
    %v1498 = vmul.f32 %v1497, %v950
    %s1499 = sld [smem:[#allocation2 + $0x182]]
    %v1500 = vstv %s1499
    %v1501 = vmul.f32 %v1500, %v973
    %v1502 = vadd.f32 %v1498, %v1501
    %s1503 = sld [smem:[#allocation2 + $0x183]]
    %v1504 = vstv %s1503
    %v1505 = vmul.f32 %v1504, %v153
    %v1506 = vadd.f32 %v1502, %v1505
    %v1507 = vadd.f32 %v1506, %v1495
    %v1508 = vadd.f32 %v1507, %v1392
    %v1509 = vadd.f32 %v845, %v1508
    %v1510 = vmax.f32 %v1241, 0.0
    %1511 = vrot.lane.b32.xlu0 %v1241, 9
    %v1512 = vpop.permute.xlu0 %1511
    %v1513 = vadd.f32 %v1512, %v157
    %v1514 = vmax.f32 %v1512, 0.0
    %v1515 = vmul.f32 %v1512, %v160
    %1516 = vrot.lane.b32.xlu0 %v1241, 8
    %v1517 = vpop.permute.xlu0 %1516
    %v1518 = vadd.f32 %v1517, %v165
    %v1519 = vmax.f32 %v1517, 0.0
    %v1520 = vmul.f32 %v1517, %v169
    %v1521 = vmax.f32 %v1513, %v1518
    %v1522 = vadd.f32 %v1515, %v1520
    %1523 = vrot.lane.b32.xlu0 %v1241, 7
    %v1524 = vpop.permute.xlu0 %1523
    %v1525 = vadd.f32 %v1524, %v176
    %v1526 = vmax.f32 %v1524, 0.0
    %v1527 = vmul.f32 %v1524, %v180
    %v1528 = vmax.f32 %v1521, %v1525
    %v1529 = vadd.f32 %v1522, %v1527
    %1530 = vrot.lane.b32.xlu0 %v1241, 1
    %v1531 = vpop.permute.xlu0 %1530
    %v1532 = vadd.f32 %v1531, %v187
    %v1533 = vmax.f32 %v1531, 0.0
    %v1534 = vmul.f32 %v1531, %v191
    %v1535 = vmax.f32 %v1528, %v1532
    %v1536 = vadd.f32 %v1529, %v1534
    %v1537 = vmul.f32 %v1241, %v196
    %v1538 = vmax.f32 %v1535, %v1241
    %v1539 = vadd.f32 %v1536, %v1537
    %1540 = vrot.lane.b32.xlu0 %v1241, 127
    %v1541 = vpop.permute.xlu0 %1540
    %v1542 = vadd.f32 %v1541, %v203
    %v1543 = vmax.f32 %v1541, 0.0
    %v1544 = vmul.f32 %v1541, %v207
    %v1545 = vmax.f32 %v1538, %v1542
    %v1546 = vadd.f32 %v1539, %v1544
    %1547 = vrot.lane.b32.xlu0 %v1241, 121
    %v1548 = vpop.permute.xlu0 %1547
    %v1549 = vadd.f32 %v1548, %v214
    %v1550 = vmax.f32 %v1548, 0.0
    %v1551 = vmul.f32 %v1548, %v218
    %v1552 = vmax.f32 %v1545, %v1549
    %v1553 = vadd.f32 %v1546, %v1551
    %1554 = vrot.lane.b32.xlu0 %v1241, 120
    %v1555 = vpop.permute.xlu0 %1554
    %v1556 = vadd.f32 %v1555, %v225
    %v1557 = vmax.f32 %v1555, 0.0
    %v1558 = vmul.f32 %v1555, %v229
    %v1559 = vmax.f32 %v1552, %v1556
    %v1560 = vadd.f32 %v1553, %v1558
    %1561 = vrot.lane.b32.xlu0 %v1241, 119
    %v1562 = vpop.permute.xlu0 %1561
    %v1563 = vadd.f32 %v1562, %v236
    %v1564 = vmax.f32 %v1562, 0.0
    %v1565 = vmul.f32 %v1562, %v240
    %v1566 = vmax.f32 %v1559, %v1563
    %v1567 = vadd.f32 %v1560, %v1565
    %1568 = vrot.lane.b32.xlu0 %v1241, 18
    %v1569 = vpop.permute.xlu0 %1568
    %v1570 = vmax.f32 %v1569, 0.0
    %1571 = vrot.lane.b32.xlu0 %v1241, 16
    %v1572 = vpop.permute.xlu0 %1571
    %v1573 = vmax.f32 %v1572, 0.0
    %1574 = vrot.lane.b32.xlu0 %v1241, 14
    %v1575 = vpop.permute.xlu0 %1574
    %v1576 = vmax.f32 %v1575, 0.0
    %1577 = vrot.lane.b32.xlu0 %v1241, 2
    %v1578 = vpop.permute.xlu0 %1577
    %v1579 = vmax.f32 %v1578, 0.0
    %1580 = vrot.lane.b32.xlu0 %v1241, 126
    %v1581 = vpop.permute.xlu0 %1580
    %v1582 = vmax.f32 %v1581, 0.0
    %1583 = vrot.lane.b32.xlu0 %v1241, 114
    %v1584 = vpop.permute.xlu0 %1583
    %v1585 = vmax.f32 %v1584, 0.0
    %1586 = vrot.lane.b32.xlu0 %v1241, 112
    %v1587 = vpop.permute.xlu0 %1586
    %v1588 = vmax.f32 %v1587, 0.0
    %1589 = vrot.lane.b32.xlu0 %v1241, 110
    %v1590 = vpop.permute.xlu0 %1589
    %v1591 = vmax.f32 %v1590, 0.0
    %1592 = vadd.xlane.f32.xlu0 %v1566
    %v1593 = vpop.xlane.xlu0 %1592
    %v1594 = vmul.f32 %v1593, %v83
    %v1595 = vmul.f32 %v1566, %v1566
    %1596 = vadd.xlane.f32.xlu0 %v1595
    %v1597 = vpop.xlane.xlu0 %1596
    %v1598 = vmul.f32 %v1597, %v83
    %v1599 = vmul.f32 %v1594, %v1594
    %v1600 = vsub.f32 %v1598, %v1599
    %v1601 = vmax.f32 %v1600, 0.0
    %v1602 = vadd.f32 %v1601, 1e-05
    %v1603 = vrsqrt.pop %v1602
    %v1604 = vmul.f32 %v1603, %v1602
    %v1605 = vmul.f32 %v1604, %v1603
    %v1606 = vmul.f32 0.5, %v1605
    %v1607 = vsub.f32 1.5, %v1606
    %v1608 = vmul.f32 %v1603, %v1607
    %vm1609 = vweird.f32 %v1602
    %vm1610 = vweird.f32 %v1603
    %vm1611 = vmor %vm1609, %vm1610
    %v1612 = vsel %vm1611, %v1603, %v1608
    %v1613 = vsub.f32 %v1566, %v1594
    %v1614 = vmul.f32 %v1613, %v1612
    %1615 = vadd.xlane.f32.xlu0 %v1567
    %v1616 = vpop.xlane.xlu0 %1615
    %v1617 = vmul.f32 %v1616, %v83
    %v1618 = vmul.f32 %v1567, %v1567
    %1619 = vadd.xlane.f32.xlu0 %v1618
    %v1620 = vpop.xlane.xlu0 %1619
    %v1621 = vmul.f32 %v1620, %v83
    %v1622 = vmul.f32 %v1617, %v1617
    %v1623 = vsub.f32 %v1621, %v1622
    %v1624 = vmax.f32 %v1623, 0.0
    %v1625 = vadd.f32 %v1624, 1e-05
    %v1626 = vrsqrt.pop %v1625
    %v1627 = vmul.f32 %v1626, %v1625
    %v1628 = vmul.f32 %v1627, %v1626
    %v1629 = vmul.f32 0.5, %v1628
    %v1630 = vsub.f32 1.5, %v1629
    %v1631 = vmul.f32 %v1626, %v1630
    %vm1632 = vweird.f32 %v1625
    %vm1633 = vweird.f32 %v1626
    %vm1634 = vmor %vm1632, %vm1633
    %v1635 = vsel %vm1634, %v1626, %v1631
    %v1636 = vsub.f32 %v1567, %v1617
    %v1637 = vmul.f32 %v1636, %v1635
    %s1638 = scalar_lea.vmem %s5, 864
    %v1639 = vld [vmem:[%s1638] sm:$0xff]
    %v1640 = vmul.f32 %v1514, %v1639
    %s1641 = scalar_lea.vmem %s5, 1008
    %v1642 = vld [vmem:[%s1641] sm:$0xff]
    %v1643 = vmul.f32 %v1570, %v1642
    %s1644 = scalar_lea.vmem %s5, 872
    %v1645 = vld [vmem:[%s1644] sm:$0xff]
    %v1646 = vmul.f32 %v1519, %v1645
    %v1647 = vadd.f32 %v1640, %v1646
    %s1648 = scalar_lea.vmem %s5, 1016
    %v1649 = vld [vmem:[%s1648] sm:$0xff]
    %v1650 = vmul.f32 %v1573, %v1649
    %v1651 = vadd.f32 %v1643, %v1650
    %s1652 = scalar_lea.vmem %s5, 880
    %v1653 = vld [vmem:[%s1652] sm:$0xff]
    %v1654 = vmul.f32 %v1526, %v1653
    %v1655 = vadd.f32 %v1647, %v1654
    %s1656 = scalar_lea.vmem %s5, 1024
    %v1657 = vld [vmem:[%s1656] sm:$0xff]
    %v1658 = vmul.f32 %v1576, %v1657
    %v1659 = vadd.f32 %v1651, %v1658
    %s1660 = scalar_lea.vmem %s5, 888
    %v1661 = vld [vmem:[%s1660] sm:$0xff]
    %v1662 = vmul.f32 %v1533, %v1661
    %v1663 = vadd.f32 %v1655, %v1662
    %s1664 = scalar_lea.vmem %s5, 1032
    %v1665 = vld [vmem:[%s1664] sm:$0xff]
    %v1666 = vmul.f32 %v1579, %v1665
    %v1667 = vadd.f32 %v1659, %v1666
    %s1668 = scalar_lea.vmem %s5, 896
    %v1669 = vld [vmem:[%s1668] sm:$0xff]
    %v1670 = vmul.f32 %v1510, %v1669
    %v1671 = vadd.f32 %v1663, %v1670
    %s1672 = scalar_lea.vmem %s5, 1040
    %v1673 = vld [vmem:[%s1672] sm:$0xff]
    %v1674 = vmul.f32 %v1510, %v1673
    %v1675 = vadd.f32 %v1667, %v1674
    %s1676 = scalar_lea.vmem %s5, 904
    %v1677 = vld [vmem:[%s1676] sm:$0xff]
    %v1678 = vmul.f32 %v1543, %v1677
    %v1679 = vadd.f32 %v1671, %v1678
    %s1680 = scalar_lea.vmem %s5, 1048
    %v1681 = vld [vmem:[%s1680] sm:$0xff]
    %v1682 = vmul.f32 %v1582, %v1681
    %v1683 = vadd.f32 %v1675, %v1682
    %s1684 = scalar_lea.vmem %s5, 912
    %v1685 = vld [vmem:[%s1684] sm:$0xff]
    %v1686 = vmul.f32 %v1550, %v1685
    %v1687 = vadd.f32 %v1679, %v1686
    %s1688 = scalar_lea.vmem %s5, 1056
    %v1689 = vld [vmem:[%s1688] sm:$0xff]
    %v1690 = vmul.f32 %v1585, %v1689
    %v1691 = vadd.f32 %v1683, %v1690
    %s1692 = scalar_lea.vmem %s5, 920
    %v1693 = vld [vmem:[%s1692] sm:$0xff]
    %v1694 = vmul.f32 %v1557, %v1693
    %v1695 = vadd.f32 %v1687, %v1694
    %s1696 = scalar_lea.vmem %s5, 1064
    %v1697 = vld [vmem:[%s1696] sm:$0xff]
    %v1698 = vmul.f32 %v1588, %v1697
    %v1699 = vadd.f32 %v1691, %v1698
    %s1700 = scalar_lea.vmem %s5, 928
    %v1701 = vld [vmem:[%s1700] sm:$0xff]
    %v1702 = vmul.f32 %v1564, %v1701
    %v1703 = vadd.f32 %v1695, %v1702
    %s1704 = scalar_lea.vmem %s5, 1072
    %v1705 = vld [vmem:[%s1704] sm:$0xff]
    %v1706 = vmul.f32 %v1591, %v1705
    %v1707 = vadd.f32 %v1699, %v1706
    %s1708 = scalar_lea.vmem %s6, 64
    %v1709 = vld [vmem:[%s1708] sm:$0xff]
    %v1710 = vld [vmem:[%s1708 + $0x8] sm:$0xff]
    %v1712 = vsel %vm385, %v1709, 0
    %v1715 = vsel %vm385, %v1710, 0
    %1717 = vmatpush.msra.mxu0 0.0
    %1718 = vmatpush.msra.mxu0 0.0
    %1719 = vmatpush.msra.mxu0 0.0
    %1720 = vmatpush.msra.mxu0 0.0
    %1721 = vmatpush.msra.mxu0 0.0
    %1722 = vmatpush.msra.mxu0 0.0
    %1723 = vmatpush.msra.mxu0 0.0
    %1724 = vmatpush.msra.mxu0 0.0
    %1725 = vmatpush.msra.mxu0 0.0
    %1726 = vmatpush.msra.mxu0 0.0
    %1727 = vmatpush.msra.mxu0 0.0
    %1728 = vmatpush.msra.mxu0 0.0
    %1729 = vmatpush.msra.mxu0 0.0
    %1730 = vmatpush.msra.mxu0 0.0
    %1731 = vmatpush.msra.mxu0 %v1707
    %1732 = vmatpush.msra.mxu0 %v1703
    %1733 = vmatmul.f32.gmra.mxu0 %v1712
    %v1734 = vpop.f32.mrf.mxu0
    %v1735 = vadd.f32 0.0, %v1734
    %1736 = vmatmul.f32.gmra.mxu0 %v1715
    %v1737 = vpop.f32.mrf.mxu0
    %v1738 = vadd.f32 0.0, %v1737
    %1739 = vdwg.mxu0
    %1740 = vadd.xlane.f32.xlu0 %v1735
    %v1741 = vpop.xlane.xlu0 %1740
    %v1742 = vmul.f32 %v1741, %v83
    %v1743 = vmul.f32 %v1735, %v1735
    %1744 = vadd.xlane.f32.xlu0 %v1743
    %v1745 = vpop.xlane.xlu0 %1744
    %v1746 = vmul.f32 %v1745, %v83
    %v1747 = vmul.f32 %v1742, %v1742
    %v1748 = vsub.f32 %v1746, %v1747
    %v1749 = vmax.f32 %v1748, 0.0
    %v1750 = vadd.f32 %v1749, 1e-05
    %v1751 = vrsqrt.pop %v1750
    %v1752 = vmul.f32 %v1751, %v1750
    %v1753 = vmul.f32 %v1752, %v1751
    %v1754 = vmul.f32 0.5, %v1753
    %v1755 = vsub.f32 1.5, %v1754
    %v1756 = vmul.f32 %v1751, %v1755
    %vm1757 = vweird.f32 %v1750
    %vm1758 = vweird.f32 %v1751
    %vm1759 = vmor %vm1757, %vm1758
    %v1760 = vsel %vm1759, %v1751, %v1756
    %v1761 = vsub.f32 %v1735, %v1742
    %v1762 = vmul.f32 %v1761, %v1760
    %s1763 = sld [smem:[#allocation2 + $0x205]]
    %1764 = vadd.xlane.f32.xlu0 %v1738
    %v1765 = vpop.xlane.xlu0 %1764
    %v1766 = vmul.f32 %v1765, %v83
    %v1767 = vmul.f32 %v1738, %v1738
    %1768 = vadd.xlane.f32.xlu0 %v1767
    %v1769 = vpop.xlane.xlu0 %1768
    %v1770 = vmul.f32 %v1769, %v83
    %v1771 = vmul.f32 %v1766, %v1766
    %v1772 = vsub.f32 %v1770, %v1771
    %v1773 = vmax.f32 %v1772, 0.0
    %v1774 = vadd.f32 %v1773, 1e-05
    %v1775 = vrsqrt.pop %v1774
    %v1776 = vmul.f32 %v1775, %v1774
    %v1777 = vmul.f32 %v1776, %v1775
    %v1778 = vmul.f32 0.5, %v1777
    %v1779 = vsub.f32 1.5, %v1778
    %v1780 = vmul.f32 %v1775, %v1779
    %vm1781 = vweird.f32 %v1774
    %vm1782 = vweird.f32 %v1775
    %vm1783 = vmor %vm1781, %vm1782
    %v1784 = vsel %vm1783, %v1775, %v1780
    %v1785 = vstv %s1763
    %v1786 = vmul.f32 %v1784, %v1785
    %v1787 = vsub.f32 %v1738, %v1766
    %v1788 = vmul.f32 %v1787, %v1786
    %v1789 = vmax.f32 %v1762, 0.0
    %1790 = vrot.lane.b32.xlu0 %v1789, 9
    %v1791 = vpop.permute.xlu0 %1790
    %s1792 = scalar_lea.vmem %s5, 936
    %v1793 = vld [vmem:[%s1792] sm:$0xff]
    %v1794 = vmul.f32 %v1791, %v1793
    %1795 = vrot.lane.b32.xlu0 %v1789, 8
    %v1796 = vpop.permute.xlu0 %1795
    %s1797 = scalar_lea.vmem %s5, 944
    %v1798 = vld [vmem:[%s1797] sm:$0xff]
    %v1799 = vmul.f32 %v1796, %v1798
    %v1800 = vadd.f32 %v1794, %v1799
    %1801 = vrot.lane.b32.xlu0 %v1789, 7
    %v1802 = vpop.permute.xlu0 %1801
    %s1803 = scalar_lea.vmem %s5, 952
    %v1804 = vld [vmem:[%s1803] sm:$0xff]
    %v1805 = vmul.f32 %v1802, %v1804
    %v1806 = vadd.f32 %v1800, %v1805
    %1807 = vrot.lane.b32.xlu0 %v1789, 1
    %v1808 = vpop.permute.xlu0 %1807
    %s1809 = scalar_lea.vmem %s5, 960
    %v1810 = vld [vmem:[%s1809] sm:$0xff]
    %v1811 = vmul.f32 %v1808, %v1810
    %v1812 = vadd.f32 %v1806, %v1811
    %s1813 = scalar_lea.vmem %s5, 968
    %v1814 = vld [vmem:[%s1813] sm:$0xff]
    %v1815 = vmul.f32 %v1789, %v1814
    %v1816 = vadd.f32 %v1812, %v1815
    %1817 = vrot.lane.b32.xlu0 %v1789, 127
    %v1818 = vpop.permute.xlu0 %1817
    %s1819 = scalar_lea.vmem %s5, 976
    %v1820 = vld [vmem:[%s1819] sm:$0xff]
    %v1821 = vmul.f32 %v1818, %v1820
    %v1822 = vadd.f32 %v1816, %v1821
    %1823 = vrot.lane.b32.xlu0 %v1789, 121
    %v1824 = vpop.permute.xlu0 %1823
    %s1825 = scalar_lea.vmem %s5, 984
    %v1826 = vld [vmem:[%s1825] sm:$0xff]
    %v1827 = vmul.f32 %v1824, %v1826
    %v1828 = vadd.f32 %v1822, %v1827
    %1829 = vrot.lane.b32.xlu0 %v1789, 120
    %v1830 = vpop.permute.xlu0 %1829
    %s1831 = scalar_lea.vmem %s5, 992
    %v1832 = vld [vmem:[%s1831] sm:$0xff]
    %v1833 = vmul.f32 %v1830, %v1832
    %v1834 = vadd.f32 %v1828, %v1833
    %1835 = vrot.lane.b32.xlu0 %v1789, 119
    %v1836 = vpop.permute.xlu0 %1835
    %s1837 = scalar_lea.vmem %s5, 1000
    %v1838 = vld [vmem:[%s1837] sm:$0xff]
    %v1839 = vmul.f32 %v1836, %v1838
    %v1840 = vadd.f32 %v1834, %v1839
    %s1841 = scalar_lea.vmem %s7, 32
    %v1842 = vld [vmem:[%s1841] sm:$0xff]
    %s1843 = sld [smem:[#allocation2 + $0x204]]
    %v1845 = vsel %vm51, %v1842, 0
    %1847 = vmatpush.msra.mxu0 0.0
    %1848 = vmatpush.msra.mxu0 0.0
    %1849 = vmatpush.msra.mxu0 0.0
    %1850 = vmatpush.msra.mxu0 0.0
    %1851 = vmatpush.msra.mxu0 0.0
    %1852 = vmatpush.msra.mxu0 0.0
    %1853 = vmatpush.msra.mxu0 0.0
    %1854 = vmatpush.msra.mxu0 0.0
    %1855 = vmatpush.msra.mxu0 0.0
    %1856 = vmatpush.msra.mxu0 0.0
    %1857 = vmatpush.msra.mxu0 0.0
    %1858 = vmatpush.msra.mxu0 0.0
    %1859 = vmatpush.msra.mxu0 0.0
    %1860 = vmatpush.msra.mxu0 0.0
    %1861 = vmatpush.msra.mxu0 0.0
    %1862 = vmatpush.msra.mxu0 %v1840
    %1863 = vmatmul.f32.gmra.mxu0 %v1845
    %v1864 = vpop.f32.mrf.mxu0
    %v1865 = vadd.f32 0.0, %v1864
    %1866 = vdwg.mxu0
    %1867 = vadd.xlane.f32.xlu0 %v1865
    %v1868 = vpop.xlane.xlu0 %1867
    %v1869 = vmul.f32 %v1868, %v83
    %v1870 = vmul.f32 %v1865, %v1865
    %1871 = vadd.xlane.f32.xlu0 %v1870
    %v1872 = vpop.xlane.xlu0 %1871
    %v1873 = vmul.f32 %v1872, %v83
    %v1874 = vmul.f32 %v1869, %v1869
    %v1875 = vsub.f32 %v1873, %v1874
    %v1876 = vmax.f32 %v1875, 0.0
    %v1877 = vadd.f32 %v1876, 1e-05
    %v1878 = vrsqrt.pop %v1877
    %v1879 = vmul.f32 %v1878, %v1877
    %v1880 = vmul.f32 %v1879, %v1878
    %v1881 = vmul.f32 0.5, %v1880
    %v1882 = vsub.f32 1.5, %v1881
    %v1883 = vmul.f32 %v1878, %v1882
    %vm1884 = vweird.f32 %v1877
    %vm1885 = vweird.f32 %v1878
    %vm1886 = vmor %vm1884, %vm1885
    %v1887 = vsel %vm1886, %v1878, %v1883
    %v1888 = vstv %s1843
    %v1889 = vmul.f32 %v1887, %v1888
    %v1890 = vsub.f32 %v1865, %v1869
    %v1891 = vmul.f32 %v1890, %v1889
    %s1892 = sld [smem:[#allocation2 + $0x201]]
    %v1893 = vstv %s1892
    %v1894 = vmul.f32 %v1893, %v1614
    %s1895 = sld [smem:[#allocation2 + $0x202]]
    %v1896 = vstv %s1895
    %v1897 = vmul.f32 %v1896, %v1637
    %v1898 = vadd.f32 %v1894, %v1897
    %s1899 = sld [smem:[#allocation2 + $0x203]]
    %v1900 = vstv %s1899
    %v1901 = vmul.f32 %v1900, %v1241
    %v1902 = vadd.f32 %v1898, %v1901
    %v1903 = vadd.f32 %v1902, %v1891
    %v1904 = vadd.f32 %v1903, %v1788
    %v1905 = vadd.f32 %v1509, %v1904
    %1906 = vst [vmem:[%s10] sm:$0xff] %v1241
    %1907 = vst [vmem:[%s10 + $0x8] sm:$0xff] %v1905
    // Predicated region
    $region46: #{_lambda_.1} parent=1 // pred_check
      _
    $region47: #{_lambda_.1} parent=1 // pred_check_branch
      %1909 = sbr.rel (0) target = $region49
    $region48: #{_lambda_.1} parent=1 // pred_region
      _
    $region49: #{_lambda_.1} parent=1 // pred_fallthru
      _
    // Predicated region
    $region50: #{_lambda_.1} parent=1 // pred_check
      _
    $region51: #{_lambda_.1} parent=1 // pred_check_branch
      %1911 = sbr.rel (0) target = $region53
    $region52: #{_lambda_.1} parent=1 // pred_region
      _
    $region53: #{_lambda_.1} parent=1 // pred_fallthru
      _
    %1912 = vsyncpa [#allocation3], 1

</llo_original>
